<compile_context>
chip_gen: v6e
topology: v6e:2x2x1
jax: 0.10.0
libtpu: 0.0.40
codegen_flags: <defaults>
</compile_context>

<pallas_src>
import functools

import jax
import jax.numpy as jnp
from jax import lax
from jax.experimental import pallas as pl
from jax.experimental.pallas import tpu as pltpu

EPS = 1e-5          # PyTorch BatchNorm1d default eps
LANE = 128          # lane width: feature axes are padded to multiples of this
SUB = 16            # bf16 sublane packing: edge tiles are multiples of this


def _round_up(x, m):
    return (x + m - 1) // m * m


def _sigmoid(x):
    return 1.0 / (1.0 + jnp.exp(-x))


def _silu(x):
    return x * _sigmoid(x)


def _softplus(x):
    # nn.Softplus(beta=1, threshold=20)
    return jnp.where(x > 20.0, x, jnp.log(1.0 + jnp.exp(jnp.minimum(x, 20.0))))


def _bn_apply(z, stats, gamma, beta, count):
    # training-mode BatchNorm1d from globally accumulated sum / sum-of-squares
    inv = 1.0 / count
    mean = stats[0:1, :] * inv
    var = jnp.maximum(stats[1:2, :] * inv - mean * mean, 0.0)
    return (z - mean) * lax.rsqrt(var + EPS) * gamma + beta


def _device_vmem_bytes():
    # generation-aware sizing (v5e/v6e: 128 MiB, v7x: 64 MiB); conservative fallback
    try:
        return int(pltpu.get_tpu_info().vmem_capacity_bytes)
    except Exception:
        return 64 * 1024 * 1024


@functools.partial(jax.jit, static_argnames=("edge_tile", "node_tile"))
def conv_func_cgcnn(src, dst, node_feats, edge_feats, params, *,
                    edge_tile=None, node_tile=None):
    """Forward pass of ConvFunc_CGCNN_edgeMLP on a COO graph (src, dst)."""
    N, Fn = node_feats.shape
    E, Fe = edge_feats.shape
    f32, bf16 = jnp.float32, jnp.bfloat16

    Fnp = _round_up(Fn, LANE)                 # lane-dense node-feature width
    Fep = _round_up(Fe, LANE)                 # lane-dense edge-feature width
    F2 = 2 * Fnp                              # fused (mlp | screen) output width

    # ---- generation-aware tile / VMEM sizing ----
    vmem_cap = _device_vmem_bytes()
    big_vmem = vmem_cap >= (100 << 20)
    vmem_limit = min(int(vmem_cap * 0.75), 110 * 1024 * 1024)
    if edge_tile is None:
        edge_tile = 2048 if big_vmem else 1024
    if node_tile is None:
        node_tile = 1024 if big_vmem else 512

    TE = _round_up(min(edge_tile, _round_up(E, SUB)), SUB)
    TN = min(_round_up(node_tile, LANE), _round_up(N, LANE))
    n_ntiles = (N + TN - 1) // TN
    Np = n_ntiles * TN

    n_tiles_raw = (E + TE - 1) // TE
    n_split = 2 if n_tiles_raw >= 2 else 1    # 2-way edge split -> both TCs on v7x
    n_half = (n_tiles_raw + n_split - 1) // n_split
    n_etiles = n_split * n_half
    E_pad = n_etiles * TE

    # ---------------- padded / fused parameters (tiny glue) ----------------
    def pad2(a, r, c):
        a = jnp.asarray(a, f32)
        return jnp.pad(a, ((0, r - a.shape[0]), (0, c - a.shape[1])))

    def fuse_cols(m_part, s_part, rows):
        # mlp block in lanes [0:Fn], screen block in lanes [Fnp:Fnp+Fn]
        m_part = jnp.asarray(m_part, f32)
        s_part = jnp.asarray(s_part, f32)
        out = jnp.zeros((rows, F2), f32)
        out = out.at[: m_part.shape[0], :Fn].set(m_part)
        out = out.at[: s_part.shape[0], Fnp: Fnp + Fn].set(s_part)
        return out

    # NOTE: b_edge / b_mlp / b_scr are not used: a Linear bias followed by
    # training-mode BatchNorm cancels exactly, so dropping it is a no-op that
    # improves the conditioning of the sum / sum-of-squares accumulators.
    w_em = pad2(params["w_edge"], Fep, Fnp).astype(bf16)
    g_em = pad2(params["g_edge"][None, :], 1, Fnp)
    bt_em = pad2(params["beta_edge"][None, :], 1, Fnp)

    w_mlp = jnp.asarray(params["w_mlp"], f32)
    w_scr = jnp.asarray(params["w_scr"], f32)
    w_src_f = fuse_cols(w_mlp[:Fn], w_scr[:Fn], Fnp)                 # src rows of concat
    w_dst_f = fuse_cols(w_mlp[Fn:2 * Fn], w_scr[Fn:2 * Fn], Fnp)     # dst rows
    w_hm_f = fuse_cols(w_mlp[2 * Fn:], w_scr[2 * Fn:], Fnp).astype(bf16)
    g_f = fuse_cols(params["g_mlp"][None, :], params["g_scr"][None, :], 1)
    bt_f = fuse_cols(params["beta_mlp"][None, :], params["beta_scr"][None, :], 1)
    g_n = pad2(params["g_node"][None, :], 1, Fnp)
    bt_n = pad2(params["beta_node"][None, :], 1, Fnp)

    # ---------------- padded inputs ----------------
    x_p = pad2(node_feats, Np, Fnp)                                  # residual + projection src
    e_p = pad2(edge_feats, E_pad, Fep).astype(bf16)

    # Pre-gather (review #1): node_feats[src] @ W == (node_feats @ W)[src];
    # the src- and dst-contributions are simply added in the fused
    # pre-activation, so both gathers collapse into ONE streamed bf16 tensor.
    p_src_all = x_p @ w_src_f                                        # [Np, F2] f32
    p_dst_all = x_p @ w_dst_f
    src_i = jnp.asarray(src, jnp.int32)
    dst_i = jnp.asarray(dst, jnp.int32)
    pg = p_src_all[src_i] + p_dst_all[dst_i]                         # [E, F2] f32 (XLA gather)
    pg = jnp.pad(pg, ((0, E_pad - E), (0, 0))).astype(bf16)

    dst_p = jnp.pad(dst_i[:, None], ((0, E_pad - E), (0, 0)), constant_values=-1)

    cp_edge = pltpu.CompilerParams(
        dimension_semantics=("parallel", "arbitrary"),
        vmem_limit_bytes=vmem_limit)
    cp_node = pltpu.CompilerParams(
        dimension_semantics=("parallel",),
        vmem_limit_bytes=vmem_limit)

    # grid-invariant blocks (small: weights / stats / gammas only)
    def full_e(shape):          # 2-axis grids (split|node, edge-tile)
        return pl.BlockSpec(shape, lambda a, b: (0,) * len(shape))

    def full_n(shape):          # 1-axis node grid
        return pl.BlockSpec(shape, lambda j: (0,) * len(shape))

    def etile_split(w):         # streamed edge tile in the (split, half) grid
        return pl.BlockSpec((TE, w), lambda p, i: (p * n_half + i, 0))

    def etile_node(w):          # streamed edge tile in the (node, edge) grid
        return pl.BlockSpec((TE, w), lambda j, i: (i, 0))

    def _accum_stats(stats_ref, z, t):
        """Accumulate [sum; sum_sq] over valid rows of z for global tile id t."""
        def sums(zm, z2):
            return jnp.concatenate([jnp.sum(zm, axis=0, keepdims=True),
                                    jnp.sum(z2, axis=0, keepdims=True)], axis=0)

        if E_pad == E:                       # no padded edge rows -> no mask, ever
            stats_ref[...] += sums(z, z * z)
        else:
            @pl.when((t + 1) * TE <= E)      # fully valid tile: unmasked sums
            def _():
                stats_ref[...] += sums(z, z * z)

            @pl.when((t + 1) * TE > E)       # partially / fully padded tile
            def _():
                m = (lax.broadcasted_iota(jnp.int32, (TE, 1), 0)
                     < (E - t * TE)).astype(z.dtype)      # (TE,1) lane-broadcast mask
                zm = z * m
                stats_ref[...] += sums(zm, zm * z)

    # ============ pass 1: edge-MLP pre-activation BN statistics ============
    def edge_stats_kernel(e_ref, w_ref, stats_ref):
        p, i = pl.program_id(0), pl.program_id(1)

        @pl.when(i == 0)
        def _():
            stats_ref[...] = jnp.zeros_like(stats_ref)

        z = jnp.dot(e_ref[...], w_ref[...], preferred_element_type=jnp.float32)
        _accum_stats(stats_ref, z, p * n_half + i)

    stats_em = pl.pallas_call(
        edge_stats_kernel,
        out_shape=jax.ShapeDtypeStruct((n_split, 2, Fnp), f32),
        grid=(n_split, n_half),
        in_specs=[etile_split(Fep), full_e((Fep, Fnp))],
        out_specs=pl.BlockSpec((None, 2, Fnp), lambda p, i: (p, 0, 0)),
        compiler_params=cp_edge,
    )(e_p, w_em)

    # ==== pass 2: fused (mlp|screen) pre-activation + its BN statistics ====
    def fused_z_kernel(e_ref, pg_ref, wem_ref, sem_ref, gem_ref, btem_ref,
                       whm_ref, zf_ref, statsf_ref):
        p, i = pl.program_id(0), pl.program_id(1)

        @pl.when(i == 0)
        def _():
            statsf_ref[...] = jnp.zeros_like(statsf_ref)

        # combine the per-half stats accumulators (static unroll, tiny)
        sem = sem_ref[0]
        for k in range(1, n_split):
            sem = sem + sem_ref[k]

        # edgemlp: Linear -> BN(global stats) -> SiLU
        z_em = jnp.dot(e_ref[...], wem_ref[...], preferred_element_type=jnp.float32)
        hm = _silu(_bn_apply(z_em, sem, gem_ref[...], btem_ref[...], E))

        # fused (mlp | screen) pre-activation: pre-gathered node part + hm part
        z_f = (jnp.dot(hm.astype(jnp.bfloat16), whm_ref[...],
                       preferred_element_type=jnp.float32)
               + pg_ref[...].astype(jnp.float32))
        zf_ref[...] = z_f.astype(zf_ref.dtype)            # bf16 HBM intermediate
        _accum_stats(statsf_ref, z_f, p * n_half + i)     # stats in f32

    z_fused, stats_f = pl.pallas_call(
        fused_z_kernel,
        out_shape=(jax.ShapeDtypeStruct((E_pad, F2), bf16),
                   jax.ShapeDtypeStruct((n_split, 2, F2), f32)),
        grid=(n_split, n_half),
        in_specs=[etile_split(Fep), etile_split(F2),
                  full_e((Fep, Fnp)), full_e((n_split, 2, Fnp)),
                  full_e((1, Fnp)), full_e((1, Fnp)),
                  full_e((Fnp, F2))],
        out_specs=(etile_split(F2),
                   pl.BlockSpec((None, 2, F2), lambda p, i: (p, 0, 0))),
        compiler_params=cp_edge,
    )(e_p, pg, w_em, stats_em, g_em, bt_em, w_hm_f)

    # ======= pass 3: normalize, gate, dst-sum aggregate per node tile =======
    def gate_scatter_kernel(zf_ref, dst_ref, sf_ref, gf_ref, btf_ref,
                            agg_ref, statsn_ref):
        j, i = pl.program_id(0), pl.program_id(1)

        @pl.when(i == 0)
        def _():
            agg_ref[...] = jnp.zeros_like(agg_ref)

        sf = sf_ref[0]
        for k in range(1, n_split):
            sf = sf + sf_ref[k]

        zbn = _bn_apply(zf_ref[...].astype(jnp.float32), sf,
                        gf_ref[...], btf_ref[...], E)
        h_edge = (_silu(zbn[:, :Fnp]) *            # MLPLayer(..., 'silu')
                  _softplus(zbn[:, Fnp:])          # MLPLayer(..., 'softplus')
                  ).astype(jnp.bfloat16)

        # copy_e + fn.sum onto destination nodes: one-hot^T @ messages (MXU),
        # one-hot width bounded by the node tile.  Padded edges have dst = -1
        # -> all-zero one-hot row -> dropped.
        node_ids = lax.broadcasted_iota(jnp.int32, (TE, TN), 1) + j * TN
        oh_dst = (node_ids == dst_ref[...]).astype(jnp.bfloat16)
        agg_ref[...] += lax.dot_general(oh_dst, h_edge, (((0,), (0,)), ((), ())),
                                        preferred_element_type=jnp.float32)

        @pl.when(i == pl.num_programs(1) - 1)
        def _():
            # padded node rows of agg are exactly zero -> sums are unaffected
            a = agg_ref[...]
            statsn_ref[...] = jnp.concatenate(
                [jnp.sum(a, axis=0, keepdims=True),
                 jnp.sum(a * a, axis=0, keepdims=True)], axis=0)

    agg, stats_n = pl.pallas_call(
        gate_scatter_kernel,
        out_shape=(jax.ShapeDtypeStruct((Np, Fnp), f32),
                   jax.ShapeDtypeStruct((n_ntiles, 2, Fnp), f32)),
        grid=(n_ntiles, n_etiles),
        in_specs=[etile_node(F2), etile_node(1),
                  full_e((n_split, 2, F2)), full_e((1, F2)), full_e((1, F2))],
        out_specs=(pl.BlockSpec((TN, Fnp), lambda j, i: (j, 0)),
                   pl.BlockSpec((None, 2, Fnp), lambda j, i: (j, 0, 0))),
        compiler_params=cp_edge,
    )(z_fused, dst_p, stats_f, g_f, bt_f)

    # =========== pass 4: node BatchNorm + residual + Softplus tail ===========
    def node_out_kernel(agg_ref, sn_ref, gn_ref, btn_ref, x_ref, out_ref):
        sn = sn_ref[0]
        for k in range(1, n_ntiles):
            sn = sn + sn_ref[k]
        bn = _bn_apply(agg_ref[...], sn, gn_ref[...], btn_ref[...], N)
        out_ref[...] = _softplus(bn + x_ref[...])

    out_p = pl.pallas_call(
        node_out_kernel,
        out_shape=jax.ShapeDtypeStruct((Np, Fnp), f32),
        grid=(n_ntiles,),
        in_specs=[pl.BlockSpec((TN, Fnp), lambda j: (j, 0)),
                  full_n((n_ntiles, 2, Fnp)),
                  full_n((1, Fnp)), full_n((1, Fnp)),
                  pl.BlockSpec((TN, Fnp), lambda j: (j, 0))],
        out_specs=pl.BlockSpec((TN, Fnp), lambda j: (j, 0)),
        compiler_params=cp_node,
    )(agg, stats_n, g_n, bt_n, x_p)

    return out_p[:N, :Fn]


def _ref_forward(src, dst, node_feats, edge_feats, params):
    """Pure-JAX f32 reference of the PyTorch forward (training-mode BN)."""
    def bn(z, g, b):
        m = jnp.mean(z, axis=0, keepdims=True)
        v = jnp.mean((z - m) ** 2, axis=0, keepdims=True)
        return (z - m) / jnp.sqrt(v + EPS) * g + b

    silu = lambda z: z * jax.nn.sigmoid(z)
    sp = lambda z: jnp.where(z > 20.0, z, jnp.log(1.0 + jnp.exp(jnp.minimum(z, 20.0))))

    hm = silu(bn(edge_feats @ params["w_edge"] + params["b_edge"],
                 params["g_edge"], params["beta_edge"]))
    hc = jnp.concatenate([node_feats[src], node_feats[dst], hm], axis=1)
    h_mlp = silu(bn(hc @ params["w_mlp"] + params["b_mlp"],
                    params["g_mlp"], params["beta_mlp"]))
    h_scr = sp(bn(hc @ params["w_scr"] + params["b_scr"],
                  params["g_scr"], params["beta_scr"]))
    he = h_mlp * h_scr
    agg = jnp.zeros_like(node_feats).at[dst].add(he)
    return sp(bn(agg, params["g_node"], params["beta_node"]) + node_feats)


if __name__ == "__main__":
    key = jax.random.PRNGKey(0)
    # small shapes, chosen so the grid exercises: split edge halves, a
    # partially padded last edge tile, and multiple node tiles.
    N, Fn, Fe, E = 160, 16, 8, 480

    ks = jax.random.split(key, 10)
    node_feats = jax.random.normal(ks[0], (N, Fn), jnp.float32)
    edge_feats = jax.random.normal(ks[1], (E, Fe), jnp.float32)
    src = jax.random.randint(ks[2], (E,), 0, N)
    dst = jax.random.randint(ks[3], (E,), 0, N)

    params = {
        # Linear weights stored as [in, out]; BN defaults: gamma=1, beta=0.
        # Biases are part of the interface (and the reference) but cancel
        # exactly under training-mode BatchNorm.
        "w_edge": 0.1 * jax.random.normal(ks[4], (Fe, Fn), jnp.float32),
        "b_edge": 0.1 * jax.random.normal(ks[5], (Fn,), jnp.float32),
        "g_edge": jnp.ones((Fn,), jnp.float32),
        "beta_edge": jnp.zeros((Fn,), jnp.float32),
        "w_mlp": 0.1 * jax.random.normal(ks[6], (3 * Fn, Fn), jnp.float32),
        "b_mlp": 0.1 * jax.random.normal(ks[7], (Fn,), jnp.float32),
        "g_mlp": jnp.ones((Fn,), jnp.float32),
        "beta_mlp": jnp.zeros((Fn,), jnp.float32),
        "w_scr": 0.1 * jax.random.normal(ks[8], (3 * Fn, Fn), jnp.float32),
        "b_scr": 0.1 * jax.random.normal(ks[9], (Fn,), jnp.float32),
        "g_scr": jnp.ones((Fn,), jnp.float32),
        "beta_scr": jnp.zeros((Fn,), jnp.float32),
        "g_node": jnp.ones((Fn,), jnp.float32),
        "beta_node": jnp.zeros((Fn,), jnp.float32),
    }

    # small tiles so the toy problem exercises a multi-step, multi-tile grid
    out = conv_func_cgcnn(src, dst, node_feats, edge_feats, params,
                          edge_tile=64, node_tile=128)
    out = jax.block_until_ready(out)
    assert out.shape == (N, Fn) and out.dtype == jnp.float32
    assert bool(jnp.all(jnp.isfinite(out)))

    # tolerance accounts for bf16 MXU operands / bf16 z_fused (f32 accumulation)
    ref = _ref_forward(src, dst, node_feats, edge_feats, params)
    err = jnp.abs(out - ref)
    max_err = float(jnp.max(err))
    mean_err = float(jnp.mean(err))
    assert max_err < 0.15, f"max mismatch vs f32 reference: {max_err}"
    assert mean_err < 0.02, f"mean mismatch vs f32 reference: {mean_err}"
    print("KERNEL_OK")
</pallas_src>

<mosaic_0001>
module attributes {stable_mosaic.version = 11 : i64} {
  func.func @edge_stats_kernel(%arg0: i32, %arg1: i32, %arg2: memref<64x128xbf16, #tpu.memory_space<vmem>>, %arg3: memref<128x128xbf16, #tpu.memory_space<vmem>>, %arg4: memref<1x2x128xf32, #tpu.memory_space<vmem>>) attributes {dimension_semantics = [#tpu.dimension_semantics<parallel>, #tpu.dimension_semantics<arbitrary>], iteration_bounds = array<i64: 2, 4>, scalar_prefetch = 0 : i64, scratch_operands = 0 : i64, tpu.core_type = #tpu.core_type<tc>, window_params = [{transform_indices = @transform_0, window_bounds = array<i64: 64, 128>}, {pipeline_mode = #tpu.pipeline_mode<synchronous>, transform_indices = @transform_1, window_bounds = array<i64: 128, 128>}, {transform_indices = @transform_2, window_bounds = array<i64: 1, 2, 128>}]} {
    %c0_i32 = arith.constant 0 : i32
    %0 = arith.cmpi eq, %arg1, %c0_i32 : i32
    %1 = arith.extui %0 : i1 to i32
    %c0_i32_0 = arith.constant 0 : i32
    %2 = arith.cmpi ne, %1, %c0_i32_0 : i32
    scf.if %2 {
      %cst_9 = arith.constant 0.000000e+00 : f32
      %18 = vector.broadcast %cst_9 : f32 to vector<2x128xf32>
      %c0_10 = arith.constant 0 : index
      %c0_11 = arith.constant 0 : index
      %c0_12 = arith.constant 0 : index
      %19 = vector.load %arg4[%c0_10, %c0_11, %c0_12] : memref<1x2x128xf32, #tpu.memory_space<vmem>>, vector<1x2x128xf32>
      %20 = vector.shape_cast %19 : vector<1x2x128xf32> to vector<2x128xf32>
      %21 = vector.shape_cast %18 : vector<2x128xf32> to vector<1x2x128xf32>
      tpu.vector_store %arg4[%c0_10, %c0_11, %c0_12], %21 {strides = array<i32>} : memref<1x2x128xf32, #tpu.memory_space<vmem>>, vector<1x2x128xf32>,
    } else {
    }
    %c0 = arith.constant 0 : index
    %c0_1 = arith.constant 0 : index
    %3 = vector.load %arg2[%c0, %c0_1] : memref<64x128xbf16, #tpu.memory_space<vmem>>, vector<64x128xbf16>
    %c0_2 = arith.constant 0 : index
    %c0_3 = arith.constant 0 : index
    %4 = vector.load %arg3[%c0_2, %c0_3] : memref<128x128xbf16, #tpu.memory_space<vmem>>, vector<128x128xbf16>
    %cst = arith.constant dense<0.000000e+00> : vector<64x128xf32>
    %5 = tpu.matmul %3, %4, %cst {dimension_numbers = #tpu.dot_dimension_numbers<[1], [0], [0], [1], [0, 0, 1, 1], [], []>} : vector<64x128xbf16>, vector<128x128xbf16>, vector<64x128xf32> -> vector<64x128xf32>
    %c4_i32 = arith.constant 4 : i32
    %6 = arith.muli %arg0, %c4_i32 : i32
    %7 = arith.addi %6, %arg1 : i32
    %c1_i32 = arith.constant 1 : i32
    %8 = arith.addi %7, %c1_i32 : i32
    %c64_i32 = arith.constant 64 : i32
    %9 = arith.muli %8, %c64_i32 : i32
    %c480_i32 = arith.constant 480 : i32
    %10 = arith.cmpi sle, %9, %c480_i32 : i32
    %11 = arith.extui %10 : i1 to i32
    %c0_i32_4 = arith.constant 0 : i32
    %12 = arith.cmpi ne, %11, %c0_i32_4 : i32
    scf.if %12 {
      %c0_9 = arith.constant 0 : index
      %c0_10 = arith.constant 0 : index
      %c0_11 = arith.constant 0 : index
      %18 = vector.load %arg4[%c0_9, %c0_10, %c0_11] : memref<1x2x128xf32, #tpu.memory_space<vmem>>, vector<1x2x128xf32>
      %19 = vector.shape_cast %18 : vector<1x2x128xf32> to vector<2x128xf32>
      %20 = arith.mulf %5, %5 : vector<64x128xf32>
      %cst_12 = arith.constant dense<0.000000e+00> : vector<128xf32>
      %21 = vector.multi_reduction <add>, %5, %cst_12 [0] : vector<64x128xf32> to vector<128xf32>
      %22 = vector.shape_cast %21 : vector<128xf32> to vector<1x128xf32>
      %cst_13 = arith.constant dense<0.000000e+00> : vector<128xf32>
      %23 = vector.multi_reduction <add>, %20, %cst_13 [0] : vector<64x128xf32> to vector<128xf32>
      %24 = vector.shape_cast %23 : vector<128xf32> to vector<1x128xf32>
      %25 = tpu.concatenate %22, %24 in 0 : vector<1x128xf32>, vector<1x128xf32> -> vector<2x128xf32>
      %26 = arith.addf %19, %25 : vector<2x128xf32>
      %c0_14 = arith.constant 0 : index
      %c0_15 = arith.constant 0 : index
      %c0_16 = arith.constant 0 : index
      %27 = vector.load %arg4[%c0_14, %c0_15, %c0_16] : memref<1x2x128xf32, #tpu.memory_space<vmem>>, vector<1x2x128xf32>
      %28 = vector.shape_cast %27 : vector<1x2x128xf32> to vector<2x128xf32>
      %29 = vector.shape_cast %26 : vector<2x128xf32> to vector<1x2x128xf32>
      tpu.vector_store %arg4[%c0_14, %c0_15, %c0_16], %29 {strides = array<i32>} : memref<1x2x128xf32, #tpu.memory_space<vmem>>, vector<1x2x128xf32>,
    } else {
    }
    %c1_i32_5 = arith.constant 1 : i32
    %13 = arith.addi %7, %c1_i32_5 : i32
    %c64_i32_6 = arith.constant 64 : i32
    %14 = arith.muli %13, %c64_i32_6 : i32
    %c480_i32_7 = arith.constant 480 : i32
    %15 = arith.cmpi sgt, %14, %c480_i32_7 : i32
    %16 = arith.extui %15 : i1 to i32
    %c0_i32_8 = arith.constant 0 : i32
    %17 = arith.cmpi ne, %16, %c0_i32_8 : i32
    scf.if %17 {
      %18 = tpu.iota {dimensions = array<i32: 0>} : vector<64x1xi32>
      %c64_i32_9 = arith.constant 64 : i32
      %19 = arith.muli %7, %c64_i32_9 : i32
      %c480_i32_10 = arith.constant 480 : i32
      %20 = arith.subi %c480_i32_10, %19 : i32
      %21 = vector.broadcast %20 : i32 to vector<64x1xi32>
      %22 = arith.cmpi slt, %18, %21 : vector<64x1xi32>
      %23 = arith.extui %22 : vector<64x1xi1> to vector<64x1xi32>
      %24 = arith.sitofp %23 : vector<64x1xi32> to vector<64x1xf32>
      %25 = vector.broadcast %24 : vector<64x1xf32> to vector<64x128xf32>
      %26 = arith.mulf %5, %25 : vector<64x128xf32>
      %c0_11 = arith.constant 0 : index
      %c0_12 = arith.constant 0 : index
      %c0_13 = arith.constant 0 : index
      %27 = vector.load %arg4[%c0_11, %c0_12, %c0_13] : memref<1x2x128xf32, #tpu.memory_space<vmem>>, vector<1x2x128xf32>
      %28 = vector.shape_cast %27 : vector<1x2x128xf32> to vector<2x128xf32>
      %29 = arith.mulf %26, %5 : vector<64x128xf32>
      %cst_14 = arith.constant dense<0.000000e+00> : vector<128xf32>
      %30 = vector.multi_reduction <add>, %26, %cst_14 [0] : vector<64x128xf32> to vector<128xf32>
      %31 = vector.shape_cast %30 : vector<128xf32> to vector<1x128xf32>
      %cst_15 = arith.constant dense<0.000000e+00> : vector<128xf32>
      %32 = vector.multi_reduction <add>, %29, %cst_15 [0] : vector<64x128xf32> to vector<128xf32>
      %33 = vector.shape_cast %32 : vector<128xf32> to vector<1x128xf32>
      %34 = tpu.concatenate %31, %33 in 0 : vector<1x128xf32>, vector<1x128xf32> -> vector<2x128xf32>
      %35 = arith.addf %28, %34 : vector<2x128xf32>
      %c0_16 = arith.constant 0 : index
      %c0_17 = arith.constant 0 : index
      %c0_18 = arith.constant 0 : index
      %36 = vector.load %arg4[%c0_16, %c0_17, %c0_18] : memref<1x2x128xf32, #tpu.memory_space<vmem>>, vector<1x2x128xf32>
      %37 = vector.shape_cast %36 : vector<1x2x128xf32> to vector<2x128xf32>
      %38 = vector.shape_cast %35 : vector<2x128xf32> to vector<1x2x128xf32>
      tpu.vector_store %arg4[%c0_16, %c0_17, %c0_18], %38 {strides = array<i32>} : memref<1x2x128xf32, #tpu.memory_space<vmem>>, vector<1x2x128xf32>,
    } else {
    }
    return
  }
  func.func @transform_0(%arg0: i32, %arg1: i32) -> (i32, i32) {
    %c4_i32 = arith.constant 4 : i32
    %0 = arith.muli %arg0, %c4_i32 : i32
    %1 = arith.addi %0, %arg1 : i32
    %c0_i32 = arith.constant 0 : i32
    %c0_i32_0 = arith.constant 0 : i32
    return %1, %c0_i32 : i32, i32
  }
  func.func @transform_1(%arg0: i32, %arg1: i32) -> (i32, i32) {
    %c0_i32 = arith.constant 0 : i32
    %c0_i32_0 = arith.constant 0 : i32
    %c0_i32_1 = arith.constant 0 : i32
    return %c0_i32, %c0_i32_0 : i32, i32
  }
  func.func @transform_2(%arg0: i32, %arg1: i32) -> (i32, i32, i32) {
    %c0_i32 = arith.constant 0 : i32
    %c0_i32_0 = arith.constant 0 : i32
    %c0_i32_1 = arith.constant 0 : i32
    return %arg0, %c0_i32, %c0_i32_0 : i32, i32, i32
  }
}

module attributes {stable_mosaic.version = 11 : i64} {
  func.func @fused_z_kernel(%arg0: i32, %arg1: i32, %arg2: memref<64x128xbf16, #tpu.memory_space<vmem>>, %arg3: memref<64x256xbf16, #tpu.memory_space<vmem>>, %arg4: memref<128x128xbf16, #tpu.memory_space<vmem>>, %arg5: memref<2x2x128xf32, #tpu.memory_space<vmem>>, %arg6: memref<1x128xf32, #tpu.memory_space<vmem>>, %arg7: memref<1x128xf32, #tpu.memory_space<vmem>>, %arg8: memref<128x256xbf16, #tpu.memory_space<vmem>>, %arg9: memref<64x256xbf16, #tpu.memory_space<vmem>>, %arg10: memref<1x2x256xf32, #tpu.memory_space<vmem>>) attributes {dimension_semantics = [#tpu.dimension_semantics<parallel>, #tpu.dimension_semantics<arbitrary>], iteration_bounds = array<i64: 2, 4>, scalar_prefetch = 0 : i64, scratch_operands = 0 : i64, tpu.core_type = #tpu.core_type<tc>, window_params = [{transform_indices = @transform_0, window_bounds = array<i64: 64, 128>}, {transform_indices = @transform_1, window_bounds = array<i64: 64, 256>}, {pipeline_mode = #tpu.pipeline_mode<synchronous>, transform_indices = @transform_2, window_bounds = array<i64: 128, 128>}, {pipeline_mode = #tpu.pipeline_mode<synchronous>, transform_indices = @transform_3, window_bounds = array<i64: 2, 2, 128>}, {pipeline_mode = #tpu.pipeline_mode<synchronous>, transform_indices = @transform_4, window_bounds = array<i64: 1, 128>}, {pipeline_mode = #tpu.pipeline_mode<synchronous>, transform_indices = @transform_5, window_bounds = array<i64: 1, 128>}, {pipeline_mode = #tpu.pipeline_mode<synchronous>, transform_indices = @transform_6, window_bounds = array<i64: 128, 256>}, {transform_indices = @transform_7, window_bounds = array<i64: 64, 256>}, {transform_indices = @transform_8, window_bounds = array<i64: 1, 2, 256>}]} {
    %c0_i32 = arith.constant 0 : i32
    %0 = arith.cmpi eq, %arg1, %c0_i32 : i32
    %1 = arith.extui %0 : i1 to i32
    %c0_i32_0 = arith.constant 0 : i32
    %2 = arith.cmpi ne, %1, %c0_i32_0 : i32
    scf.if %2 {
      %cst_32 = arith.constant 0.000000e+00 : f32
      %62 = vector.broadcast %cst_32 : f32 to vector<2x256xf32>
      %c0_33 = arith.constant 0 : index
      %c0_34 = arith.constant 0 : index
      %c0_35 = arith.constant 0 : index
      %63 = vector.load %arg10[%c0_33, %c0_34, %c0_35] : memref<1x2x256xf32, #tpu.memory_space<vmem>>, vector<1x2x256xf32>
      %64 = vector.shape_cast %63 : vector<1x2x256xf32> to vector<2x256xf32>
      %65 = vector.shape_cast %62 : vector<2x256xf32> to vector<1x2x256xf32>
      tpu.vector_store %arg10[%c0_33, %c0_34, %c0_35], %65 {strides = array<i32>} : memref<1x2x256xf32, #tpu.memory_space<vmem>>, vector<1x2x256xf32>,
    } else {
    }
    %c0 = arith.constant 0 : index
    %c0_1 = arith.constant 0 : index
    %c0_2 = arith.constant 0 : index
    %3 = vector.load %arg5[%c0, %c0_1, %c0_2] : memref<2x2x128xf32, #tpu.memory_space<vmem>>, vector<1x2x128xf32>
    %4 = vector.shape_cast %3 : vector<1x2x128xf32> to vector<2x128xf32>
    %c1 = arith.constant 1 : index
    %c0_3 = arith.constant 0 : index
    %c0_4 = arith.constant 0 : index
    %5 = vector.load %arg5[%c1, %c0_3, %c0_4] : memref<2x2x128xf32, #tpu.memory_space<vmem>>, vector<1x2x128xf32>
    %6 = vector.shape_cast %5 : vector<1x2x128xf32> to vector<2x128xf32>
    %7 = arith.addf %4, %6 : vector<2x128xf32>
    %c0_5 = arith.constant 0 : index
    %c0_6 = arith.constant 0 : index
    %8 = vector.load %arg2[%c0_5, %c0_6] : memref<64x128xbf16, #tpu.memory_space<vmem>>, vector<64x128xbf16>
    %c0_7 = arith.constant 0 : index
    %c0_8 = arith.constant 0 : index
    %9 = vector.load %arg4[%c0_7, %c0_8] : memref<128x128xbf16, #tpu.memory_space<vmem>>, vector<128x128xbf16>
    %cst = arith.constant dense<0.000000e+00> : vector<64x128xf32>
    %10 = tpu.matmul %8, %9, %cst {dimension_numbers = #tpu.dot_dimension_numbers<[1], [0], [0], [1], [0, 0, 1, 1], [], []>} : vector<64x128xbf16>, vector<128x128xbf16>, vector<64x128xf32> -> vector<64x128xf32>
    %c0_9 = arith.constant 0 : index
    %c0_10 = arith.constant 0 : index
    %11 = vector.load %arg6[%c0_9, %c0_10] : memref<1x128xf32, #tpu.memory_space<vmem>>, vector<1x128xf32>
    %c0_11 = arith.constant 0 : index
    %c0_12 = arith.constant 0 : index
    %12 = vector.load %arg7[%c0_11, %c0_12] : memref<1x128xf32, #tpu.memory_space<vmem>>, vector<1x128xf32>
    %13 = vector.extract_strided_slice %7 {offsets = [0, 0], sizes = [1, 128], strides = [1, 1]} : vector<2x128xf32> to vector<1x128xf32>
    %cst_13 = arith.constant 0.00208333344 : f32
    %14 = vector.broadcast %cst_13 : f32 to vector<1x128xf32>
    %15 = arith.mulf %13, %14 : vector<1x128xf32>
    %16 = vector.extract_strided_slice %7 {offsets = [1, 0], sizes = [1, 128], strides = [1, 1]} : vector<2x128xf32> to vector<1x128xf32>
    %cst_14 = arith.constant 0.00208333344 : f32
    %17 = vector.broadcast %cst_14 : f32 to vector<1x128xf32>
    %18 = arith.mulf %16, %17 : vector<1x128xf32>
    %19 = arith.mulf %15, %15 : vector<1x128xf32>
    %20 = arith.subf %18, %19 : vector<1x128xf32>
    %cst_15 = arith.constant 0.000000e+00 : f32
    %21 = vector.broadcast %cst_15 : f32 to vector<1x128xf32>
    %22 = arith.maximumf %20, %21 : vector<1x128xf32>
    %23 = vector.broadcast %15 : vector<1x128xf32> to vector<64x128xf32>
    %24 = arith.subf %10, %23 : vector<64x128xf32>
    %cst_16 = arith.constant 9.99999974E-6 : f32
    %25 = vector.broadcast %cst_16 : f32 to vector<1x128xf32>
    %26 = arith.addf %22, %25 : vector<1x128xf32>
    %27 = math.rsqrt %26 : vector<1x128xf32>
    %28 = vector.broadcast %27 : vector<1x128xf32> to vector<64x128xf32>
    %29 = arith.mulf %24, %28 : vector<64x128xf32>
    %30 = vector.broadcast %11 : vector<1x128xf32> to vector<64x128xf32>
    %31 = arith.mulf %29, %30 : vector<64x128xf32>
    %32 = vector.broadcast %12 : vector<1x128xf32> to vector<64x128xf32>
    %33 = arith.addf %31, %32 : vector<64x128xf32>
    %cst_17 = arith.constant 0.000000e+00 : f32
    %34 = vector.broadcast %cst_17 : f32 to vector<64x128xf32>
    %35 = arith.subf %34, %33 : vector<64x128xf32>
    %36 = math.exp %35 : vector<64x128xf32>
    %cst_18 = arith.constant 1.000000e+00 : f32
    %37 = vector.broadcast %cst_18 : f32 to vector<64x128xf32>
    %38 = arith.addf %37, %36 : vector<64x128xf32>
    %cst_19 = arith.constant 1.000000e+00 : f32
    %39 = vector.broadcast %cst_19 : f32 to vector<64x128xf32>
    %40 = arith.divf %39, %38 : vector<64x128xf32>
    %41 = arith.mulf %33, %40 : vector<64x128xf32>
    %42 = arith.truncf %41 : vector<64x128xf32> to vector<64x128xbf16>
    %c0_20 = arith.constant 0 : index
    %c0_21 = arith.constant 0 : index
    %43 = vector.load %arg8[%c0_20, %c0_21] : memref<128x256xbf16, #tpu.memory_space<vmem>>, vector<128x256xbf16>
    %cst_22 = arith.constant dense<0.000000e+00> : vector<64x256xf32>
    %44 = tpu.matmul %42, %43, %cst_22 {dimension_numbers = #tpu.dot_dimension_numbers<[1], [0], [0], [1], [0, 0, 1, 1], [], []>} : vector<64x128xbf16>, vector<128x256xbf16>, vector<64x256xf32> -> vector<64x256xf32>
    %c0_23 = arith.constant 0 : index
    %c0_24 = arith.constant 0 : index
    %45 = vector.load %arg3[%c0_23, %c0_24] : memref<64x256xbf16, #tpu.memory_space<vmem>>, vector<64x256xbf16>
    %46 = arith.extf %45 : vector<64x256xbf16> to vector<64x256xf32>
    %47 = arith.addf %44, %46 : vector<64x256xf32>
    %48 = arith.truncf %47 : vector<64x256xf32> to vector<64x256xbf16>
    %c0_25 = arith.constant 0 : index
    %c0_26 = arith.constant 0 : index
    %49 = vector.load %arg9[%c0_25, %c0_26] : memref<64x256xbf16, #tpu.memory_space<vmem>>, vector<64x256xbf16>
    tpu.vector_store %arg9[%c0_25, %c0_26], %48 {strides = array<i32>} : memref<64x256xbf16, #tpu.memory_space<vmem>>, vector<64x256xbf16>,
    %c4_i32 = arith.constant 4 : i32
    %50 = arith.muli %arg0, %c4_i32 : i32
    %51 = arith.addi %50, %arg1 : i32
    %c1_i32 = arith.constant 1 : i32
    %52 = arith.addi %51, %c1_i32 : i32
    %c64_i32 = arith.constant 64 : i32
    %53 = arith.muli %52, %c64_i32 : i32
    %c480_i32 = arith.constant 480 : i32
    %54 = arith.cmpi sle, %53, %c480_i32 : i32
    %55 = arith.extui %54 : i1 to i32
    %c0_i32_27 = arith.constant 0 : i32
    %56 = arith.cmpi ne, %55, %c0_i32_27 : i32
    scf.if %56 {
      %c0_32 = arith.constant 0 : index
      %c0_33 = arith.constant 0 : index
      %c0_34 = arith.constant 0 : index
      %62 = vector.load %arg10[%c0_32, %c0_33, %c0_34] : memref<1x2x256xf32, #tpu.memory_space<vmem>>, vector<1x2x256xf32>
      %63 = vector.shape_cast %62 : vector<1x2x256xf32> to vector<2x256xf32>
      %64 = arith.mulf %47, %47 : vector<64x256xf32>
      %cst_35 = arith.constant dense<0.000000e+00> : vector<256xf32>
      %65 = vector.multi_reduction <add>, %47, %cst_35 [0] : vector<64x256xf32> to vector<256xf32>
      %66 = vector.shape_cast %65 : vector<256xf32> to vector<1x256xf32>
      %cst_36 = arith.constant dense<0.000000e+00> : vector<256xf32>
      %67 = vector.multi_reduction <add>, %64, %cst_36 [0] : vector<64x256xf32> to vector<256xf32>
      %68 = vector.shape_cast %67 : vector<256xf32> to vector<1x256xf32>
      %69 = tpu.concatenate %66, %68 in 0 : vector<1x256xf32>, vector<1x256xf32> -> vector<2x256xf32>
      %70 = arith.addf %63, %69 : vector<2x256xf32>
      %c0_37 = arith.constant 0 : index
      %c0_38 = arith.constant 0 : index
      %c0_39 = arith.constant 0 : index
      %71 = vector.load %arg10[%c0_37, %c0_38, %c0_39] : memref<1x2x256xf32, #tpu.memory_space<vmem>>, vector<1x2x256xf32>
      %72 = vector.shape_cast %71 : vector<1x2x256xf32> to vector<2x256xf32>
      %73 = vector.shape_cast %70 : vector<2x256xf32> to vector<1x2x256xf32>
      tpu.vector_store %arg10[%c0_37, %c0_38, %c0_39], %73 {strides = array<i32>} : memref<1x2x256xf32, #tpu.memory_space<vmem>>, vector<1x2x256xf32>,
    } else {
    }
    %c1_i32_28 = arith.constant 1 : i32
    %57 = arith.addi %51, %c1_i32_28 : i32
    %c64_i32_29 = arith.constant 64 : i32
    %58 = arith.muli %57, %c64_i32_29 : i32
    %c480_i32_30 = arith.constant 480 : i32
    %59 = arith.cmpi sgt, %58, %c480_i32_30 : i32
    %60 = arith.extui %59 : i1 to i32
    %c0_i32_31 = arith.constant 0 : i32
    %61 = arith.cmpi ne, %60, %c0_i32_31 : i32
    scf.if %61 {
      %62 = tpu.iota {dimensions = array<i32: 0>} : vector<64x1xi32>
      %c64_i32_32 = arith.constant 64 : i32
      %63 = arith.muli %51, %c64_i32_32 : i32
      %c480_i32_33 = arith.constant 480 : i32
      %64 = arith.subi %c480_i32_33, %63 : i32
      %65 = vector.broadcast %64 : i32 to vector<64x1xi32>
      %66 = arith.cmpi slt, %62, %65 : vector<64x1xi32>
      %67 = arith.extui %66 : vector<64x1xi1> to vector<64x1xi32>
      %68 = arith.sitofp %67 : vector<64x1xi32> to vector<64x1xf32>
      %69 = vector.broadcast %68 : vector<64x1xf32> to vector<64x256xf32>
      %70 = arith.mulf %47, %69 : vector<64x256xf32>
      %c0_34 = arith.constant 0 : index
      %c0_35 = arith.constant 0 : index
      %c0_36 = arith.constant 0 : index
      %71 = vector.load %arg10[%c0_34, %c0_35, %c0_36] : memref<1x2x256xf32, #tpu.memory_space<vmem>>, vector<1x2x256xf32>
      %72 = vector.shape_cast %71 : vector<1x2x256xf32> to vector<2x256xf32>
      %73 = arith.mulf %70, %47 : vector<64x256xf32>
      %cst_37 = arith.constant dense<0.000000e+00> : vector<256xf32>
      %74 = vector.multi_reduction <add>, %70, %cst_37 [0] : vector<64x256xf32> to vector<256xf32>
      %75 = vector.shape_cast %74 : vector<256xf32> to vector<1x256xf32>
      %cst_38 = arith.constant dense<0.000000e+00> : vector<256xf32>
      %76 = vector.multi_reduction <add>, %73, %cst_38 [0] : vector<64x256xf32> to vector<256xf32>
      %77 = vector.shape_cast %76 : vector<256xf32> to vector<1x256xf32>
      %78 = tpu.concatenate %75, %77 in 0 : vector<1x256xf32>, vector<1x256xf32> -> vector<2x256xf32>
      %79 = arith.addf %72, %78 : vector<2x256xf32>
      %c0_39 = arith.constant 0 : index
      %c0_40 = arith.constant 0 : index
      %c0_41 = arith.constant 0 : index
      %80 = vector.load %arg10[%c0_39, %c0_40, %c0_41] : memref<1x2x256xf32, #tpu.memory_space<vmem>>, vector<1x2x256xf32>
      %81 = vector.shape_cast %80 : vector<1x2x256xf32> to vector<2x256xf32>
      %82 = vector.shape_cast %79 : vector<2x256xf32> to vector<1x2x256xf32>
      tpu.vector_store %arg10[%c0_39, %c0_40, %c0_41], %82 {strides = array<i32>} : memref<1x2x256xf32, #tpu.memory_space<vmem>>, vector<1x2x256xf32>,
    } else {
    }
    return
  }
  func.func @transform_0(%arg0: i32, %arg1: i32) -> (i32, i32) {
    %c4_i32 = arith.constant 4 : i32
    %0 = arith.muli %arg0, %c4_i32 : i32
    %1 = arith.addi %0, %arg1 : i32
    %c0_i32 = arith.constant 0 : i32
    %c0_i32_0 = arith.constant 0 : i32
    return %1, %c0_i32 : i32, i32
  }
  func.func @transform_1(%arg0: i32, %arg1: i32) -> (i32, i32) {
    %c4_i32 = arith.constant 4 : i32
    %0 = arith.muli %arg0, %c4_i32 : i32
    %1 = arith.addi %0, %arg1 : i32
    %c0_i32 = arith.constant 0 : i32
    %c0_i32_0 = arith.constant 0 : i32
    return %1, %c0_i32 : i32, i32
  }
  func.func @transform_2(%arg0: i32, %arg1: i32) -> (i32, i32) {
    %c0_i32 = arith.constant 0 : i32
    %c0_i32_0 = arith.constant 0 : i32
    %c0_i32_1 = arith.constant 0 : i32
    return %c0_i32, %c0_i32_0 : i32, i32
  }
  func.func @transform_3(%arg0: i32, %arg1: i32) -> (i32, i32, i32) {
    %c0_i32 = arith.constant 0 : i32
    %c0_i32_0 = arith.constant 0 : i32
    %c0_i32_1 = arith.constant 0 : i32
    %c0_i32_2 = arith.constant 0 : i32
    return %c0_i32, %c0_i32_0, %c0_i32_1 : i32, i32, i32
  }
  func.func @transform_4(%arg0: i32, %arg1: i32) -> (i32, i32) {
    %c0_i32 = arith.constant 0 : i32
    %c0_i32_0 = arith.constant 0 : i32
    %c0_i32_1 = arith.constant 0 : i32
    return %c0_i32, %c0_i32_0 : i32, i32
  }
  func.func @transform_5(%arg0: i32, %arg1: i32) -> (i32, i32) {
    %c0_i32 = arith.constant 0 : i32
    %c0_i32_0 = arith.constant 0 : i32
    %c0_i32_1 = arith.constant 0 : i32
    return %c0_i32, %c0_i32_0 : i32, i32
  }
  func.func @transform_6(%arg0: i32, %arg1: i32) -> (i32, i32) {
    %c0_i32 = arith.constant 0 : i32
    %c0_i32_0 = arith.constant 0 : i32
    %c0_i32_1 = arith.constant 0 : i32
    return %c0_i32, %c0_i32_0 : i32, i32
  }
  func.func @transform_7(%arg0: i32, %arg1: i32) -> (i32, i32) {
    %c4_i32 = arith.constant 4 : i32
    %0 = arith.muli %arg0, %c4_i32 : i32
    %1 = arith.addi %0, %arg1 : i32
    %c0_i32 = arith.constant 0 : i32
    %c0_i32_0 = arith.constant 0 : i32
    return %1, %c0_i32 : i32, i32
  }
  func.func @transform_8(%arg0: i32, %arg1: i32) -> (i32, i32, i32) {
    %c0_i32 = arith.constant 0 : i32
    %c0_i32_0 = arith.constant 0 : i32
    %c0_i32_1 = arith.constant 0 : i32
    return %arg0, %c0_i32, %c0_i32_0 : i32, i32, i32
  }
}

module attributes {stable_mosaic.version = 11 : i64} {
  func.func @gate_scatter_kernel(%arg0: i32, %arg1: i32, %arg2: memref<64x256xbf16, #tpu.memory_space<vmem>>, %arg3: memref<64x1xi32, #tpu.memory_space<vmem>>, %arg4: memref<2x2x256xf32, #tpu.memory_space<vmem>>, %arg5: memref<1x256xf32, #tpu.memory_space<vmem>>, %arg6: memref<1x256xf32, #tpu.memory_space<vmem>>, %arg7: memref<128x128xf32, #tpu.memory_space<vmem>>, %arg8: memref<1x2x128xf32, #tpu.memory_space<vmem>>) attributes {dimension_semantics = [#tpu.dimension_semantics<parallel>, #tpu.dimension_semantics<arbitrary>], iteration_bounds = array<i64: 2, 8>, scalar_prefetch = 0 : i64, scratch_operands = 0 : i64, tpu.core_type = #tpu.core_type<tc>, window_params = [{transform_indices = @transform_0, window_bounds = array<i64: 64, 256>}, {transform_indices = @transform_1, window_bounds = array<i64: 64, 1>}, {pipeline_mode = #tpu.pipeline_mode<synchronous>, transform_indices = @transform_2, window_bounds = array<i64: 2, 2, 256>}, {pipeline_mode = #tpu.pipeline_mode<synchronous>, transform_indices = @transform_3, window_bounds = array<i64: 1, 256>}, {pipeline_mode = #tpu.pipeline_mode<synchronous>, transform_indices = @transform_4, window_bounds = array<i64: 1, 256>}, {transform_indices = @transform_5, window_bounds = array<i64: 128, 128>}, {transform_indices = @transform_6, window_bounds = array<i64: 1, 2, 128>}]} {
    %c0_i32 = arith.constant 0 : i32
    %0 = arith.cmpi eq, %arg1, %c0_i32 : i32
    %1 = arith.extui %0 : i1 to i32
    %c0_i32_0 = arith.constant 0 : i32
    %2 = arith.cmpi ne, %1, %c0_i32_0 : i32
    scf.if %2 {
      %cst_28 = arith.constant 0.000000e+00 : f32
      %71 = vector.broadcast %cst_28 : f32 to vector<128x128xf32>
      %c0_29 = arith.constant 0 : index
      %c0_30 = arith.constant 0 : index
      %72 = vector.load %arg7[%c0_29, %c0_30] : memref<128x128xf32, #tpu.memory_space<vmem>>, vector<128x128xf32>
      tpu.vector_store %arg7[%c0_29, %c0_30], %71 {strides = array<i32>} : memref<128x128xf32, #tpu.memory_space<vmem>>, vector<128x128xf32>,
    } else {
    }
    %c0 = arith.constant 0 : index
    %c0_1 = arith.constant 0 : index
    %c0_2 = arith.constant 0 : index
    %3 = vector.load %arg4[%c0, %c0_1, %c0_2] : memref<2x2x256xf32, #tpu.memory_space<vmem>>, vector<1x2x256xf32>
    %4 = vector.shape_cast %3 : vector<1x2x256xf32> to vector<2x256xf32>
    %c1 = arith.constant 1 : index
    %c0_3 = arith.constant 0 : index
    %c0_4 = arith.constant 0 : index
    %5 = vector.load %arg4[%c1, %c0_3, %c0_4] : memref<2x2x256xf32, #tpu.memory_space<vmem>>, vector<1x2x256xf32>
    %6 = vector.shape_cast %5 : vector<1x2x256xf32> to vector<2x256xf32>
    %7 = arith.addf %4, %6 : vector<2x256xf32>
    %c0_5 = arith.constant 0 : index
    %c0_6 = arith.constant 0 : index
    %8 = vector.load %arg2[%c0_5, %c0_6] : memref<64x256xbf16, #tpu.memory_space<vmem>>, vector<64x256xbf16>
    %9 = arith.extf %8 : vector<64x256xbf16> to vector<64x256xf32>
    %c0_7 = arith.constant 0 : index
    %c0_8 = arith.constant 0 : index
    %10 = vector.load %arg5[%c0_7, %c0_8] : memref<1x256xf32, #tpu.memory_space<vmem>>, vector<1x256xf32>
    %c0_9 = arith.constant 0 : index
    %c0_10 = arith.constant 0 : index
    %11 = vector.load %arg6[%c0_9, %c0_10] : memref<1x256xf32, #tpu.memory_space<vmem>>, vector<1x256xf32>
    %12 = vector.extract_strided_slice %7 {offsets = [0, 0], sizes = [1, 256], strides = [1, 1]} : vector<2x256xf32> to vector<1x256xf32>
    %cst = arith.constant 0.00208333344 : f32
    %13 = vector.broadcast %cst : f32 to vector<1x256xf32>
    %14 = arith.mulf %12, %13 : vector<1x256xf32>
    %15 = vector.extract_strided_slice %7 {offsets = [1, 0], sizes = [1, 256], strides = [1, 1]} : vector<2x256xf32> to vector<1x256xf32>
    %cst_11 = arith.constant 0.00208333344 : f32
    %16 = vector.broadcast %cst_11 : f32 to vector<1x256xf32>
    %17 = arith.mulf %15, %16 : vector<1x256xf32>
    %18 = arith.mulf %14, %14 : vector<1x256xf32>
    %19 = arith.subf %17, %18 : vector<1x256xf32>
    %cst_12 = arith.constant 0.000000e+00 : f32
    %20 = vector.broadcast %cst_12 : f32 to vector<1x256xf32>
    %21 = arith.maximumf %19, %20 : vector<1x256xf32>
    %22 = vector.broadcast %14 : vector<1x256xf32> to vector<64x256xf32>
    %23 = arith.subf %9, %22 : vector<64x256xf32>
    %cst_13 = arith.constant 9.99999974E-6 : f32
    %24 = vector.broadcast %cst_13 : f32 to vector<1x256xf32>
    %25 = arith.addf %21, %24 : vector<1x256xf32>
    %26 = math.rsqrt %25 : vector<1x256xf32>
    %27 = vector.broadcast %26 : vector<1x256xf32> to vector<64x256xf32>
    %28 = arith.mulf %23, %27 : vector<64x256xf32>
    %29 = vector.broadcast %10 : vector<1x256xf32> to vector<64x256xf32>
    %30 = arith.mulf %28, %29 : vector<64x256xf32>
    %31 = vector.broadcast %11 : vector<1x256xf32> to vector<64x256xf32>
    %32 = arith.addf %30, %31 : vector<64x256xf32>
    %33 = vector.extract_strided_slice %32 {offsets = [0, 0], sizes = [64, 128], strides = [1, 1]} : vector<64x256xf32> to vector<64x128xf32>
    %cst_14 = arith.constant 0.000000e+00 : f32
    %34 = vector.broadcast %cst_14 : f32 to vector<64x128xf32>
    %35 = arith.subf %34, %33 : vector<64x128xf32>
    %36 = math.exp %35 : vector<64x128xf32>
    %cst_15 = arith.constant 1.000000e+00 : f32
    %37 = vector.broadcast %cst_15 : f32 to vector<64x128xf32>
    %38 = arith.addf %37, %36 : vector<64x128xf32>
    %cst_16 = arith.constant 1.000000e+00 : f32
    %39 = vector.broadcast %cst_16 : f32 to vector<64x128xf32>
    %40 = arith.divf %39, %38 : vector<64x128xf32>
    %41 = arith.mulf %33, %40 : vector<64x128xf32>
    %42 = vector.extract_strided_slice %32 {offsets = [0, 128], sizes = [64, 128], strides = [1, 1]} : vector<64x256xf32> to vector<64x128xf32>
    %cst_17 = arith.constant 2.000000e+01 : f32
    %43 = vector.broadcast %cst_17 : f32 to vector<64x128xf32>
    %44 = arith.cmpf ogt, %42, %43 : vector<64x128xf32>
    %cst_18 = arith.constant 2.000000e+01 : f32
    %45 = vector.broadcast %cst_18 : f32 to vector<64x128xf32>
    %46 = arith.minimumf %42, %45 : vector<64x128xf32>
    %47 = math.exp %46 : vector<64x128xf32>
    %cst_19 = arith.constant 1.000000e+00 : f32
    %48 = vector.broadcast %cst_19 : f32 to vector<64x128xf32>
    %49 = arith.addf %48, %47 : vector<64x128xf32>
    %50 = math.log %49 : vector<64x128xf32>
    %51 = arith.select %44, %42, %50 : vector<64x128xi1>, vector<64x128xf32>
    %52 = arith.mulf %41, %51 : vector<64x128xf32>
    %53 = arith.truncf %52 : vector<64x128xf32> to vector<64x128xbf16>
    %54 = tpu.iota {dimensions = array<i32: 1>} : vector<64x128xi32>
    %c128_i32 = arith.constant 128 : i32
    %55 = arith.muli %arg0, %c128_i32 : i32
    %56 = vector.broadcast %55 : i32 to vector<64x128xi32>
    %57 = arith.addi %54, %56 : vector<64x128xi32>
    %c0_20 = arith.constant 0 : index
    %c0_21 = arith.constant 0 : index
    %58 = vector.load %arg3[%c0_20, %c0_21] : memref<64x1xi32, #tpu.memory_space<vmem>>, vector<64x1xi32>
    %59 = vector.broadcast %58 : vector<64x1xi32> to vector<64x128xi32>
    %60 = arith.cmpi eq, %57, %59 : vector<64x128xi32>
    %61 = arith.extui %60 : vector<64x128xi1> to vector<64x128xi32>
    %62 = arith.sitofp %61 : vector<64x128xi32> to vector<64x128xf32>
    %63 = arith.truncf %62 : vector<64x128xf32> to vector<64x128xbf16>
    %c0_22 = arith.constant 0 : index
    %c0_23 = arith.constant 0 : index
    %64 = vector.load %arg7[%c0_22, %c0_23] : memref<128x128xf32, #tpu.memory_space<vmem>>, vector<128x128xf32>
    %cst_24 = arith.constant dense<0.000000e+00> : vector<128x128xf32>
    %65 = tpu.matmul %63, %53, %cst_24 {dimension_numbers = #tpu.dot_dimension_numbers<[0], [0], [1], [1], [0, 1, 1, 1], [], []>} : vector<64x128xbf16>, vector<64x128xbf16>, vector<128x128xf32> -> vector<128x128xf32>
    %66 = arith.addf %64, %65 : vector<128x128xf32>
    %c0_25 = arith.constant 0 : index
    %c0_26 = arith.constant 0 : index
    %67 = vector.load %arg7[%c0_25, %c0_26] : memref<128x128xf32, #tpu.memory_space<vmem>>, vector<128x128xf32>
    tpu.vector_store %arg7[%c0_25, %c0_26], %66 {strides = array<i32>} : memref<128x128xf32, #tpu.memory_space<vmem>>, vector<128x128xf32>,
    %c7_i32 = arith.constant 7 : i32
    %68 = arith.cmpi eq, %arg1, %c7_i32 : i32
    %69 = arith.extui %68 : i1 to i32
    %c0_i32_27 = arith.constant 0 : i32
    %70 = arith.cmpi ne, %69, %c0_i32_27 : i32
    scf.if %70 {
      %c0_28 = arith.constant 0 : index
      %c0_29 = arith.constant 0 : index
      %71 = vector.load %arg7[%c0_28, %c0_29] : memref<128x128xf32, #tpu.memory_space<vmem>>, vector<128x128xf32>
      %cst_30 = arith.constant dense<0.000000e+00> : vector<128xf32>
      %72 = vector.multi_reduction <add>, %71, %cst_30 [0] : vector<128x128xf32> to vector<128xf32>
      %73 = vector.shape_cast %72 : vector<128xf32> to vector<1x128xf32>
      %74 = arith.mulf %71, %71 : vector<128x128xf32>
      %cst_31 = arith.constant dense<0.000000e+00> : vector<128xf32>
      %75 = vector.multi_reduction <add>, %74, %cst_31 [0] : vector<128x128xf32> to vector<128xf32>
      %76 = vector.shape_cast %75 : vector<128xf32> to vector<1x128xf32>
      %77 = tpu.concatenate %73, %76 in 0 : vector<1x128xf32>, vector<1x128xf32> -> vector<2x128xf32>
      %c0_32 = arith.constant 0 : index
      %c0_33 = arith.constant 0 : index
      %c0_34 = arith.constant 0 : index
      %78 = vector.load %arg8[%c0_32, %c0_33, %c0_34] : memref<1x2x128xf32, #tpu.memory_space<vmem>>, vector<1x2x128xf32>
      %79 = vector.shape_cast %78 : vector<1x2x128xf32> to vector<2x128xf32>
      %80 = vector.shape_cast %77 : vector<2x128xf32> to vector<1x2x128xf32>
      tpu.vector_store %arg8[%c0_32, %c0_33, %c0_34], %80 {strides = array<i32>} : memref<1x2x128xf32, #tpu.memory_space<vmem>>, vector<1x2x128xf32>,
    } else {
    }
    return
  }
  func.func @transform_0(%arg0: i32, %arg1: i32) -> (i32, i32) {
    %c0_i32 = arith.constant 0 : i32
    %c0_i32_0 = arith.constant 0 : i32
    return %arg1, %c0_i32 : i32, i32
  }
  func.func @transform_1(%arg0: i32, %arg1: i32) -> (i32, i32) {
    %c0_i32 = arith.constant 0 : i32
    %c0_i32_0 = arith.constant 0 : i32
    return %arg1, %c0_i32 : i32, i32
  }
  func.func @transform_2(%arg0: i32, %arg1: i32) -> (i32, i32, i32) {
    %c0_i32 = arith.constant 0 : i32
    %c0_i32_0 = arith.constant 0 : i32
    %c0_i32_1 = arith.constant 0 : i32
    %c0_i32_2 = arith.constant 0 : i32
    return %c0_i32, %c0_i32_0, %c0_i32_1 : i32, i32, i32
  }
  func.func @transform_3(%arg0: i32, %arg1: i32) -> (i32, i32) {
    %c0_i32 = arith.constant 0 : i32
    %c0_i32_0 = arith.constant 0 : i32
    %c0_i32_1 = arith.constant 0 : i32
    return %c0_i32, %c0_i32_0 : i32, i32
  }
  func.func @transform_4(%arg0: i32, %arg1: i32) -> (i32, i32) {
    %c0_i32 = arith.constant 0 : i32
    %c0_i32_0 = arith.constant 0 : i32
    %c0_i32_1 = arith.constant 0 : i32
    return %c0_i32, %c0_i32_0 : i32, i32
  }
  func.func @transform_5(%arg0: i32, %arg1: i32) -> (i32, i32) {
    %c0_i32 = arith.constant 0 : i32
    %c0_i32_0 = arith.constant 0 : i32
    return %arg0, %c0_i32 : i32, i32
  }
  func.func @transform_6(%arg0: i32, %arg1: i32) -> (i32, i32, i32) {
    %c0_i32 = arith.constant 0 : i32
    %c0_i32_0 = arith.constant 0 : i32
    %c0_i32_1 = arith.constant 0 : i32
    return %arg0, %c0_i32, %c0_i32_0 : i32, i32, i32
  }
}

module attributes {stable_mosaic.version = 11 : i64} {
  func.func @node_out_kernel(%arg0: i32, %arg1: memref<128x128xf32, #tpu.memory_space<vmem>>, %arg2: memref<2x2x128xf32, #tpu.memory_space<vmem>>, %arg3: memref<1x128xf32, #tpu.memory_space<vmem>>, %arg4: memref<1x128xf32, #tpu.memory_space<vmem>>, %arg5: memref<128x128xf32, #tpu.memory_space<vmem>>, %arg6: memref<128x128xf32, #tpu.memory_space<vmem>>) attributes {dimension_semantics = [#tpu.dimension_semantics<parallel>], iteration_bounds = array<i64: 2>, scalar_prefetch = 0 : i64, scratch_operands = 0 : i64, tpu.core_type = #tpu.core_type<tc>, window_params = [{transform_indices = @transform_0, window_bounds = array<i64: 128, 128>}, {pipeline_mode = #tpu.pipeline_mode<synchronous>, transform_indices = @transform_1, window_bounds = array<i64: 2, 2, 128>}, {pipeline_mode = #tpu.pipeline_mode<synchronous>, transform_indices = @transform_2, window_bounds = array<i64: 1, 128>}, {pipeline_mode = #tpu.pipeline_mode<synchronous>, transform_indices = @transform_3, window_bounds = array<i64: 1, 128>}, {transform_indices = @transform_4, window_bounds = array<i64: 128, 128>}, {transform_indices = @transform_5, window_bounds = array<i64: 128, 128>}]} {
    %c0 = arith.constant 0 : index
    %c0_0 = arith.constant 0 : index
    %c0_1 = arith.constant 0 : index
    %0 = vector.load %arg2[%c0, %c0_0, %c0_1] : memref<2x2x128xf32, #tpu.memory_space<vmem>>, vector<1x2x128xf32>
    %1 = vector.shape_cast %0 : vector<1x2x128xf32> to vector<2x128xf32>
    %c1 = arith.constant 1 : index
    %c0_2 = arith.constant 0 : index
    %c0_3 = arith.constant 0 : index
    %2 = vector.load %arg2[%c1, %c0_2, %c0_3] : memref<2x2x128xf32, #tpu.memory_space<vmem>>, vector<1x2x128xf32>
    %3 = vector.shape_cast %2 : vector<1x2x128xf32> to vector<2x128xf32>
    %4 = arith.addf %1, %3 : vector<2x128xf32>
    %c0_4 = arith.constant 0 : index
    %c0_5 = arith.constant 0 : index
    %5 = vector.load %arg1[%c0_4, %c0_5] : memref<128x128xf32, #tpu.memory_space<vmem>>, vector<128x128xf32>
    %c0_6 = arith.constant 0 : index
    %c0_7 = arith.constant 0 : index
    %6 = vector.load %arg3[%c0_6, %c0_7] : memref<1x128xf32, #tpu.memory_space<vmem>>, vector<1x128xf32>
    %c0_8 = arith.constant 0 : index
    %c0_9 = arith.constant 0 : index
    %7 = vector.load %arg4[%c0_8, %c0_9] : memref<1x128xf32, #tpu.memory_space<vmem>>, vector<1x128xf32>
    %8 = vector.extract_strided_slice %4 {offsets = [0, 0], sizes = [1, 128], strides = [1, 1]} : vector<2x128xf32> to vector<1x128xf32>
    %cst = arith.constant 6.250000e-03 : f32
    %9 = vector.broadcast %cst : f32 to vector<1x128xf32>
    %10 = arith.mulf %8, %9 : vector<1x128xf32>
    %11 = vector.extract_strided_slice %4 {offsets = [1, 0], sizes = [1, 128], strides = [1, 1]} : vector<2x128xf32> to vector<1x128xf32>
    %cst_10 = arith.constant 6.250000e-03 : f32
    %12 = vector.broadcast %cst_10 : f32 to vector<1x128xf32>
    %13 = arith.mulf %11, %12 : vector<1x128xf32>
    %14 = arith.mulf %10, %10 : vector<1x128xf32>
    %15 = arith.subf %13, %14 : vector<1x128xf32>
    %cst_11 = arith.constant 0.000000e+00 : f32
    %16 = vector.broadcast %cst_11 : f32 to vector<1x128xf32>
    %17 = arith.maximumf %15, %16 : vector<1x128xf32>
    %18 = vector.broadcast %10 : vector<1x128xf32> to vector<128x128xf32>
    %19 = arith.subf %5, %18 : vector<128x128xf32>
    %cst_12 = arith.constant 9.99999974E-6 : f32
    %20 = vector.broadcast %cst_12 : f32 to vector<1x128xf32>
    %21 = arith.addf %17, %20 : vector<1x128xf32>
    %22 = math.rsqrt %21 : vector<1x128xf32>
    %23 = vector.broadcast %22 : vector<1x128xf32> to vector<128x128xf32>
    %24 = arith.mulf %19, %23 : vector<128x128xf32>
    %25 = vector.broadcast %6 : vector<1x128xf32> to vector<128x128xf32>
    %26 = arith.mulf %24, %25 : vector<128x128xf32>
    %27 = vector.broadcast %7 : vector<1x128xf32> to vector<128x128xf32>
    %28 = arith.addf %26, %27 : vector<128x128xf32>
    %c0_13 = arith.constant 0 : index
    %c0_14 = arith.constant 0 : index
    %29 = vector.load %arg5[%c0_13, %c0_14] : memref<128x128xf32, #tpu.memory_space<vmem>>, vector<128x128xf32>
    %30 = arith.addf %28, %29 : vector<128x128xf32>
    %cst_15 = arith.constant 2.000000e+01 : f32
    %31 = vector.broadcast %cst_15 : f32 to vector<128x128xf32>
    %32 = arith.cmpf ogt, %30, %31 : vector<128x128xf32>
    %cst_16 = arith.constant 2.000000e+01 : f32
    %33 = vector.broadcast %cst_16 : f32 to vector<128x128xf32>
    %34 = arith.minimumf %30, %33 : vector<128x128xf32>
    %35 = math.exp %34 : vector<128x128xf32>
    %cst_17 = arith.constant 1.000000e+00 : f32
    %36 = vector.broadcast %cst_17 : f32 to vector<128x128xf32>
    %37 = arith.addf %36, %35 : vector<128x128xf32>
    %38 = math.log %37 : vector<128x128xf32>
    %39 = arith.select %32, %30, %38 : vector<128x128xi1>, vector<128x128xf32>
    %c0_18 = arith.constant 0 : index
    %c0_19 = arith.constant 0 : index
    %40 = vector.load %arg6[%c0_18, %c0_19] : memref<128x128xf32, #tpu.memory_space<vmem>>, vector<128x128xf32>
    tpu.vector_store %arg6[%c0_18, %c0_19], %39 {strides = array<i32>} : memref<128x128xf32, #tpu.memory_space<vmem>>, vector<128x128xf32>,
    return
  }
  func.func @transform_0(%arg0: i32) -> (i32, i32) {
    %c0_i32 = arith.constant 0 : i32
    %c0_i32_0 = arith.constant 0 : i32
    return %arg0, %c0_i32 : i32, i32
  }
  func.func @transform_1(%arg0: i32) -> (i32, i32, i32) {
    %c0_i32 = arith.constant 0 : i32
    %c0_i32_0 = arith.constant 0 : i32
    %c0_i32_1 = arith.constant 0 : i32
    %c0_i32_2 = arith.constant 0 : i32
    return %c0_i32, %c0_i32_0, %c0_i32_1 : i32, i32, i32
  }
  func.func @transform_2(%arg0: i32) -> (i32, i32) {
    %c0_i32 = arith.constant 0 : i32
    %c0_i32_0 = arith.constant 0 : i32
    %c0_i32_1 = arith.constant 0 : i32
    return %c0_i32, %c0_i32_0 : i32, i32
  }
  func.func @transform_3(%arg0: i32) -> (i32, i32) {
    %c0_i32 = arith.constant 0 : i32
    %c0_i32_0 = arith.constant 0 : i32
    %c0_i32_1 = arith.constant 0 : i32
    return %c0_i32, %c0_i32_0 : i32, i32
  }
  func.func @transform_4(%arg0: i32) -> (i32, i32) {
    %c0_i32 = arith.constant 0 : i32
    %c0_i32_0 = arith.constant 0 : i32
    return %arg0, %c0_i32 : i32, i32
  }
  func.func @transform_5(%arg0: i32) -> (i32, i32) {
    %c0_i32 = arith.constant 0 : i32
    %c0_i32_0 = arith.constant 0 : i32
    return %arg0, %c0_i32 : i32, i32
  }
}

</mosaic_0001>

<llo_original>
// kernel: conv_func_cgcnn.4
$region0: #{conv_func_cgcnn.4}
  #allocation0 [shape = 'u32[]', space=smem, size = 0x4, offset = 0x4, fixed_abs, tag = 'smem constant byte address 0x4 - core index']
  #allocation1 [shape = 'u32[144,128]{1,0:T(1,128)}', space=vmem, size = 0x12000, scoped, tag = 'internal scratch']
  %s0 = inlined_call_operand.vmem [shape: bf16[512,128], index: 0, kind: input, shape index: {}]
  %s1 = inlined_call_operand.vmem [shape: bf16[128,128], index: 1, kind: input, shape index: {}]
  %s2 = inlined_call_operand.vmem [shape: f32[2,2,128], index: 2, kind: output, shape index: {}]
  %s3 = sld [smem:[#allocation0]]
  $region53: #{conv_func_cgcnn.4} parent=0
    _
  %s5 = ssub.s32 1, %s3
  %s6 = scalar_select 0, %s5, %s3
  loop: start=0, step=1, limit=10
  $region2: #{conv_func_cgcnn.4} parent=0 // loop_pre_header
    _
  $region3: #{conv_func_cgcnn.4} parent=0 // loop_header
    %s8 = sphi 0, %s12
    %p9 = scmp.ge.s32.totalorder %s8, 10
    %s15 = sphi 0, %s27
    %s16 = sphi 0, %s23
    %s17 = sphi 0, %s15
    %s18 = sphi 0, %s16
    %s19 = sphi 0, %s17
    %s20 = sphi 0, %s18
    %s34 = sphi 0, %s36
    %s37 = sphi 0, %s34
    %s38 = sphi 0, %s37
    %s54 = sphi 0, %s38
    %s58 = sphi 0, %s58
    %s60 = sphi 0, %s58
    %s61 = sphi 0, %s60
    %s75 = sphi 0, %s61
    %s81 = sphi 0, %s83
    %s84 = sphi 0, %s81
    %s85 = sphi 0, %s84
    %s101 = sphi 0, %s85
  $region4: #{conv_func_cgcnn.4} parent=0 // loop_header_branch
    %11 = sbr.rel (%p9) target = $region8
  $region5: #{conv_func_cgcnn.4} parent=0 // loop_body
    %s13 = ssub.s32 %s8, 1
    %s14 = ssub.s32 %s8, 2
    %s21 = sadd.s32 1, %s16
    %p22 = scmp.ge.s32.totalorder %s21, 4
    %s23 = scalar_select %p22, 0, %s21
    %s24 = sadd.s32 1, %s15
    %s25 = scalar_select %p22, %s24, %s15
    %p26 = scmp.ge.s32.totalorder %s25, 2
    %s27 = scalar_select %p26, 0, %s25
    %s28 = smul.u32 %s15, 4
    %s29 = sadd.s32 %s28, %s16
    %s30 = smul.u32 %s27, 4
    %s31 = sadd.s32 %s30, %s23
    %s32 = ssub.s32 %s29, %s31
    %p33 = scmp.eq.s32.totalorder %s32, 0
    %s35 = sadd.s32 %s34, 1
    %s36 = scalar_select %p33, %s34, %s35
    %p39 = pneg %p33
    %p40 = scmp.eq.s32.totalorder %s8, 7
    %p41 = por %p39, %p40
    %p42 = scmp.ne.s32.totalorder %s34, %s37
    %p43 = scmp.eq.s32.totalorder %s8, 0
    %p44 = por %p42, %p43
    %p45 = scmp.ne.s32.totalorder %s34, %s37
    %p46 = scmp.eq.s32.totalorder %s13, 7
    %p47 = por %p45, %p46
    %p48 = scmp.ne.s32.totalorder %s37, %s38
    %p49 = scmp.eq.s32.totalorder %s13, 0
    %p50 = por %p48, %p49
    %p51 = scmp.ne.s32.totalorder %s37, %s38
    %p52 = scmp.eq.s32.totalorder %s14, 7
    %p53 = por %p51, %p52
    %p55 = scmp.ne.s32.totalorder %s38, %s54
    %p56 = scmp.eq.s32.totalorder %s14, 0
    %p57 = por %p55, %p56
    %s59 = sadd.s32 %s58, 1
    %p62 = scmp.eq.s32.totalorder %s8, 7
    %p63 = scmp.ne.s32.totalorder %s58, %s60
    %p64 = scmp.eq.s32.totalorder %s8, 0
    %p65 = por %p63, %p64
    %p66 = scmp.ne.s32.totalorder %s58, %s60
    %p67 = scmp.eq.s32.totalorder %s13, 7
    %p68 = por %p66, %p67
    %p69 = scmp.ne.s32.totalorder %s60, %s61
    %p70 = scmp.eq.s32.totalorder %s13, 0
    %p71 = por %p69, %p70
    %p72 = scmp.ne.s32.totalorder %s60, %s61
    %p73 = scmp.eq.s32.totalorder %s14, 7
    %p74 = por %p72, %p73
    %p76 = scmp.ne.s32.totalorder %s61, %s75
    %p77 = scmp.eq.s32.totalorder %s14, 0
    %p78 = por %p76, %p77
    %s79 = ssub.s32 %s15, %s27
    %p80 = scmp.eq.s32.totalorder %s79, 0
    %s82 = sadd.s32 %s81, 1
    %s83 = scalar_select %p80, %s81, %s82
    %p86 = pneg %p80
    %p87 = scmp.eq.s32.totalorder %s8, 7
    %p88 = por %p86, %p87
    %p89 = scmp.ne.s32.totalorder %s81, %s84
    %p90 = scmp.eq.s32.totalorder %s8, 0
    %p91 = por %p89, %p90
    %p92 = scmp.ne.s32.totalorder %s81, %s84
    %p93 = scmp.eq.s32.totalorder %s13, 7
    %p94 = por %p92, %p93
    %p95 = scmp.ne.s32.totalorder %s84, %s85
    %p96 = scmp.eq.s32.totalorder %s13, 0
    %p97 = por %p95, %p96
    %p98 = scmp.ne.s32.totalorder %s84, %s85
    %p99 = scmp.eq.s32.totalorder %s14, 7
    %p100 = por %p98, %p99
    %p102 = scmp.ne.s32.totalorder %s85, %s101
    %p103 = scmp.eq.s32.totalorder %s14, 0
    %p104 = por %p102, %p103
    %p105 = scmp.le.s32.totalorder 1, %s8
    %p106 = scmp.lt.s32.totalorder %s8, 9
    %p107 = pnand %p105, %p106
    %p108 = pneg %p107
    // Predicated region
    $region9: #{conv_func_cgcnn.4} parent=5 // pred_check
      _
    $region10: #{conv_func_cgcnn.4} parent=5 // pred_check_branch
      %110 = sbr.rel (%p107) target = $region12
    $region11: #{conv_func_cgcnn.4} parent=5 // pred_region
      %s111 = ssub.s32 %s8, 1
      // Predicated region
      $region13: #{conv_func_cgcnn.4} parent=11 // pred_check
        %p112 = pneg %p71
      $region14: #{conv_func_cgcnn.4} parent=11 // pred_check_branch
        %114 = sbr.rel (%p112) target = $region16
      $region15: #{conv_func_cgcnn.4} parent=11 // pred_region
        _
      $region16: #{conv_func_cgcnn.4} parent=11 // pred_fallthru
        _
    $region12: #{conv_func_cgcnn.4} parent=5 // pred_fallthru
      _
    %p115 = scmp.lt.s32.totalorder %s8, 8
    // Predicated region
    $region17: #{conv_func_cgcnn.4} parent=5 // pred_check
      %p116 = pneg %p115
    $region18: #{conv_func_cgcnn.4} parent=5 // pred_check_branch
      %118 = sbr.rel (%p116) target = $region20
    $region19: #{conv_func_cgcnn.4} parent=5 // pred_region
      // Predicated region
      $region21: #{conv_func_cgcnn.4} parent=19 // pred_check
        %p119 = pneg %p44
      $region22: #{conv_func_cgcnn.4} parent=19 // pred_check_branch
        %121 = sbr.rel (%p119) target = $region24
      $region23: #{conv_func_cgcnn.4} parent=19 // pred_region
        %s122 = smul.u32 %s15, 4
        %s123 = sadd.s32 %s122, %s16
        %s124 = smul.u32 8, %s123
        %p125 = scmp.lt.s32.totalorder %s124, 63
        %s126 = scalar_select %p125, %s124, 63
        %s127 = smul.addr %s126, 4
        %s128 = scalar_lea.vmem %s0, %s127
        %s129 = smul.u32 %s15, 4
        %s130 = sadd.s32 %s129, %s16
        %s131 = smul.u32 8, %s130
      $region24: #{conv_func_cgcnn.4} parent=19 // pred_fallthru
        _
    $region20: #{conv_func_cgcnn.4} parent=5 // pred_fallthru
      _
    %p132 = scmp.le.s32.totalorder 1, %s8
    %p133 = scmp.lt.s32.totalorder %s8, 9
    %p134 = pnand %p132, %p133
    %p135 = pneg %p134
    // Predicated region
    $region25: #{conv_func_cgcnn.4} parent=5 // pred_check
      _
    $region26: #{conv_func_cgcnn.4} parent=5 // pred_check_branch
      %137 = sbr.rel (%p134) target = $region28
    $region27: #{conv_func_cgcnn.4} parent=5 // pred_region
      %s138 = ssub.s32 %s8, 1
      %s139 = smul.u32 %s17, 4
      %s140 = sadd.s32 %s139, %s18
      %s141 = smul.u32 8, %s140
      %p142 = scmp.lt.s32.totalorder %s141, 63
      %s143 = scalar_select %p142, %s141, 63
      %s144 = smul.addr %s143, 4
      %s145 = scalar_lea.vmem %s0, %s144
      %p146 = pneg %p50
      %p147 = pneg %p47
      %p148 = pneg %p71
      %p149 = pneg %p68
      %p150 = pneg %p97
      %p151 = pneg %p94
      %p152 = scmp.lt.s32.totalorder %s17, 1
      %s153 = scalar_select %p152, %s17, 1
      %s154 = smul.addr %s153, 2
      %s155 = scalar_lea.vmem %s2, %s154
      %s156 = smul.u32 %s17, 4
      %s157 = sadd.s32 %s156, %s18
      %s158 = smul.u32 8, %s157
      %p159 = scmp.lt.s32.totalorder %s158, 63
      %s160 = scalar_select %p159, %s158, 63
      %s161 = smul.addr %s160, 4
      %s162 = scalar_lea.vmem %s0, %s161
      %s163 = smul.u32 %s17, 4
      %s164 = sadd.s32 %s163, %s18
      %s165 = smul.u32 8, %s164
      %p166 = scmp.lt.s32.totalorder %s17, 1
      %s167 = scalar_select %p166, %s17, 1
      %s168 = smul.addr %s167, 2
      %s169 = scalar_lea.vmem %s2, %s168
      %p171 = scmp.eq.s32.totalorder %s18, 0
      // Predicated region
      $region29: #{conv_func_cgcnn.4} parent=27 // pred_check
        %p172 = pneg %p171
      $region30: #{conv_func_cgcnn.4} parent=27 // pred_check_branch
        %174 = sbr.rel (%p172) target = $region32
      $region31: #{conv_func_cgcnn.4} parent=27 // pred_region
        %175 = vst [vmem:[%s169] sm:$0x3] 0.0
      $region32: #{conv_func_cgcnn.4} parent=27 // pred_fallthru
        _
      %v176 = vld [vmem:[%s162] sm:$0xf]
      %v177 = vld [vmem:[%s162 + $0x4] sm:$0xf]
      %v178 = vld [vmem:[%s162 + $0x8] sm:$0xf]
      %v179 = vld [vmem:[%s162 + $0xc] sm:$0xf]
      %v180 = vld [vmem:[%s162 + $0x10] sm:$0xf]
      %v181 = vld [vmem:[%s162 + $0x14] sm:$0xf]
      %v182 = vld [vmem:[%s162 + $0x18] sm:$0xf]
      %v183 = vld [vmem:[%s162 + $0x1c] sm:$0xf]
      %v184 = vld [vmem:[%s1] sm:$0xf]
      %v185 = vld [vmem:[%s1 + $0x4] sm:$0xf]
      %v186 = vld [vmem:[%s1 + $0x8] sm:$0xf]
      %v187 = vld [vmem:[%s1 + $0xc] sm:$0xf]
      %v188 = vld [vmem:[%s1 + $0x10] sm:$0xf]
      %v189 = vld [vmem:[%s1 + $0x14] sm:$0xf]
      %v190 = vld [vmem:[%s1 + $0x18] sm:$0xf]
      %v191 = vld [vmem:[%s1 + $0x1c] sm:$0xf]
      %v192 = vld [vmem:[%s1 + $0x20] sm:$0xf]
      %v193 = vld [vmem:[%s1 + $0x24] sm:$0xf]
      %v194 = vld [vmem:[%s1 + $0x28] sm:$0xf]
      %v195 = vld [vmem:[%s1 + $0x2c] sm:$0xf]
      %v196 = vld [vmem:[%s1 + $0x30] sm:$0xf]
      %v197 = vld [vmem:[%s1 + $0x34] sm:$0xf]
      %v198 = vld [vmem:[%s1 + $0x38] sm:$0xf]
      %v199 = vld [vmem:[%s1 + $0x3c] sm:$0xf]
      %v208 = vunpack.c.l.b16 %v176
      %v209 = vunpack.c.l.b16 %v177
      %v210 = vunpack.c.l.b16 %v178
      %v211 = vunpack.c.l.b16 %v179
      %v212 = vunpack.c.l.b16 %v180
      %v213 = vunpack.c.l.b16 %v181
      %v214 = vunpack.c.l.b16 %v182
      %v215 = vunpack.c.l.b16 %v183
      %v216 = vpack.c.b16 %v209, %v208
      %v217 = vpack.c.b16 %v211, %v210
      %v218 = vpack.c.b16 %v213, %v212
      %v219 = vpack.c.b16 %v215, %v214
      %v240 = vunpack.c.l.b16 %v184
      %v241 = vunpack.c.l.b16 %v185
      %v242 = vunpack.c.l.b16 %v186
      %v243 = vunpack.c.l.b16 %v187
      %v244 = vunpack.c.l.b16 %v188
      %v245 = vunpack.c.l.b16 %v189
      %v246 = vunpack.c.l.b16 %v190
      %v247 = vunpack.c.l.b16 %v191
      %v248 = vunpack.c.l.b16 %v192
      %v249 = vunpack.c.l.b16 %v193
      %v250 = vunpack.c.l.b16 %v194
      %v251 = vunpack.c.l.b16 %v195
      %v252 = vunpack.c.l.b16 %v196
      %v253 = vunpack.c.l.b16 %v197
      %v254 = vunpack.c.l.b16 %v198
      %v255 = vunpack.c.l.b16 %v199
      %v256 = vpack.c.b16 %v241, %v240
      %v257 = vpack.c.b16 %v243, %v242
      %v258 = vpack.c.b16 %v245, %v244
      %v259 = vpack.c.b16 %v247, %v246
      %v260 = vpack.c.b16 %v249, %v248
      %v261 = vpack.c.b16 %v251, %v250
      %v262 = vpack.c.b16 %v253, %v252
      %v263 = vpack.c.b16 %v255, %v254
      %272 = vmatprep.subr.bf16.mxu0 0
      %273 = vmatpush1.bf16.msra.mxu0 %v263
      %274 = vmatprep.subr.bf16.mxu0 0
      %275 = vmatpush1.bf16.msra.mxu0 %v262
      %276 = vmatprep.subr.bf16.mxu0 0
      %277 = vmatpush1.bf16.msra.mxu0 %v261
      %278 = vmatprep.subr.bf16.mxu0 0
      %279 = vmatpush1.bf16.msra.mxu0 %v260
      %280 = vmatprep.subr.bf16.mxu0 0
      %281 = vmatpush1.bf16.msra.mxu0 %v259
      %282 = vmatprep.subr.bf16.mxu0 0
      %283 = vmatpush1.bf16.msra.mxu0 %v258
      %284 = vmatprep.subr.bf16.mxu0 0
      %285 = vmatpush1.bf16.msra.mxu0 %v257
      %286 = vmatprep.subr.bf16.mxu0 0
      %287 = vmatpush1.bf16.msra.mxu0 %v256
      %288 = vmatprep.subr.bf16.mxu0 0
      %289 = vmatpush2.bf16.msra.mxu0 0
      %290 = vmatprep.subr.bf16.mxu0 0
      %291 = vmatpush2.bf16.msra.mxu0 0
      %292 = vmatprep.subr.bf16.mxu0 0
      %293 = vmatpush2.bf16.msra.mxu0 0
      %294 = vmatprep.subr.bf16.mxu0 0
      %295 = vmatpush2.bf16.msra.mxu0 0
      %296 = vmatprep.subr.bf16.mxu0 0
      %297 = vmatpush2.bf16.msra.mxu0 0
      %298 = vmatprep.subr.bf16.mxu0 0
      %299 = vmatpush2.bf16.msra.mxu0 0
      %300 = vmatprep.subr.bf16.mxu0 0
      %301 = vmatpush2.bf16.msra.mxu0 0
      %302 = vmatprep.subr.bf16.mxu0 0
      %303 = vmatpush2.bf16.msra.mxu0 0
      %304 = vmatprep.mubr.bf16.mxu0 0
      %305 = vmatmul.mubr.bf16.gmra.mxu0 %v216
      %v306 = vpop.f32.mrf.mxu0
      %v307 = vadd.f32 0.0, %v306
      %v308 = vpop.f32.mrf.mxu0
      %v309 = vpop.f32.mrf.mxu0
      %v310 = vadd.f32 0.0, %v309
      %v311 = vpop.f32.mrf.mxu0
      %312 = vmatprep.mubr.bf16.mxu0 0
      %313 = vmatmul.mubr.bf16.gmra.mxu0 %v217
      %v314 = vpop.f32.mrf.mxu0
      %v315 = vadd.f32 0.0, %v314
      %v316 = vpop.f32.mrf.mxu0
      %v317 = vpop.f32.mrf.mxu0
      %v318 = vadd.f32 0.0, %v317
      %v319 = vpop.f32.mrf.mxu0
      %320 = vmatprep.mubr.bf16.mxu0 0
      %321 = vmatmul.mubr.bf16.gmra.mxu0 %v218
      %v322 = vpop.f32.mrf.mxu0
      %v323 = vadd.f32 0.0, %v322
      %v324 = vpop.f32.mrf.mxu0
      %v325 = vpop.f32.mrf.mxu0
      %v326 = vadd.f32 0.0, %v325
      %v327 = vpop.f32.mrf.mxu0
      %328 = vmatprep.mubr.bf16.mxu0 0
      %329 = vmatmul.mubr.bf16.gmra.mxu0 %v219
      %v330 = vpop.f32.mrf.mxu0
      %v331 = vadd.f32 0.0, %v330
      %v332 = vpop.f32.mrf.mxu0
      %v333 = vpop.f32.mrf.mxu0
      %v334 = vadd.f32 0.0, %v333
      %v335 = vpop.f32.mrf.mxu0
      %336 = vdwg.mxu0
      %s337 = smul.u32 %s17, 4
      %s338 = sadd.s32 %s337, %s18
      %s339 = sadd.s32 %s338, 1
      %s340 = smul.u32 %s339, 64
      %p341 = scmp.le.s32.totalorder %s340, 480
      // Predicated region
      $region33: #{conv_func_cgcnn.4} parent=27 // pred_check
        %p342 = pneg %p341
      $region34: #{conv_func_cgcnn.4} parent=27 // pred_check_branch
        %344 = sbr.rel (%p342) target = $region36
      $region35: #{conv_func_cgcnn.4} parent=27 // pred_region
        %v345 = vld [vmem:[%s169] sm:$0x3]
        %v346 = vmul.f32 %v307, %v307
        %v347 = vmul.f32 %v310, %v310
        %v348 = vmul.f32 %v315, %v315
        %v349 = vmul.f32 %v318, %v318
        %v350 = vmul.f32 %v323, %v323
        %v351 = vmul.f32 %v326, %v326
        %v352 = vmul.f32 %v331, %v331
        %v353 = vmul.f32 %v334, %v334
        %v354 = vadd.f32 %v307, %v310
        %v355 = vadd.f32 %v354, %v315
        %v356 = vadd.f32 %v355, %v318
        %v357 = vadd.f32 %v356, %v323
        %v358 = vadd.f32 %v357, %v326
        %v359 = vadd.f32 %v358, %v331
        %v360 = vadd.f32 %v359, %v334
        %v361 = vrot.slane %v360, 4
        %v362 = vadd.f32 %v360, %v361
        %v363 = vrot.slane %v362, 2
        %v364 = vadd.f32 %v362, %v363
        %v365 = vrot.slane %v364, 1
        %v366 = vadd.f32 %v364, %v365
        %v367 = vadd.f32 %v346, %v347
        %v368 = vadd.f32 %v367, %v348
        %v369 = vadd.f32 %v368, %v349
        %v370 = vadd.f32 %v369, %v350
        %v371 = vadd.f32 %v370, %v351
        %v372 = vadd.f32 %v371, %v352
        %v373 = vadd.f32 %v372, %v353
        %v374 = vrot.slane %v373, 4
        %v375 = vadd.f32 %v373, %v374
        %v376 = vrot.slane %v375, 2
        %v377 = vadd.f32 %v375, %v376
        %v378 = vrot.slane %v377, 1
        %v379 = vadd.f32 %v377, %v378
        %vm380 = vcmask 1040384
        %v381 = vsel %vm380, %v366, %v379
        %v382 = vadd.f32 %v345, %v381
        %383 = vst [vmem:[%s169] sm:$0x3] %v382
      $region36: #{conv_func_cgcnn.4} parent=27 // pred_fallthru
        _
      %p384 = scmp.gt.s32.totalorder %s340, 480
      // Predicated region
      $region37: #{conv_func_cgcnn.4} parent=27 // pred_check
        %p385 = pneg %p384
      $region38: #{conv_func_cgcnn.4} parent=27 // pred_check_branch
        %387 = sbr.rel (%p385) target = $region40
      $region39: #{conv_func_cgcnn.4} parent=27 // pred_region
        %v388 = vlaneseq
        %v389 = vshrl.u32 %v388, 7
        %v390 = vadd.s32 %v389, 8
        %v391 = vadd.s32 %v389, 16
        %v392 = vadd.s32 %v389, 24
        %v393 = vadd.s32 %v389, 32
        %v394 = vadd.s32 %v389, 40
        %v395 = vadd.s32 %v389, 48
        %v396 = vadd.s32 %v389, 56
        %s397 = smul.u32 %s338, 64
        %s398 = ssub.s32 480, %s397
        %v399 = vstv %s398
        %vm400 = vcmp.lt.s32.totalorder %v389, %v399
        %vm401 = vcmp.lt.s32.totalorder %v390, %v399
        %vm402 = vcmp.lt.s32.totalorder %v391, %v399
        %vm403 = vcmp.lt.s32.totalorder %v392, %v399
        %vm404 = vcmp.lt.s32.totalorder %v393, %v399
        %vm405 = vcmp.lt.s32.totalorder %v394, %v399
        %vm406 = vcmp.lt.s32.totalorder %v395, %v399
        %vm407 = vcmp.lt.s32.totalorder %v396, %v399
        %v408 = vsel %vm400, 1, 0
        %v409 = vsel %vm401, 1, 0
        %v410 = vsel %vm402, 1, 0
        %v411 = vsel %vm403, 1, 0
        %v412 = vsel %vm404, 1, 0
        %v413 = vsel %vm405, 1, 0
        %v414 = vsel %vm406, 1, 0
        %v415 = vsel %vm407, 1, 0
        %v416 = vcvt.s32.f32 %v408
        %v417 = vcvt.s32.f32 %v409
        %v418 = vcvt.s32.f32 %v410
        %v419 = vcvt.s32.f32 %v411
        %v420 = vcvt.s32.f32 %v412
        %v421 = vcvt.s32.f32 %v413
        %v422 = vcvt.s32.f32 %v414
        %v423 = vcvt.s32.f32 %v415
        %v424 = vmul.f32 %v307, %v416
        %v425 = vmul.f32 %v310, %v417
        %v426 = vmul.f32 %v315, %v418
        %v427 = vmul.f32 %v318, %v419
        %v428 = vmul.f32 %v323, %v420
        %v429 = vmul.f32 %v326, %v421
        %v430 = vmul.f32 %v331, %v422
        %v431 = vmul.f32 %v334, %v423
        %v432 = vld [vmem:[%s169] sm:$0x3]
        %v433 = vmul.f32 %v424, %v307
        %v434 = vmul.f32 %v425, %v310
        %v435 = vmul.f32 %v426, %v315
        %v436 = vmul.f32 %v427, %v318
        %v437 = vmul.f32 %v428, %v323
        %v438 = vmul.f32 %v429, %v326
        %v439 = vmul.f32 %v430, %v331
        %v440 = vmul.f32 %v431, %v334
        %v441 = vadd.f32 %v424, %v425
        %v442 = vadd.f32 %v441, %v426
        %v443 = vadd.f32 %v442, %v427
        %v444 = vadd.f32 %v443, %v428
        %v445 = vadd.f32 %v444, %v429
        %v446 = vadd.f32 %v445, %v430
        %v447 = vadd.f32 %v446, %v431
        %v448 = vrot.slane %v447, 4
        %v449 = vadd.f32 %v447, %v448
        %v450 = vrot.slane %v449, 2
        %v451 = vadd.f32 %v449, %v450
        %v452 = vrot.slane %v451, 1
        %v453 = vadd.f32 %v451, %v452
        %v454 = vadd.f32 %v433, %v434
        %v455 = vadd.f32 %v454, %v435
        %v456 = vadd.f32 %v455, %v436
        %v457 = vadd.f32 %v456, %v437
        %v458 = vadd.f32 %v457, %v438
        %v459 = vadd.f32 %v458, %v439
        %v460 = vadd.f32 %v459, %v440
        %v461 = vrot.slane %v460, 4
        %v462 = vadd.f32 %v460, %v461
        %v463 = vrot.slane %v462, 2
        %v464 = vadd.f32 %v462, %v463
        %v465 = vrot.slane %v464, 1
        %v466 = vadd.f32 %v464, %v465
        %vm467 = vcmask 1040384
        %v468 = vsel %vm467, %v453, %v466
        %v469 = vadd.f32 %v432, %v468
        %470 = vst [vmem:[%s169] sm:$0x3] %v469
      $region40: #{conv_func_cgcnn.4} parent=27 // pred_fallthru
        _
      %p471 = scmp.lt.s32.totalorder %s17, 1
      %s472 = scalar_select %p471, %s17, 1
      %s473 = smul.addr %s472, 2
      %s474 = scalar_lea.vmem %s2, %s473
      // Predicated region
      $region41: #{conv_func_cgcnn.4} parent=27 // pred_check
        %p475 = pneg %p94
      $region42: #{conv_func_cgcnn.4} parent=27 // pred_check_branch
        %477 = sbr.rel (%p475) target = $region44
      $region43: #{conv_func_cgcnn.4} parent=27 // pred_region
        _
      $region44: #{conv_func_cgcnn.4} parent=27 // pred_fallthru
        _
    $region28: #{conv_func_cgcnn.4} parent=5 // pred_fallthru
      _
    %p478 = scmp.le.s32.totalorder 2, %s8
    // Predicated region
    $region45: #{conv_func_cgcnn.4} parent=5 // pred_check
      %p479 = pneg %p478
    $region46: #{conv_func_cgcnn.4} parent=5 // pred_check_branch
      %481 = sbr.rel (%p479) target = $region48
    $region47: #{conv_func_cgcnn.4} parent=5 // pred_region
      %s482 = ssub.s32 %s8, 2
      // Predicated region
      $region49: #{conv_func_cgcnn.4} parent=47 // pred_check
        %p483 = pneg %p100
      $region50: #{conv_func_cgcnn.4} parent=47 // pred_check_branch
        %485 = sbr.rel (%p483) target = $region52
      $region51: #{conv_func_cgcnn.4} parent=47 // pred_region
        %p486 = scmp.lt.s32.totalorder %s19, 1
        %s487 = scalar_select %p486, %s19, 1
        %s488 = smul.addr %s487, 2
        %s489 = scalar_lea.vmem %s2, %s488
      $region52: #{conv_func_cgcnn.4} parent=47 // pred_fallthru
        _
    $region48: #{conv_func_cgcnn.4} parent=5 // pred_fallthru
      _
  $region6: #{conv_func_cgcnn.4} parent=0 // loop_footer
    %s12 = sadd.s32 1, %s8
  $region7: #{conv_func_cgcnn.4} parent=0 // loop_footer_branch
    %7 = sbr.rel target = $region3
  $region8: #{conv_func_cgcnn.4} parent=0 // loop_exit
    _

// kernel: conv_func_cgcnn.5
$region0: #{conv_func_cgcnn.5}
  #allocation0 [shape = 'u32[]', space=smem, size = 0x4, offset = 0x4, fixed_abs, tag = 'smem constant byte address 0x4 - core index']
  #allocation1 [shape = 'u32[144,128]{1,0:T(1,128)}', space=vmem, size = 0x12000, scoped, tag = 'internal scratch']
  %s0 = inlined_call_operand.vmem [shape: bf16[512,128], index: 0, kind: input, shape index: {}]
  %s1 = inlined_call_operand.vmem [shape: bf16[512,256], index: 1, kind: input, shape index: {}]
  %s2 = inlined_call_operand.vmem [shape: bf16[128,128], index: 2, kind: input, shape index: {}]
  %s3 = inlined_call_operand.vmem [shape: f32[2,2,128], index: 3, kind: input, shape index: {}]
  %s4 = inlined_call_operand.vmem [shape: f32[1,128], index: 4, kind: input, shape index: {}]
  %s5 = inlined_call_operand.vmem [shape: f32[1,128], index: 5, kind: input, shape index: {}]
  %s6 = inlined_call_operand.vmem [shape: bf16[128,256], index: 6, kind: input, shape index: {}]
  %s7 = inlined_call_operand.vmem [shape: bf16[512,256], index: 7, kind: output, shape index: {0}]
  %s8 = inlined_call_operand.vmem [shape: f32[2,2,256], index: 8, kind: output, shape index: {1}]
  %9 = xla_tuple %s7, %s8
  %s10 = sld [smem:[#allocation0]]
  $region81: #{conv_func_cgcnn.5} parent=0
    _
  %s12 = ssub.s32 1, %s10
  %s13 = scalar_select 0, %s12, %s10
  loop: start=0, step=1, limit=10
  $region2: #{conv_func_cgcnn.5} parent=0 // loop_pre_header
    _
  $region3: #{conv_func_cgcnn.5} parent=0 // loop_header
    %s15 = sphi 0, %s19
    %p16 = scmp.ge.s32.totalorder %s15, 10
    %s22 = sphi 0, %s34
    %s23 = sphi 0, %s30
    %s24 = sphi 0, %s22
    %s25 = sphi 0, %s23
    %s26 = sphi 0, %s24
    %s27 = sphi 0, %s25
    %s41 = sphi 0, %s43
    %s44 = sphi 0, %s41
    %s45 = sphi 0, %s44
    %s61 = sphi 0, %s45
    %s71 = sphi 0, %s73
    %s74 = sphi 0, %s71
    %s75 = sphi 0, %s74
    %s91 = sphi 0, %s75
    %s95 = sphi 0, %s95
    %s97 = sphi 0, %s95
    %s98 = sphi 0, %s97
    %s112 = sphi 0, %s98
    %s116 = sphi 0, %s116
    %s118 = sphi 0, %s116
    %s119 = sphi 0, %s118
    %s133 = sphi 0, %s119
    %s137 = sphi 0, %s137
    %s139 = sphi 0, %s137
    %s140 = sphi 0, %s139
    %s154 = sphi 0, %s140
    %s158 = sphi 0, %s158
    %s160 = sphi 0, %s158
    %s161 = sphi 0, %s160
    %s175 = sphi 0, %s161
    %s179 = sphi 0, %s179
    %s181 = sphi 0, %s179
    %s182 = sphi 0, %s181
    %s196 = sphi 0, %s182
    %s206 = sphi 0, %s208
    %s209 = sphi 0, %s206
    %s210 = sphi 0, %s209
    %s226 = sphi 0, %s210
    %s232 = sphi 0, %s234
    %s235 = sphi 0, %s232
    %s236 = sphi 0, %s235
    %s252 = sphi 0, %s236
  $region4: #{conv_func_cgcnn.5} parent=0 // loop_header_branch
    %18 = sbr.rel (%p16) target = $region8
  $region5: #{conv_func_cgcnn.5} parent=0 // loop_body
    %s20 = ssub.s32 %s15, 1
    %s21 = ssub.s32 %s15, 2
    %s28 = sadd.s32 1, %s23
    %p29 = scmp.ge.s32.totalorder %s28, 4
    %s30 = scalar_select %p29, 0, %s28
    %s31 = sadd.s32 1, %s22
    %s32 = scalar_select %p29, %s31, %s22
    %p33 = scmp.ge.s32.totalorder %s32, 2
    %s34 = scalar_select %p33, 0, %s32
    %s35 = smul.u32 %s22, 4
    %s36 = sadd.s32 %s35, %s23
    %s37 = smul.u32 %s34, 4
    %s38 = sadd.s32 %s37, %s30
    %s39 = ssub.s32 %s36, %s38
    %p40 = scmp.eq.s32.totalorder %s39, 0
    %s42 = sadd.s32 %s41, 1
    %s43 = scalar_select %p40, %s41, %s42
    %p46 = pneg %p40
    %p47 = scmp.eq.s32.totalorder %s15, 7
    %p48 = por %p46, %p47
    %p49 = scmp.ne.s32.totalorder %s41, %s44
    %p50 = scmp.eq.s32.totalorder %s15, 0
    %p51 = por %p49, %p50
    %p52 = scmp.ne.s32.totalorder %s41, %s44
    %p53 = scmp.eq.s32.totalorder %s20, 7
    %p54 = por %p52, %p53
    %p55 = scmp.ne.s32.totalorder %s44, %s45
    %p56 = scmp.eq.s32.totalorder %s20, 0
    %p57 = por %p55, %p56
    %p58 = scmp.ne.s32.totalorder %s44, %s45
    %p59 = scmp.eq.s32.totalorder %s21, 7
    %p60 = por %p58, %p59
    %p62 = scmp.ne.s32.totalorder %s45, %s61
    %p63 = scmp.eq.s32.totalorder %s21, 0
    %p64 = por %p62, %p63
    %s65 = smul.u32 %s22, 4
    %s66 = sadd.s32 %s65, %s23
    %s67 = smul.u32 %s34, 4
    %s68 = sadd.s32 %s67, %s30
    %s69 = ssub.s32 %s66, %s68
    %p70 = scmp.eq.s32.totalorder %s69, 0
    %s72 = sadd.s32 %s71, 1
    %s73 = scalar_select %p70, %s71, %s72
    %p76 = pneg %p70
    %p77 = scmp.eq.s32.totalorder %s15, 7
    %p78 = por %p76, %p77
    %p79 = scmp.ne.s32.totalorder %s71, %s74
    %p80 = scmp.eq.s32.totalorder %s15, 0
    %p81 = por %p79, %p80
    %p82 = scmp.ne.s32.totalorder %s71, %s74
    %p83 = scmp.eq.s32.totalorder %s20, 7
    %p84 = por %p82, %p83
    %p85 = scmp.ne.s32.totalorder %s74, %s75
    %p86 = scmp.eq.s32.totalorder %s20, 0
    %p87 = por %p85, %p86
    %p88 = scmp.ne.s32.totalorder %s74, %s75
    %p89 = scmp.eq.s32.totalorder %s21, 7
    %p90 = por %p88, %p89
    %p92 = scmp.ne.s32.totalorder %s75, %s91
    %p93 = scmp.eq.s32.totalorder %s21, 0
    %p94 = por %p92, %p93
    %s96 = sadd.s32 %s95, 1
    %p99 = scmp.eq.s32.totalorder %s15, 7
    %p100 = scmp.ne.s32.totalorder %s95, %s97
    %p101 = scmp.eq.s32.totalorder %s15, 0
    %p102 = por %p100, %p101
    %p103 = scmp.ne.s32.totalorder %s95, %s97
    %p104 = scmp.eq.s32.totalorder %s20, 7
    %p105 = por %p103, %p104
    %p106 = scmp.ne.s32.totalorder %s97, %s98
    %p107 = scmp.eq.s32.totalorder %s20, 0
    %p108 = por %p106, %p107
    %p109 = scmp.ne.s32.totalorder %s97, %s98
    %p110 = scmp.eq.s32.totalorder %s21, 7
    %p111 = por %p109, %p110
    %p113 = scmp.ne.s32.totalorder %s98, %s112
    %p114 = scmp.eq.s32.totalorder %s21, 0
    %p115 = por %p113, %p114
    %s117 = sadd.s32 %s116, 1
    %p120 = scmp.eq.s32.totalorder %s15, 7
    %p121 = scmp.ne.s32.totalorder %s116, %s118
    %p122 = scmp.eq.s32.totalorder %s15, 0
    %p123 = por %p121, %p122
    %p124 = scmp.ne.s32.totalorder %s116, %s118
    %p125 = scmp.eq.s32.totalorder %s20, 7
    %p126 = por %p124, %p125
    %p127 = scmp.ne.s32.totalorder %s118, %s119
    %p128 = scmp.eq.s32.totalorder %s20, 0
    %p129 = por %p127, %p128
    %p130 = scmp.ne.s32.totalorder %s118, %s119
    %p131 = scmp.eq.s32.totalorder %s21, 7
    %p132 = por %p130, %p131
    %p134 = scmp.ne.s32.totalorder %s119, %s133
    %p135 = scmp.eq.s32.totalorder %s21, 0
    %p136 = por %p134, %p135
    %s138 = sadd.s32 %s137, 1
    %p141 = scmp.eq.s32.totalorder %s15, 7
    %p142 = scmp.ne.s32.totalorder %s137, %s139
    %p143 = scmp.eq.s32.totalorder %s15, 0
    %p144 = por %p142, %p143
    %p145 = scmp.ne.s32.totalorder %s137, %s139
    %p146 = scmp.eq.s32.totalorder %s20, 7
    %p147 = por %p145, %p146
    %p148 = scmp.ne.s32.totalorder %s139, %s140
    %p149 = scmp.eq.s32.totalorder %s20, 0
    %p150 = por %p148, %p149
    %p151 = scmp.ne.s32.totalorder %s139, %s140
    %p152 = scmp.eq.s32.totalorder %s21, 7
    %p153 = por %p151, %p152
    %p155 = scmp.ne.s32.totalorder %s140, %s154
    %p156 = scmp.eq.s32.totalorder %s21, 0
    %p157 = por %p155, %p156
    %s159 = sadd.s32 %s158, 1
    %p162 = scmp.eq.s32.totalorder %s15, 7
    %p163 = scmp.ne.s32.totalorder %s158, %s160
    %p164 = scmp.eq.s32.totalorder %s15, 0
    %p165 = por %p163, %p164
    %p166 = scmp.ne.s32.totalorder %s158, %s160
    %p167 = scmp.eq.s32.totalorder %s20, 7
    %p168 = por %p166, %p167
    %p169 = scmp.ne.s32.totalorder %s160, %s161
    %p170 = scmp.eq.s32.totalorder %s20, 0
    %p171 = por %p169, %p170
    %p172 = scmp.ne.s32.totalorder %s160, %s161
    %p173 = scmp.eq.s32.totalorder %s21, 7
    %p174 = por %p172, %p173
    %p176 = scmp.ne.s32.totalorder %s161, %s175
    %p177 = scmp.eq.s32.totalorder %s21, 0
    %p178 = por %p176, %p177
    %s180 = sadd.s32 %s179, 1
    %p183 = scmp.eq.s32.totalorder %s15, 7
    %p184 = scmp.ne.s32.totalorder %s179, %s181
    %p185 = scmp.eq.s32.totalorder %s15, 0
    %p186 = por %p184, %p185
    %p187 = scmp.ne.s32.totalorder %s179, %s181
    %p188 = scmp.eq.s32.totalorder %s20, 7
    %p189 = por %p187, %p188
    %p190 = scmp.ne.s32.totalorder %s181, %s182
    %p191 = scmp.eq.s32.totalorder %s20, 0
    %p192 = por %p190, %p191
    %p193 = scmp.ne.s32.totalorder %s181, %s182
    %p194 = scmp.eq.s32.totalorder %s21, 7
    %p195 = por %p193, %p194
    %p197 = scmp.ne.s32.totalorder %s182, %s196
    %p198 = scmp.eq.s32.totalorder %s21, 0
    %p199 = por %p197, %p198
    %s200 = smul.u32 %s22, 4
    %s201 = sadd.s32 %s200, %s23
    %s202 = smul.u32 %s34, 4
    %s203 = sadd.s32 %s202, %s30
    %s204 = ssub.s32 %s201, %s203
    %p205 = scmp.eq.s32.totalorder %s204, 0
    %s207 = sadd.s32 %s206, 1
    %s208 = scalar_select %p205, %s206, %s207
    %p211 = pneg %p205
    %p212 = scmp.eq.s32.totalorder %s15, 7
    %p213 = por %p211, %p212
    %p214 = scmp.ne.s32.totalorder %s206, %s209
    %p215 = scmp.eq.s32.totalorder %s15, 0
    %p216 = por %p214, %p215
    %p217 = scmp.ne.s32.totalorder %s206, %s209
    %p218 = scmp.eq.s32.totalorder %s20, 7
    %p219 = por %p217, %p218
    %p220 = scmp.ne.s32.totalorder %s209, %s210
    %p221 = scmp.eq.s32.totalorder %s20, 0
    %p222 = por %p220, %p221
    %p223 = scmp.ne.s32.totalorder %s209, %s210
    %p224 = scmp.eq.s32.totalorder %s21, 7
    %p225 = por %p223, %p224
    %p227 = scmp.ne.s32.totalorder %s210, %s226
    %p228 = scmp.eq.s32.totalorder %s21, 0
    %p229 = por %p227, %p228
    %s230 = ssub.s32 %s22, %s34
    %p231 = scmp.eq.s32.totalorder %s230, 0
    %s233 = sadd.s32 %s232, 1
    %s234 = scalar_select %p231, %s232, %s233
    %p237 = pneg %p231
    %p238 = scmp.eq.s32.totalorder %s15, 7
    %p239 = por %p237, %p238
    %p240 = scmp.ne.s32.totalorder %s232, %s235
    %p241 = scmp.eq.s32.totalorder %s15, 0
    %p242 = por %p240, %p241
    %p243 = scmp.ne.s32.totalorder %s232, %s235
    %p244 = scmp.eq.s32.totalorder %s20, 7
    %p245 = por %p243, %p244
    %p246 = scmp.ne.s32.totalorder %s235, %s236
    %p247 = scmp.eq.s32.totalorder %s20, 0
    %p248 = por %p246, %p247
    %p249 = scmp.ne.s32.totalorder %s235, %s236
    %p250 = scmp.eq.s32.totalorder %s21, 7
    %p251 = por %p249, %p250
    %p253 = scmp.ne.s32.totalorder %s236, %s252
    %p254 = scmp.eq.s32.totalorder %s21, 0
    %p255 = por %p253, %p254
    %p256 = scmp.le.s32.totalorder 1, %s15
    %p257 = scmp.lt.s32.totalorder %s15, 9
    %p258 = pnand %p256, %p257
    %p259 = pneg %p258
    // Predicated region
    $region9: #{conv_func_cgcnn.5} parent=5 // pred_check
      _
    $region10: #{conv_func_cgcnn.5} parent=5 // pred_check_branch
      %261 = sbr.rel (%p258) target = $region12
    $region11: #{conv_func_cgcnn.5} parent=5 // pred_region
      %s262 = ssub.s32 %s15, 1
      // Predicated region
      $region13: #{conv_func_cgcnn.5} parent=11 // pred_check
        %p263 = pneg %p108
      $region14: #{conv_func_cgcnn.5} parent=11 // pred_check_branch
        %265 = sbr.rel (%p263) target = $region16
      $region15: #{conv_func_cgcnn.5} parent=11 // pred_region
        _
      $region16: #{conv_func_cgcnn.5} parent=11 // pred_fallthru
        _
      // Predicated region
      $region17: #{conv_func_cgcnn.5} parent=11 // pred_check
        %p266 = pneg %p129
      $region18: #{conv_func_cgcnn.5} parent=11 // pred_check_branch
        %268 = sbr.rel (%p266) target = $region20
      $region19: #{conv_func_cgcnn.5} parent=11 // pred_region
        _
      $region20: #{conv_func_cgcnn.5} parent=11 // pred_fallthru
        _
      // Predicated region
      $region21: #{conv_func_cgcnn.5} parent=11 // pred_check
        %p269 = pneg %p150
      $region22: #{conv_func_cgcnn.5} parent=11 // pred_check_branch
        %271 = sbr.rel (%p269) target = $region24
      $region23: #{conv_func_cgcnn.5} parent=11 // pred_region
        _
      $region24: #{conv_func_cgcnn.5} parent=11 // pred_fallthru
        _
      // Predicated region
      $region25: #{conv_func_cgcnn.5} parent=11 // pred_check
        %p272 = pneg %p171
      $region26: #{conv_func_cgcnn.5} parent=11 // pred_check_branch
        %274 = sbr.rel (%p272) target = $region28
      $region27: #{conv_func_cgcnn.5} parent=11 // pred_region
        _
      $region28: #{conv_func_cgcnn.5} parent=11 // pred_fallthru
        _
      // Predicated region
      $region29: #{conv_func_cgcnn.5} parent=11 // pred_check
        %p275 = pneg %p192
      $region30: #{conv_func_cgcnn.5} parent=11 // pred_check_branch
        %277 = sbr.rel (%p275) target = $region32
      $region31: #{conv_func_cgcnn.5} parent=11 // pred_region
        _
      $region32: #{conv_func_cgcnn.5} parent=11 // pred_fallthru
        _
    $region12: #{conv_func_cgcnn.5} parent=5 // pred_fallthru
      _
    %p278 = scmp.lt.s32.totalorder %s15, 8
    // Predicated region
    $region33: #{conv_func_cgcnn.5} parent=5 // pred_check
      %p279 = pneg %p278
    $region34: #{conv_func_cgcnn.5} parent=5 // pred_check_branch
      %281 = sbr.rel (%p279) target = $region36
    $region35: #{conv_func_cgcnn.5} parent=5 // pred_region
      // Predicated region
      $region37: #{conv_func_cgcnn.5} parent=35 // pred_check
        %p282 = pneg %p51
      $region38: #{conv_func_cgcnn.5} parent=35 // pred_check_branch
        %284 = sbr.rel (%p282) target = $region40
      $region39: #{conv_func_cgcnn.5} parent=35 // pred_region
        %s285 = smul.u32 %s22, 4
        %s286 = sadd.s32 %s285, %s23
        %s287 = smul.u32 8, %s286
        %p288 = scmp.lt.s32.totalorder %s287, 63
        %s289 = scalar_select %p288, %s287, 63
        %s290 = smul.addr %s289, 4
        %s291 = scalar_lea.vmem %s0, %s290
        %s292 = smul.u32 %s22, 4
        %s293 = sadd.s32 %s292, %s23
        %s294 = smul.u32 8, %s293
      $region40: #{conv_func_cgcnn.5} parent=35 // pred_fallthru
        _
      // Predicated region
      $region41: #{conv_func_cgcnn.5} parent=35 // pred_check
        %p295 = pneg %p81
      $region42: #{conv_func_cgcnn.5} parent=35 // pred_check_branch
        %297 = sbr.rel (%p295) target = $region44
      $region43: #{conv_func_cgcnn.5} parent=35 // pred_region
        %s298 = smul.u32 %s22, 4
        %s299 = sadd.s32 %s298, %s23
        %s300 = smul.u32 8, %s299
        %p301 = scmp.lt.s32.totalorder %s300, 63
        %s302 = scalar_select %p301, %s300, 63
        %s303 = smul.addr %s302, 2
        %s304 = smul.addr %s303, 4
        %s305 = scalar_lea.vmem %s1, %s304
        %s306 = smul.u32 %s22, 4
        %s307 = sadd.s32 %s306, %s23
        %s308 = smul.u32 8, %s307
      $region44: #{conv_func_cgcnn.5} parent=35 // pred_fallthru
        _
    $region36: #{conv_func_cgcnn.5} parent=5 // pred_fallthru
      _
    %p309 = scmp.le.s32.totalorder 1, %s15
    %p310 = scmp.lt.s32.totalorder %s15, 9
    %p311 = pnand %p309, %p310
    %p312 = pneg %p311
    // Predicated region
    $region45: #{conv_func_cgcnn.5} parent=5 // pred_check
      _
    $region46: #{conv_func_cgcnn.5} parent=5 // pred_check_branch
      %314 = sbr.rel (%p311) target = $region48
    $region47: #{conv_func_cgcnn.5} parent=5 // pred_region
      %s315 = ssub.s32 %s15, 1
      %s316 = smul.u32 %s24, 4
      %s317 = sadd.s32 %s316, %s25
      %s318 = smul.u32 8, %s317
      %p319 = scmp.lt.s32.totalorder %s318, 63
      %s320 = scalar_select %p319, %s318, 63
      %s321 = smul.addr %s320, 4
      %s322 = scalar_lea.vmem %s0, %s321
      %p323 = pneg %p57
      %p324 = pneg %p54
      %s325 = smul.u32 %s24, 4
      %s326 = sadd.s32 %s325, %s25
      %s327 = smul.u32 8, %s326
      %p328 = scmp.lt.s32.totalorder %s327, 63
      %s329 = scalar_select %p328, %s327, 63
      %s330 = smul.addr %s329, 2
      %s331 = smul.addr %s330, 4
      %s332 = scalar_lea.vmem %s1, %s331
      %p333 = pneg %p87
      %p334 = pneg %p84
      %p335 = pneg %p108
      %p336 = pneg %p105
      %p337 = pneg %p129
      %p338 = pneg %p126
      %p339 = pneg %p150
      %p340 = pneg %p147
      %p341 = pneg %p171
      %p342 = pneg %p168
      %p343 = pneg %p192
      %p344 = pneg %p189
      %p345 = pneg %p222
      %p346 = pneg %p219
      %s347 = smul.u32 %s24, 4
      %s348 = sadd.s32 %s347, %s25
      %s349 = smul.u32 8, %s348
      %p350 = scmp.lt.s32.totalorder %s349, 63
      %s351 = scalar_select %p350, %s349, 63
      %s352 = smul.addr %s351, 2
      %s353 = smul.addr %s352, 4
      %s354 = scalar_lea.vmem %s7, %s353
      %p355 = pneg %p248
      %p356 = pneg %p245
      %p357 = scmp.lt.s32.totalorder %s24, 1
      %s358 = scalar_select %p357, %s24, 1
      %s359 = smul.addr %s358, 2
      %s360 = smul.addr %s359, 2
      %s361 = scalar_lea.vmem %s8, %s360
      %s362 = smul.u32 %s24, 4
      %s363 = sadd.s32 %s362, %s25
      %s364 = smul.u32 8, %s363
      %p365 = scmp.lt.s32.totalorder %s364, 63
      %s366 = scalar_select %p365, %s364, 63
      %s367 = smul.addr %s366, 4
      %s368 = scalar_lea.vmem %s0, %s367
      %s369 = smul.u32 %s24, 4
      %s370 = sadd.s32 %s369, %s25
      %s371 = smul.u32 8, %s370
      %s372 = smul.u32 %s24, 4
      %s373 = sadd.s32 %s372, %s25
      %s374 = smul.u32 8, %s373
      %p375 = scmp.lt.s32.totalorder %s374, 63
      %s376 = scalar_select %p375, %s374, 63
      %s377 = smul.addr %s376, 2
      %s378 = smul.addr %s377, 4
      %s379 = scalar_lea.vmem %s1, %s378
      %s380 = smul.u32 %s24, 4
      %s381 = sadd.s32 %s380, %s25
      %s382 = smul.u32 8, %s381
      %s383 = smul.u32 %s24, 4
      %s384 = sadd.s32 %s383, %s25
      %s385 = smul.u32 8, %s384
      %p386 = scmp.lt.s32.totalorder %s385, 63
      %s387 = scalar_select %p386, %s385, 63
      %s388 = smul.addr %s387, 2
      %s389 = smul.addr %s388, 4
      %s390 = scalar_lea.vmem %s7, %s389
      %s391 = smul.u32 %s24, 4
      %s392 = sadd.s32 %s391, %s25
      %s393 = smul.u32 8, %s392
      %p394 = scmp.lt.s32.totalorder %s24, 1
      %s395 = scalar_select %p394, %s24, 1
      %s396 = smul.addr %s395, 2
      %s397 = smul.addr %s396, 2
      %s398 = scalar_lea.vmem %s8, %s397
      %p400 = scmp.eq.s32.totalorder %s25, 0
      // Predicated region
      $region49: #{conv_func_cgcnn.5} parent=47 // pred_check
        %p401 = pneg %p400
      $region50: #{conv_func_cgcnn.5} parent=47 // pred_check_branch
        %403 = sbr.rel (%p401) target = $region52
      $region51: #{conv_func_cgcnn.5} parent=47 // pred_region
        %404 = vst [vmem:[%s398] sm:$0xf] 0.0
      $region52: #{conv_func_cgcnn.5} parent=47 // pred_fallthru
        _
      %v405 = vld [vmem:[%s3] sm:$0x3]
      %s406 = scalar_lea.vmem %s3, 2
      %v407 = vld [vmem:[%s406] sm:$0x3]
      %v408 = vadd.f32 %v405, %v407
      %v409 = vld [vmem:[%s368] sm:$0xf]
      %v410 = vld [vmem:[%s368 + $0x4] sm:$0xf]
      %v411 = vld [vmem:[%s368 + $0x8] sm:$0xf]
      %v412 = vld [vmem:[%s368 + $0xc] sm:$0xf]
      %v413 = vld [vmem:[%s368 + $0x10] sm:$0xf]
      %v414 = vld [vmem:[%s368 + $0x14] sm:$0xf]
      %v415 = vld [vmem:[%s368 + $0x18] sm:$0xf]
      %v416 = vld [vmem:[%s368 + $0x1c] sm:$0xf]
      %v417 = vld [vmem:[%s2] sm:$0xf]
      %v418 = vld [vmem:[%s2 + $0x4] sm:$0xf]
      %v419 = vld [vmem:[%s2 + $0x8] sm:$0xf]
      %v420 = vld [vmem:[%s2 + $0xc] sm:$0xf]
      %v421 = vld [vmem:[%s2 + $0x10] sm:$0xf]
      %v422 = vld [vmem:[%s2 + $0x14] sm:$0xf]
      %v423 = vld [vmem:[%s2 + $0x18] sm:$0xf]
      %v424 = vld [vmem:[%s2 + $0x1c] sm:$0xf]
      %v425 = vld [vmem:[%s2 + $0x20] sm:$0xf]
      %v426 = vld [vmem:[%s2 + $0x24] sm:$0xf]
      %v427 = vld [vmem:[%s2 + $0x28] sm:$0xf]
      %v428 = vld [vmem:[%s2 + $0x2c] sm:$0xf]
      %v429 = vld [vmem:[%s2 + $0x30] sm:$0xf]
      %v430 = vld [vmem:[%s2 + $0x34] sm:$0xf]
      %v431 = vld [vmem:[%s2 + $0x38] sm:$0xf]
      %v432 = vld [vmem:[%s2 + $0x3c] sm:$0xf]
      %v441 = vunpack.c.l.b16 %v409
      %v442 = vunpack.c.l.b16 %v410
      %v443 = vunpack.c.l.b16 %v411
      %v444 = vunpack.c.l.b16 %v412
      %v445 = vunpack.c.l.b16 %v413
      %v446 = vunpack.c.l.b16 %v414
      %v447 = vunpack.c.l.b16 %v415
      %v448 = vunpack.c.l.b16 %v416
      %v449 = vpack.c.b16 %v442, %v441
      %v450 = vpack.c.b16 %v444, %v443
      %v451 = vpack.c.b16 %v446, %v445
      %v452 = vpack.c.b16 %v448, %v447
      %v473 = vunpack.c.l.b16 %v417
      %v474 = vunpack.c.l.b16 %v418
      %v475 = vunpack.c.l.b16 %v419
      %v476 = vunpack.c.l.b16 %v420
      %v477 = vunpack.c.l.b16 %v421
      %v478 = vunpack.c.l.b16 %v422
      %v479 = vunpack.c.l.b16 %v423
      %v480 = vunpack.c.l.b16 %v424
      %v481 = vunpack.c.l.b16 %v425
      %v482 = vunpack.c.l.b16 %v426
      %v483 = vunpack.c.l.b16 %v427
      %v484 = vunpack.c.l.b16 %v428
      %v485 = vunpack.c.l.b16 %v429
      %v486 = vunpack.c.l.b16 %v430
      %v487 = vunpack.c.l.b16 %v431
      %v488 = vunpack.c.l.b16 %v432
      %v489 = vpack.c.b16 %v474, %v473
      %v490 = vpack.c.b16 %v476, %v475
      %v491 = vpack.c.b16 %v478, %v477
      %v492 = vpack.c.b16 %v480, %v479
      %v493 = vpack.c.b16 %v482, %v481
      %v494 = vpack.c.b16 %v484, %v483
      %v495 = vpack.c.b16 %v486, %v485
      %v496 = vpack.c.b16 %v488, %v487
      %505 = vmatprep.subr.bf16.mxu0 0
      %506 = vmatpush1.bf16.msra.mxu0 %v496
      %507 = vmatprep.subr.bf16.mxu0 0
      %508 = vmatpush1.bf16.msra.mxu0 %v495
      %509 = vmatprep.subr.bf16.mxu0 0
      %510 = vmatpush1.bf16.msra.mxu0 %v494
      %511 = vmatprep.subr.bf16.mxu0 0
      %512 = vmatpush1.bf16.msra.mxu0 %v493
      %513 = vmatprep.subr.bf16.mxu0 0
      %514 = vmatpush1.bf16.msra.mxu0 %v492
      %515 = vmatprep.subr.bf16.mxu0 0
      %516 = vmatpush1.bf16.msra.mxu0 %v491
      %517 = vmatprep.subr.bf16.mxu0 0
      %518 = vmatpush1.bf16.msra.mxu0 %v490
      %519 = vmatprep.subr.bf16.mxu0 0
      %520 = vmatpush1.bf16.msra.mxu0 %v489
      %521 = vmatprep.subr.bf16.mxu0 0
      %522 = vmatpush2.bf16.msra.mxu0 0
      %523 = vmatprep.subr.bf16.mxu0 0
      %524 = vmatpush2.bf16.msra.mxu0 0
      %525 = vmatprep.subr.bf16.mxu0 0
      %526 = vmatpush2.bf16.msra.mxu0 0
      %527 = vmatprep.subr.bf16.mxu0 0
      %528 = vmatpush2.bf16.msra.mxu0 0
      %529 = vmatprep.subr.bf16.mxu0 0
      %530 = vmatpush2.bf16.msra.mxu0 0
      %531 = vmatprep.subr.bf16.mxu0 0
      %532 = vmatpush2.bf16.msra.mxu0 0
      %533 = vmatprep.subr.bf16.mxu0 0
      %534 = vmatpush2.bf16.msra.mxu0 0
      %535 = vmatprep.subr.bf16.mxu0 0
      %536 = vmatpush2.bf16.msra.mxu0 0
      %537 = vmatprep.mubr.bf16.mxu0 0
      %538 = vmatmul.mubr.bf16.gmra.mxu0 %v449
      %v539 = vpop.f32.mrf.mxu0
      %v540 = vadd.f32 0.0, %v539
      %v541 = vpop.f32.mrf.mxu0
      %v542 = vpop.f32.mrf.mxu0
      %v543 = vadd.f32 0.0, %v542
      %v544 = vpop.f32.mrf.mxu0
      %545 = vmatprep.mubr.bf16.mxu0 0
      %546 = vmatmul.mubr.bf16.gmra.mxu0 %v450
      %v547 = vpop.f32.mrf.mxu0
      %v548 = vadd.f32 0.0, %v547
      %v549 = vpop.f32.mrf.mxu0
      %v550 = vpop.f32.mrf.mxu0
      %v551 = vadd.f32 0.0, %v550
      %v552 = vpop.f32.mrf.mxu0
      %553 = vmatprep.mubr.bf16.mxu0 0
      %554 = vmatmul.mubr.bf16.gmra.mxu0 %v451
      %v555 = vpop.f32.mrf.mxu0
      %v556 = vadd.f32 0.0, %v555
      %v557 = vpop.f32.mrf.mxu0
      %v558 = vpop.f32.mrf.mxu0
      %v559 = vadd.f32 0.0, %v558
      %v560 = vpop.f32.mrf.mxu0
      %561 = vmatprep.mubr.bf16.mxu0 0
      %562 = vmatmul.mubr.bf16.gmra.mxu0 %v452
      %v563 = vpop.f32.mrf.mxu0
      %v564 = vadd.f32 0.0, %v563
      %v565 = vpop.f32.mrf.mxu0
      %v566 = vpop.f32.mrf.mxu0
      %v567 = vadd.f32 0.0, %v566
      %v568 = vpop.f32.mrf.mxu0
      %569 = vdwg.mxu0
      %v570 = vld [vmem:[%s4] sm:$0x1]
      %v571 = vld [vmem:[%s5] sm:$0x1]
      %v572 = vmul.f32 %v408, 0.0020833334
      %v573 = vmul.f32 %v572, %v572
      %v575 = vrot.slane %v573, 7
      %v577 = vsub.f32 %v572, %v575
      %v578 = vmax.f32 %v577, 0.0
      %v579 = vlaneseq
      %v580 = vshrl.u32 %v579, 7
      %v581 = vsub.s32 0, %v580
      %v582 = vrot.slane %v572, %v581
      %v583 = vsub.f32 %v540, %v582
      %v584 = vsub.f32 %v543, %v582
      %v585 = vsub.f32 %v548, %v582
      %v586 = vsub.f32 %v551, %v582
      %v587 = vsub.f32 %v556, %v582
      %v588 = vsub.f32 %v559, %v582
      %v589 = vsub.f32 %v564, %v582
      %v590 = vsub.f32 %v567, %v582
      %v591 = vadd.f32 %v578, 1e-05
      %v592 = vrsqrt.pop %v591
      %v593 = vlaneseq
      %v594 = vshrl.u32 %v593, 7
      %v595 = vsub.s32 1, %v594
      %v596 = vrot.slane %v592, %v595
      %v597 = vmul.f32 %v583, %v596
      %v598 = vmul.f32 %v584, %v596
      %v599 = vmul.f32 %v585, %v596
      %v600 = vmul.f32 %v586, %v596
      %v601 = vmul.f32 %v587, %v596
      %v602 = vmul.f32 %v588, %v596
      %v603 = vmul.f32 %v589, %v596
      %v604 = vmul.f32 %v590, %v596
      %v606 = vlaneseq
      %v607 = vshrl.u32 %v606, 7
      %v608 = vsub.s32 0, %v607
      %v609 = vrot.slane %v570, %v608
      %v611 = vmul.f32 %v597, %v609
      %v612 = vmul.f32 %v598, %v609
      %v613 = vmul.f32 %v599, %v609
      %v614 = vmul.f32 %v600, %v609
      %v615 = vmul.f32 %v601, %v609
      %v616 = vmul.f32 %v602, %v609
      %v617 = vmul.f32 %v603, %v609
      %v618 = vmul.f32 %v604, %v609
      %v620 = vlaneseq
      %v621 = vshrl.u32 %v620, 7
      %v622 = vsub.s32 0, %v621
      %v623 = vrot.slane %v571, %v622
      %v625 = vadd.f32 %v611, %v623
      %v626 = vadd.f32 %v612, %v623
      %v627 = vadd.f32 %v613, %v623
      %v628 = vadd.f32 %v614, %v623
      %v629 = vadd.f32 %v615, %v623
      %v630 = vadd.f32 %v616, %v623
      %v631 = vadd.f32 %v617, %v623
      %v632 = vadd.f32 %v618, %v623
      %v633 = vsub.f32 0.0, %v625
      %v634 = vsub.f32 0.0, %v626
      %v635 = vsub.f32 0.0, %v627
      %v636 = vsub.f32 0.0, %v628
      %v637 = vsub.f32 0.0, %v629
      %v638 = vsub.f32 0.0, %v630
      %v639 = vsub.f32 0.0, %v631
      %v640 = vsub.f32 0.0, %v632
      %v641 = vmul.f32 %v633, 1.442695
      %v642 = vpow.pop %v641
      %v643 = vmul.f32 %v634, 1.442695
      %v644 = vpow.pop %v643
      %v645 = vmul.f32 %v635, 1.442695
      %v646 = vpow.pop %v645
      %v647 = vmul.f32 %v636, 1.442695
      %v648 = vpow.pop %v647
      %v649 = vmul.f32 %v637, 1.442695
      %v650 = vpow.pop %v649
      %v651 = vmul.f32 %v638, 1.442695
      %v652 = vpow.pop %v651
      %v653 = vmul.f32 %v639, 1.442695
      %v654 = vpow.pop %v653
      %v655 = vmul.f32 %v640, 1.442695
      %v656 = vpow.pop %v655
      %v657 = vadd.f32 %v642, 1.0
      %v658 = vadd.f32 %v644, 1.0
      %v659 = vadd.f32 %v646, 1.0
      %v660 = vadd.f32 %v648, 1.0
      %v661 = vadd.f32 %v650, 1.0
      %v662 = vadd.f32 %v652, 1.0
      %v663 = vadd.f32 %v654, 1.0
      %v664 = vadd.f32 %v656, 1.0
      %v665 = vrcp.pop %v657
      %v666 = vmul.f32 1.0, %v665
      %v667 = vrcp.pop %v658
      %v668 = vmul.f32 1.0, %v667
      %v669 = vrcp.pop %v659
      %v670 = vmul.f32 1.0, %v669
      %v671 = vrcp.pop %v660
      %v672 = vmul.f32 1.0, %v671
      %v673 = vrcp.pop %v661
      %v674 = vmul.f32 1.0, %v673
      %v675 = vrcp.pop %v662
      %v676 = vmul.f32 1.0, %v675
      %v677 = vrcp.pop %v663
      %v678 = vmul.f32 1.0, %v677
      %v679 = vrcp.pop %v664
      %v680 = vmul.f32 1.0, %v679
      %v681 = vmul.f32 %v625, %v666
      %v682 = vmul.f32 %v626, %v668
      %v683 = vmul.f32 %v627, %v670
      %v684 = vmul.f32 %v628, %v672
      %v685 = vmul.f32 %v629, %v674
      %v686 = vmul.f32 %v630, %v676
      %v687 = vmul.f32 %v631, %v678
      %v688 = vmul.f32 %v632, %v680
      %v689 = vpack.c.bf16 %v682, %v681
      %v690 = vpack.c.bf16 %v684, %v683
      %v691 = vpack.c.bf16 %v686, %v685
      %v692 = vpack.c.bf16 %v688, %v687
      %v693 = vld [vmem:[%s6] sm:$0xff]
      %v694 = vld [vmem:[%s6 + $0x8] sm:$0xff]
      %v695 = vld [vmem:[%s6 + $0x10] sm:$0xff]
      %v696 = vld [vmem:[%s6 + $0x18] sm:$0xff]
      %v697 = vld [vmem:[%s6 + $0x20] sm:$0xff]
      %v698 = vld [vmem:[%s6 + $0x28] sm:$0xff]
      %v699 = vld [vmem:[%s6 + $0x30] sm:$0xff]
      %v700 = vld [vmem:[%s6 + $0x38] sm:$0xff]
      %v701 = vld [vmem:[%s6 + $0x40] sm:$0xff]
      %v702 = vld [vmem:[%s6 + $0x48] sm:$0xff]
      %v703 = vld [vmem:[%s6 + $0x50] sm:$0xff]
      %v704 = vld [vmem:[%s6 + $0x58] sm:$0xff]
      %v705 = vld [vmem:[%s6 + $0x60] sm:$0xff]
      %v706 = vld [vmem:[%s6 + $0x68] sm:$0xff]
      %v707 = vld [vmem:[%s6 + $0x70] sm:$0xff]
      %v708 = vld [vmem:[%s6 + $0x78] sm:$0xff]
      %v709 = vld [vmem:[%s379] sm:$0xff]
      %v710 = vld [vmem:[%s379 + $0x8] sm:$0xff]
      %v711 = vld [vmem:[%s379 + $0x10] sm:$0xff]
      %v712 = vld [vmem:[%s379 + $0x18] sm:$0xff]
      %v713 = vld [vmem:[%s379 + $0x20] sm:$0xff]
      %v714 = vld [vmem:[%s379 + $0x28] sm:$0xff]
      %v715 = vld [vmem:[%s379 + $0x30] sm:$0xff]
      %v716 = vld [vmem:[%s379 + $0x38] sm:$0xff]
      %v717 = vunpack.c.l.bf16 %v709
      %v718 = vunpack.c.h.bf16 %v709
      %v719 = vunpack.c.l.bf16 %v710
      %v720 = vunpack.c.h.bf16 %v710
      %v721 = vunpack.c.l.bf16 %v711
      %v722 = vunpack.c.h.bf16 %v711
      %v723 = vunpack.c.l.bf16 %v712
      %v724 = vunpack.c.h.bf16 %v712
      %v725 = vunpack.c.l.bf16 %v713
      %v726 = vunpack.c.h.bf16 %v713
      %v727 = vunpack.c.l.bf16 %v714
      %v728 = vunpack.c.h.bf16 %v714
      %v729 = vunpack.c.l.bf16 %v715
      %v730 = vunpack.c.h.bf16 %v715
      %v731 = vunpack.c.l.bf16 %v716
      %v732 = vunpack.c.h.bf16 %v716
      %v749 = vunpack.c.l.b16 %v693
      %v750 = vunpack.c.h.b16 %v693
      %v751 = vunpack.c.l.b16 %v694
      %v752 = vunpack.c.h.b16 %v694
      %v753 = vunpack.c.l.b16 %v695
      %v754 = vunpack.c.h.b16 %v695
      %v755 = vunpack.c.l.b16 %v696
      %v756 = vunpack.c.h.b16 %v696
      %v757 = vunpack.c.l.b16 %v697
      %v758 = vunpack.c.h.b16 %v697
      %v759 = vunpack.c.l.b16 %v698
      %v760 = vunpack.c.h.b16 %v698
      %v761 = vunpack.c.l.b16 %v699
      %v762 = vunpack.c.h.b16 %v699
      %v763 = vunpack.c.l.b16 %v700
      %v764 = vunpack.c.h.b16 %v700
      %v765 = vunpack.c.l.b16 %v701
      %v766 = vunpack.c.h.b16 %v701
      %v767 = vunpack.c.l.b16 %v702
      %v768 = vunpack.c.h.b16 %v702
      %v769 = vunpack.c.l.b16 %v703
      %v770 = vunpack.c.h.b16 %v703
      %v771 = vunpack.c.l.b16 %v704
      %v772 = vunpack.c.h.b16 %v704
      %v773 = vunpack.c.l.b16 %v705
      %v774 = vunpack.c.h.b16 %v705
      %v775 = vunpack.c.l.b16 %v706
      %v776 = vunpack.c.h.b16 %v706
      %v777 = vunpack.c.l.b16 %v707
      %v778 = vunpack.c.h.b16 %v707
      %v779 = vunpack.c.l.b16 %v708
      %v780 = vunpack.c.h.b16 %v708
      %v781 = vpack.c.b16 %v751, %v749
      %v782 = vpack.c.b16 %v752, %v750
      %v783 = vpack.c.b16 %v755, %v753
      %v784 = vpack.c.b16 %v756, %v754
      %v785 = vpack.c.b16 %v759, %v757
      %v786 = vpack.c.b16 %v760, %v758
      %v787 = vpack.c.b16 %v763, %v761
      %v788 = vpack.c.b16 %v764, %v762
      %v789 = vpack.c.b16 %v767, %v765
      %v790 = vpack.c.b16 %v768, %v766
      %v791 = vpack.c.b16 %v771, %v769
      %v792 = vpack.c.b16 %v772, %v770
      %v793 = vpack.c.b16 %v775, %v773
      %v794 = vpack.c.b16 %v776, %v774
      %v795 = vpack.c.b16 %v779, %v777
      %v796 = vpack.c.b16 %v780, %v778
      %813 = vmatprep.subr.bf16.mxu0 %v796
      %814 = vmatpush1.bf16.msra.mxu0 %v795
      %815 = vmatprep.subr.bf16.mxu0 %v794
      %816 = vmatpush1.bf16.msra.mxu0 %v793
      %817 = vmatprep.subr.bf16.mxu0 %v792
      %818 = vmatpush1.bf16.msra.mxu0 %v791
      %819 = vmatprep.subr.bf16.mxu0 %v790
      %820 = vmatpush1.bf16.msra.mxu0 %v789
      %821 = vmatprep.subr.bf16.mxu0 %v788
      %822 = vmatpush1.bf16.msra.mxu0 %v787
      %823 = vmatprep.subr.bf16.mxu0 %v786
      %824 = vmatpush1.bf16.msra.mxu0 %v785
      %825 = vmatprep.subr.bf16.mxu0 %v784
      %826 = vmatpush1.bf16.msra.mxu0 %v783
      %827 = vmatprep.subr.bf16.mxu0 %v782
      %828 = vmatpush1.bf16.msra.mxu0 %v781
      %829 = vmatprep.subr.bf16.mxu0 0
      %830 = vmatpush2.bf16.msra.mxu0 0
      %831 = vmatprep.subr.bf16.mxu0 0
      %832 = vmatpush2.bf16.msra.mxu0 0
      %833 = vmatprep.subr.bf16.mxu0 0
      %834 = vmatpush2.bf16.msra.mxu0 0
      %835 = vmatprep.subr.bf16.mxu0 0
      %836 = vmatpush2.bf16.msra.mxu0 0
      %837 = vmatprep.subr.bf16.mxu0 0
      %838 = vmatpush2.bf16.msra.mxu0 0
      %839 = vmatprep.subr.bf16.mxu0 0
      %840 = vmatpush2.bf16.msra.mxu0 0
      %841 = vmatprep.subr.bf16.mxu0 0
      %842 = vmatpush2.bf16.msra.mxu0 0
      %843 = vmatprep.subr.bf16.mxu0 0
      %844 = vmatpush2.bf16.msra.mxu0 0
      %845 = vmatprep.mubr.bf16.mxu0 0
      %846 = vmatmul.mubr.bf16.gmra.mxu0 %v689
      %v847 = vpop.f32.mrf.mxu0
      %v848 = vadd.f32 %v717, %v847
      %v849 = vpop.f32.mrf.mxu0
      %v850 = vadd.f32 %v718, %v849
      %v851 = vpop.f32.mrf.mxu0
      %v852 = vadd.f32 %v719, %v851
      %v853 = vpop.f32.mrf.mxu0
      %v854 = vadd.f32 %v720, %v853
      %855 = vmatprep.mubr.bf16.mxu0 0
      %856 = vmatmul.mubr.bf16.gmra.mxu0 %v690
      %v857 = vpop.f32.mrf.mxu0
      %v858 = vadd.f32 %v721, %v857
      %v859 = vpop.f32.mrf.mxu0
      %v860 = vadd.f32 %v722, %v859
      %v861 = vpop.f32.mrf.mxu0
      %v862 = vadd.f32 %v723, %v861
      %v863 = vpop.f32.mrf.mxu0
      %v864 = vadd.f32 %v724, %v863
      %865 = vmatprep.mubr.bf16.mxu0 0
      %866 = vmatmul.mubr.bf16.gmra.mxu0 %v691
      %v867 = vpop.f32.mrf.mxu0
      %v868 = vadd.f32 %v725, %v867
      %v869 = vpop.f32.mrf.mxu0
      %v870 = vadd.f32 %v726, %v869
      %v871 = vpop.f32.mrf.mxu0
      %v872 = vadd.f32 %v727, %v871
      %v873 = vpop.f32.mrf.mxu0
      %v874 = vadd.f32 %v728, %v873
      %875 = vmatprep.mubr.bf16.mxu0 0
      %876 = vmatmul.mubr.bf16.gmra.mxu0 %v692
      %v877 = vpop.f32.mrf.mxu0
      %v878 = vadd.f32 %v729, %v877
      %v879 = vpop.f32.mrf.mxu0
      %v880 = vadd.f32 %v730, %v879
      %v881 = vpop.f32.mrf.mxu0
      %v882 = vadd.f32 %v731, %v881
      %v883 = vpop.f32.mrf.mxu0
      %v884 = vadd.f32 %v732, %v883
      %885 = vdwg.mxu0
      %v886 = vpack.c.bf16 %v852, %v848
      %v887 = vpack.c.bf16 %v854, %v850
      %v888 = vpack.c.bf16 %v862, %v858
      %v889 = vpack.c.bf16 %v864, %v860
      %v890 = vpack.c.bf16 %v872, %v868
      %v891 = vpack.c.bf16 %v874, %v870
      %v892 = vpack.c.bf16 %v882, %v878
      %v893 = vpack.c.bf16 %v884, %v880
      %v902 = vunpack.c.l.b16 %v886
      %v903 = vunpack.c.l.b16 %v887
      %v904 = vunpack.c.h.b16 %v886
      %v905 = vunpack.c.h.b16 %v887
      %v906 = vunpack.c.l.b16 %v888
      %v907 = vunpack.c.l.b16 %v889
      %v908 = vunpack.c.h.b16 %v888
      %v909 = vunpack.c.h.b16 %v889
      %v910 = vunpack.c.l.b16 %v890
      %v911 = vunpack.c.l.b16 %v891
      %v912 = vunpack.c.h.b16 %v890
      %v913 = vunpack.c.h.b16 %v891
      %v914 = vunpack.c.l.b16 %v892
      %v915 = vunpack.c.l.b16 %v893
      %v916 = vunpack.c.h.b16 %v892
      %v917 = vunpack.c.h.b16 %v893
      %v918 = vpack.c.b16 %v903, %v902
      %v919 = vpack.c.b16 %v905, %v904
      %v920 = vpack.c.b16 %v907, %v906
      %v921 = vpack.c.b16 %v909, %v908
      %v922 = vpack.c.b16 %v911, %v910
      %v923 = vpack.c.b16 %v913, %v912
      %v924 = vpack.c.b16 %v915, %v914
      %v925 = vpack.c.b16 %v917, %v916
      %934 = vst [vmem:[%s390] sm:$0xff] %v918
      %935 = vst [vmem:[%s390 + $0x8] sm:$0xff] %v919
      %936 = vst [vmem:[%s390 + $0x10] sm:$0xff] %v920
      %937 = vst [vmem:[%s390 + $0x18] sm:$0xff] %v921
      %938 = vst [vmem:[%s390 + $0x20] sm:$0xff] %v922
      %939 = vst [vmem:[%s390 + $0x28] sm:$0xff] %v923
      %940 = vst [vmem:[%s390 + $0x30] sm:$0xff] %v924
      %941 = vst [vmem:[%s390 + $0x38] sm:$0xff] %v925
      %s942 = smul.u32 %s24, 4
      %s943 = sadd.s32 %s942, %s25
      %s944 = sadd.s32 %s943, 1
      %s945 = smul.u32 %s944, 64
      %p946 = scmp.le.s32.totalorder %s945, 480
      // Predicated region
      $region53: #{conv_func_cgcnn.5} parent=47 // pred_check
        %p947 = pneg %p946
      $region54: #{conv_func_cgcnn.5} parent=47 // pred_check_branch
        %949 = sbr.rel (%p947) target = $region56
      $region55: #{conv_func_cgcnn.5} parent=47 // pred_region
        %v950 = vld [vmem:[%s398] sm:$0xf]
        %v951 = vmul.f32 %v848, %v848
        %v952 = vmul.f32 %v850, %v850
        %v953 = vmul.f32 %v852, %v852
        %v954 = vmul.f32 %v854, %v854
        %v955 = vmul.f32 %v858, %v858
        %v956 = vmul.f32 %v860, %v860
        %v957 = vmul.f32 %v862, %v862
        %v958 = vmul.f32 %v864, %v864
        %v959 = vmul.f32 %v868, %v868
        %v960 = vmul.f32 %v870, %v870
        %v961 = vmul.f32 %v872, %v872
        %v962 = vmul.f32 %v874, %v874
        %v963 = vmul.f32 %v878, %v878
        %v964 = vmul.f32 %v880, %v880
        %v965 = vmul.f32 %v882, %v882
        %v966 = vmul.f32 %v884, %v884
        %v967 = vadd.f32 %v848, %v852
        %v968 = vadd.f32 %v967, %v858
        %v969 = vadd.f32 %v968, %v862
        %v970 = vadd.f32 %v969, %v868
        %v971 = vadd.f32 %v970, %v872
        %v972 = vadd.f32 %v971, %v878
        %v973 = vadd.f32 %v972, %v882
        %v974 = vrot.slane %v973, 4
        %v975 = vadd.f32 %v973, %v974
        %v976 = vrot.slane %v975, 2
        %v977 = vadd.f32 %v975, %v976
        %v978 = vrot.slane %v977, 1
        %v979 = vadd.f32 %v977, %v978
        %v980 = vadd.f32 %v850, %v854
        %v981 = vadd.f32 %v980, %v860
        %v982 = vadd.f32 %v981, %v864
        %v983 = vadd.f32 %v982, %v870
        %v984 = vadd.f32 %v983, %v874
        %v985 = vadd.f32 %v984, %v880
        %v986 = vadd.f32 %v985, %v884
        %v987 = vrot.slane %v986, 4
        %v988 = vadd.f32 %v986, %v987
        %v989 = vrot.slane %v988, 2
        %v990 = vadd.f32 %v988, %v989
        %v991 = vrot.slane %v990, 1
        %v992 = vadd.f32 %v990, %v991
        %v993 = vadd.f32 %v951, %v953
        %v994 = vadd.f32 %v993, %v955
        %v995 = vadd.f32 %v994, %v957
        %v996 = vadd.f32 %v995, %v959
        %v997 = vadd.f32 %v996, %v961
        %v998 = vadd.f32 %v997, %v963
        %v999 = vadd.f32 %v998, %v965
        %v1000 = vrot.slane %v999, 4
        %v1001 = vadd.f32 %v999, %v1000
        %v1002 = vrot.slane %v1001, 2
        %v1003 = vadd.f32 %v1001, %v1002
        %v1004 = vrot.slane %v1003, 1
        %v1005 = vadd.f32 %v1003, %v1004
        %v1006 = vadd.f32 %v952, %v954
        %v1007 = vadd.f32 %v1006, %v956
        %v1008 = vadd.f32 %v1007, %v958
        %v1009 = vadd.f32 %v1008, %v960
        %v1010 = vadd.f32 %v1009, %v962
        %v1011 = vadd.f32 %v1010, %v964
        %v1012 = vadd.f32 %v1011, %v966
        %v1013 = vrot.slane %v1012, 4
        %v1014 = vadd.f32 %v1012, %v1013
        %v1015 = vrot.slane %v1014, 2
        %v1016 = vadd.f32 %v1014, %v1015
        %v1017 = vrot.slane %v1016, 1
        %v1018 = vadd.f32 %v1016, %v1017
        %vm1019 = vcmask 1040384
        %v1020 = vsel %vm1019, %v979, %v1005
        %v1021 = vsel %vm1019, %v992, %v1018
        %v1024 = vcombine.low %v1020, %v1021
        %v1026 = vunpack.c.l.s4 1983009808
        %v1027 = vunpack.c.0.s8 %v1026
        %v1028 = vlaneseq
        %v1029 = vshrl.u32 %v1028, 7
        %v1030 = vsub.s32 %v1027, %v1029
        %v1031 = vrot.slane %v1024, %v1030
        %v1033 = vadd.f32 %v950, %v1031
        %1034 = vst [vmem:[%s398] sm:$0xf] %v1033
      $region56: #{conv_func_cgcnn.5} parent=47 // pred_fallthru
        _
      %p1035 = scmp.gt.s32.totalorder %s945, 480
      // Predicated region
      $region57: #{conv_func_cgcnn.5} parent=47 // pred_check
        %p1036 = pneg %p1035
      $region58: #{conv_func_cgcnn.5} parent=47 // pred_check_branch
        %1038 = sbr.rel (%p1036) target = $region60
      $region59: #{conv_func_cgcnn.5} parent=47 // pred_region
        %v1039 = vlaneseq
        %v1040 = vshrl.u32 %v1039, 7
        %v1041 = vadd.s32 %v1040, 8
        %v1042 = vadd.s32 %v1040, 16
        %v1043 = vadd.s32 %v1040, 24
        %v1044 = vadd.s32 %v1040, 32
        %v1045 = vadd.s32 %v1040, 40
        %v1046 = vadd.s32 %v1040, 48
        %v1047 = vadd.s32 %v1040, 56
        %s1048 = smul.u32 %s943, 64
        %s1049 = ssub.s32 480, %s1048
        %v1050 = vstv %s1049
        %vm1051 = vcmp.lt.s32.totalorder %v1040, %v1050
        %vm1052 = vcmp.lt.s32.totalorder %v1041, %v1050
        %vm1053 = vcmp.lt.s32.totalorder %v1042, %v1050
        %vm1054 = vcmp.lt.s32.totalorder %v1043, %v1050
        %vm1055 = vcmp.lt.s32.totalorder %v1044, %v1050
        %vm1056 = vcmp.lt.s32.totalorder %v1045, %v1050
        %vm1057 = vcmp.lt.s32.totalorder %v1046, %v1050
        %vm1058 = vcmp.lt.s32.totalorder %v1047, %v1050
        %v1059 = vsel %vm1051, 1, 0
        %v1060 = vsel %vm1052, 1, 0
        %v1061 = vsel %vm1053, 1, 0
        %v1062 = vsel %vm1054, 1, 0
        %v1063 = vsel %vm1055, 1, 0
        %v1064 = vsel %vm1056, 1, 0
        %v1065 = vsel %vm1057, 1, 0
        %v1066 = vsel %vm1058, 1, 0
        %v1067 = vcvt.s32.f32 %v1059
        %v1068 = vcvt.s32.f32 %v1060
        %v1069 = vcvt.s32.f32 %v1061
        %v1070 = vcvt.s32.f32 %v1062
        %v1071 = vcvt.s32.f32 %v1063
        %v1072 = vcvt.s32.f32 %v1064
        %v1073 = vcvt.s32.f32 %v1065
        %v1074 = vcvt.s32.f32 %v1066
        %v1075 = vmul.f32 %v848, %v1067
        %v1076 = vmul.f32 %v850, %v1067
        %v1077 = vmul.f32 %v852, %v1068
        %v1078 = vmul.f32 %v854, %v1068
        %v1079 = vmul.f32 %v858, %v1069
        %v1080 = vmul.f32 %v860, %v1069
        %v1081 = vmul.f32 %v862, %v1070
        %v1082 = vmul.f32 %v864, %v1070
        %v1083 = vmul.f32 %v868, %v1071
        %v1084 = vmul.f32 %v870, %v1071
        %v1085 = vmul.f32 %v872, %v1072
        %v1086 = vmul.f32 %v874, %v1072
        %v1087 = vmul.f32 %v878, %v1073
        %v1088 = vmul.f32 %v880, %v1073
        %v1089 = vmul.f32 %v882, %v1074
        %v1090 = vmul.f32 %v884, %v1074
        %v1091 = vld [vmem:[%s398] sm:$0xf]
        %v1092 = vmul.f32 %v1075, %v848
        %v1093 = vmul.f32 %v1076, %v850
        %v1094 = vmul.f32 %v1077, %v852
        %v1095 = vmul.f32 %v1078, %v854
        %v1096 = vmul.f32 %v1079, %v858
        %v1097 = vmul.f32 %v1080, %v860
        %v1098 = vmul.f32 %v1081, %v862
        %v1099 = vmul.f32 %v1082, %v864
        %v1100 = vmul.f32 %v1083, %v868
        %v1101 = vmul.f32 %v1084, %v870
        %v1102 = vmul.f32 %v1085, %v872
        %v1103 = vmul.f32 %v1086, %v874
        %v1104 = vmul.f32 %v1087, %v878
        %v1105 = vmul.f32 %v1088, %v880
        %v1106 = vmul.f32 %v1089, %v882
        %v1107 = vmul.f32 %v1090, %v884
        %v1108 = vadd.f32 %v1075, %v1077
        %v1109 = vadd.f32 %v1108, %v1079
        %v1110 = vadd.f32 %v1109, %v1081
        %v1111 = vadd.f32 %v1110, %v1083
        %v1112 = vadd.f32 %v1111, %v1085
        %v1113 = vadd.f32 %v1112, %v1087
        %v1114 = vadd.f32 %v1113, %v1089
        %v1115 = vrot.slane %v1114, 4
        %v1116 = vadd.f32 %v1114, %v1115
        %v1117 = vrot.slane %v1116, 2
        %v1118 = vadd.f32 %v1116, %v1117
        %v1119 = vrot.slane %v1118, 1
        %v1120 = vadd.f32 %v1118, %v1119
        %v1121 = vadd.f32 %v1076, %v1078
        %v1122 = vadd.f32 %v1121, %v1080
        %v1123 = vadd.f32 %v1122, %v1082
        %v1124 = vadd.f32 %v1123, %v1084
        %v1125 = vadd.f32 %v1124, %v1086
        %v1126 = vadd.f32 %v1125, %v1088
        %v1127 = vadd.f32 %v1126, %v1090
        %v1128 = vrot.slane %v1127, 4
        %v1129 = vadd.f32 %v1127, %v1128
        %v1130 = vrot.slane %v1129, 2
        %v1131 = vadd.f32 %v1129, %v1130
        %v1132 = vrot.slane %v1131, 1
        %v1133 = vadd.f32 %v1131, %v1132
        %v1134 = vadd.f32 %v1092, %v1094
        %v1135 = vadd.f32 %v1134, %v1096
        %v1136 = vadd.f32 %v1135, %v1098
        %v1137 = vadd.f32 %v1136, %v1100
        %v1138 = vadd.f32 %v1137, %v1102
        %v1139 = vadd.f32 %v1138, %v1104
        %v1140 = vadd.f32 %v1139, %v1106
        %v1141 = vrot.slane %v1140, 4
        %v1142 = vadd.f32 %v1140, %v1141
        %v1143 = vrot.slane %v1142, 2
        %v1144 = vadd.f32 %v1142, %v1143
        %v1145 = vrot.slane %v1144, 1
        %v1146 = vadd.f32 %v1144, %v1145
        %v1147 = vadd.f32 %v1093, %v1095
        %v1148 = vadd.f32 %v1147, %v1097
        %v1149 = vadd.f32 %v1148, %v1099
        %v1150 = vadd.f32 %v1149, %v1101
        %v1151 = vadd.f32 %v1150, %v1103
        %v1152 = vadd.f32 %v1151, %v1105
        %v1153 = vadd.f32 %v1152, %v1107
        %v1154 = vrot.slane %v1153, 4
        %v1155 = vadd.f32 %v1153, %v1154
        %v1156 = vrot.slane %v1155, 2
        %v1157 = vadd.f32 %v1155, %v1156
        %v1158 = vrot.slane %v1157, 1
        %v1159 = vadd.f32 %v1157, %v1158
        %vm1160 = vcmask 1040384
        %v1161 = vsel %vm1160, %v1120, %v1146
        %v1162 = vsel %vm1160, %v1133, %v1159
        %v1165 = vcombine.low %v1161, %v1162
        %v1167 = vunpack.c.l.s4 1983009808
        %v1168 = vunpack.c.0.s8 %v1167
        %v1169 = vlaneseq
        %v1170 = vshrl.u32 %v1169, 7
        %v1171 = vsub.s32 %v1168, %v1170
        %v1172 = vrot.slane %v1165, %v1171
        %v1174 = vadd.f32 %v1091, %v1172
        %1175 = vst [vmem:[%s398] sm:$0xf] %v1174
      $region60: #{conv_func_cgcnn.5} parent=47 // pred_fallthru
        _
      %s1176 = smul.u32 %s24, 4
      %s1177 = sadd.s32 %s1176, %s25
      %s1178 = smul.u32 8, %s1177
      %p1179 = scmp.lt.s32.totalorder %s1178, 63
      %s1180 = scalar_select %p1179, %s1178, 63
      %s1181 = smul.addr %s1180, 2
      %s1182 = smul.addr %s1181, 4
      %s1183 = scalar_lea.vmem %s7, %s1182
      %p1184 = scmp.lt.s32.totalorder %s24, 1
      %s1185 = scalar_select %p1184, %s24, 1
      %s1186 = smul.addr %s1185, 2
      %s1187 = smul.addr %s1186, 2
      %s1188 = scalar_lea.vmem %s8, %s1187
      // Predicated region
      $region61: #{conv_func_cgcnn.5} parent=47 // pred_check
        %p1189 = pneg %p219
      $region62: #{conv_func_cgcnn.5} parent=47 // pred_check_branch
        %1191 = sbr.rel (%p1189) target = $region64
      $region63: #{conv_func_cgcnn.5} parent=47 // pred_region
        %s1192 = smul.u32 %s24, 4
        %s1193 = sadd.s32 %s1192, %s25
        %s1194 = smul.u32 8, %s1193
      $region64: #{conv_func_cgcnn.5} parent=47 // pred_fallthru
        _
      // Predicated region
      $region65: #{conv_func_cgcnn.5} parent=47 // pred_check
        %p1195 = pneg %p245
      $region66: #{conv_func_cgcnn.5} parent=47 // pred_check_branch
        %1197 = sbr.rel (%p1195) target = $region68
      $region67: #{conv_func_cgcnn.5} parent=47 // pred_region
        _
      $region68: #{conv_func_cgcnn.5} parent=47 // pred_fallthru
        _
    $region48: #{conv_func_cgcnn.5} parent=5 // pred_fallthru
      _
    %p1198 = scmp.le.s32.totalorder 2, %s15
    // Predicated region
    $region69: #{conv_func_cgcnn.5} parent=5 // pred_check
      %p1199 = pneg %p1198
    $region70: #{conv_func_cgcnn.5} parent=5 // pred_check_branch
      %1201 = sbr.rel (%p1199) target = $region72
    $region71: #{conv_func_cgcnn.5} parent=5 // pred_region
      %s1202 = ssub.s32 %s15, 2
      // Predicated region
      $region73: #{conv_func_cgcnn.5} parent=71 // pred_check
        %p1203 = pneg %p225
      $region74: #{conv_func_cgcnn.5} parent=71 // pred_check_branch
        %1205 = sbr.rel (%p1203) target = $region76
      $region75: #{conv_func_cgcnn.5} parent=71 // pred_region
        %s1206 = smul.u32 %s26, 4
        %s1207 = sadd.s32 %s1206, %s27
        %s1208 = smul.u32 8, %s1207
        %p1209 = scmp.lt.s32.totalorder %s1208, 63
        %s1210 = scalar_select %p1209, %s1208, 63
        %s1211 = smul.addr %s1210, 2
        %s1212 = smul.addr %s1211, 4
        %s1213 = scalar_lea.vmem %s7, %s1212
      $region76: #{conv_func_cgcnn.5} parent=71 // pred_fallthru
        _
      // Predicated region
      $region77: #{conv_func_cgcnn.5} parent=71 // pred_check
        %p1214 = pneg %p251
      $region78: #{conv_func_cgcnn.5} parent=71 // pred_check_branch
        %1216 = sbr.rel (%p1214) target = $region80
      $region79: #{conv_func_cgcnn.5} parent=71 // pred_region
        %p1217 = scmp.lt.s32.totalorder %s26, 1
        %s1218 = scalar_select %p1217, %s26, 1
        %s1219 = smul.addr %s1218, 2
        %s1220 = smul.addr %s1219, 2
        %s1221 = scalar_lea.vmem %s8, %s1220
      $region80: #{conv_func_cgcnn.5} parent=71 // pred_fallthru
        _
    $region72: #{conv_func_cgcnn.5} parent=5 // pred_fallthru
      _
  $region6: #{conv_func_cgcnn.5} parent=0 // loop_footer
    %s19 = sadd.s32 1, %s15
  $region7: #{conv_func_cgcnn.5} parent=0 // loop_footer_branch
    %14 = sbr.rel target = $region3
  $region8: #{conv_func_cgcnn.5} parent=0 // loop_exit
    _

// kernel: conv_func_cgcnn.6
$region0: #{conv_func_cgcnn.6}
  #allocation0 [shape = 'u32[]', space=smem, size = 0x4, offset = 0x4, fixed_abs, tag = 'smem constant byte address 0x4 - core index']
  #allocation1 [shape = 'u32[144,128]{1,0:T(1,128)}', space=vmem, size = 0x12000, scoped, tag = 'internal scratch']
  %s0 = inlined_call_operand.vmem [shape: bf16[512,256], index: 0, kind: input, shape index: {}]
  %s1 = inlined_call_operand.vmem [shape: s32[512,1], index: 1, kind: input, shape index: {}]
  %s2 = inlined_call_operand.vmem [shape: f32[2,2,256], index: 2, kind: input, shape index: {}]
  %s3 = inlined_call_operand.vmem [shape: f32[1,256], index: 3, kind: input, shape index: {}]
  %s4 = inlined_call_operand.vmem [shape: f32[1,256], index: 4, kind: input, shape index: {}]
  %s5 = inlined_call_operand.vmem [shape: f32[256,128], index: 5, kind: output, shape index: {0}]
  %s6 = inlined_call_operand.vmem [shape: f32[2,2,128], index: 6, kind: output, shape index: {1}]
  %7 = xla_tuple %s5, %s6
  %s8 = sld [smem:[#allocation0]]
  $region69: #{conv_func_cgcnn.6} parent=0
    _
  %s10 = ssub.s32 1, %s8
  %s11 = scalar_select 0, %s10, %s8
  loop: start=0, step=1, limit=18
  $region2: #{conv_func_cgcnn.6} parent=0 // loop_pre_header
    _
  $region3: #{conv_func_cgcnn.6} parent=0 // loop_header
    %s13 = sphi 0, %s17
    %p14 = scmp.ge.s32.totalorder %s13, 18
    %s20 = sphi 0, %s32
    %s21 = sphi 0, %s28
    %s22 = sphi 0, %s20
    %s23 = sphi 0, %s21
    %s24 = sphi 0, %s22
    %s25 = sphi 0, %s23
    %s35 = sphi 0, %s37
    %s38 = sphi 0, %s35
    %s39 = sphi 0, %s38
    %s55 = sphi 0, %s39
    %s61 = sphi 0, %s63
    %s64 = sphi 0, %s61
    %s65 = sphi 0, %s64
    %s81 = sphi 0, %s65
    %s85 = sphi 0, %s85
    %s87 = sphi 0, %s85
    %s88 = sphi 0, %s87
    %s102 = sphi 0, %s88
    %s106 = sphi 0, %s106
    %s108 = sphi 0, %s106
    %s109 = sphi 0, %s108
    %s123 = sphi 0, %s109
    %s127 = sphi 0, %s127
    %s129 = sphi 0, %s127
    %s130 = sphi 0, %s129
    %s144 = sphi 0, %s130
    %s150 = sphi 0, %s152
    %s153 = sphi 0, %s150
    %s154 = sphi 0, %s153
    %s170 = sphi 0, %s154
    %s176 = sphi 0, %s178
    %s179 = sphi 0, %s176
    %s180 = sphi 0, %s179
    %s196 = sphi 0, %s180
  $region4: #{conv_func_cgcnn.6} parent=0 // loop_header_branch
    %16 = sbr.rel (%p14) target = $region8
  $region5: #{conv_func_cgcnn.6} parent=0 // loop_body
    %s18 = ssub.s32 %s13, 1
    %s19 = ssub.s32 %s13, 2
    %s26 = sadd.s32 1, %s21
    %p27 = scmp.ge.s32.totalorder %s26, 8
    %s28 = scalar_select %p27, 0, %s26
    %s29 = sadd.s32 1, %s20
    %s30 = scalar_select %p27, %s29, %s20
    %p31 = scmp.ge.s32.totalorder %s30, 2
    %s32 = scalar_select %p31, 0, %s30
    %s33 = ssub.s32 %s21, %s28
    %p34 = scmp.eq.s32.totalorder %s33, 0
    %s36 = sadd.s32 %s35, 1
    %s37 = scalar_select %p34, %s35, %s36
    %p40 = pneg %p34
    %p41 = scmp.eq.s32.totalorder %s13, 15
    %p42 = por %p40, %p41
    %p43 = scmp.ne.s32.totalorder %s35, %s38
    %p44 = scmp.eq.s32.totalorder %s13, 0
    %p45 = por %p43, %p44
    %p46 = scmp.ne.s32.totalorder %s35, %s38
    %p47 = scmp.eq.s32.totalorder %s18, 15
    %p48 = por %p46, %p47
    %p49 = scmp.ne.s32.totalorder %s38, %s39
    %p50 = scmp.eq.s32.totalorder %s18, 0
    %p51 = por %p49, %p50
    %p52 = scmp.ne.s32.totalorder %s38, %s39
    %p53 = scmp.eq.s32.totalorder %s19, 15
    %p54 = por %p52, %p53
    %p56 = scmp.ne.s32.totalorder %s39, %s55
    %p57 = scmp.eq.s32.totalorder %s19, 0
    %p58 = por %p56, %p57
    %s59 = ssub.s32 %s21, %s28
    %p60 = scmp.eq.s32.totalorder %s59, 0
    %s62 = sadd.s32 %s61, 1
    %s63 = scalar_select %p60, %s61, %s62
    %p66 = pneg %p60
    %p67 = scmp.eq.s32.totalorder %s13, 15
    %p68 = por %p66, %p67
    %p69 = scmp.ne.s32.totalorder %s61, %s64
    %p70 = scmp.eq.s32.totalorder %s13, 0
    %p71 = por %p69, %p70
    %p72 = scmp.ne.s32.totalorder %s61, %s64
    %p73 = scmp.eq.s32.totalorder %s18, 15
    %p74 = por %p72, %p73
    %p75 = scmp.ne.s32.totalorder %s64, %s65
    %p76 = scmp.eq.s32.totalorder %s18, 0
    %p77 = por %p75, %p76
    %p78 = scmp.ne.s32.totalorder %s64, %s65
    %p79 = scmp.eq.s32.totalorder %s19, 15
    %p80 = por %p78, %p79
    %p82 = scmp.ne.s32.totalorder %s65, %s81
    %p83 = scmp.eq.s32.totalorder %s19, 0
    %p84 = por %p82, %p83
    %s86 = sadd.s32 %s85, 1
    %p89 = scmp.eq.s32.totalorder %s13, 15
    %p90 = scmp.ne.s32.totalorder %s85, %s87
    %p91 = scmp.eq.s32.totalorder %s13, 0
    %p92 = por %p90, %p91
    %p93 = scmp.ne.s32.totalorder %s85, %s87
    %p94 = scmp.eq.s32.totalorder %s18, 15
    %p95 = por %p93, %p94
    %p96 = scmp.ne.s32.totalorder %s87, %s88
    %p97 = scmp.eq.s32.totalorder %s18, 0
    %p98 = por %p96, %p97
    %p99 = scmp.ne.s32.totalorder %s87, %s88
    %p100 = scmp.eq.s32.totalorder %s19, 15
    %p101 = por %p99, %p100
    %p103 = scmp.ne.s32.totalorder %s88, %s102
    %p104 = scmp.eq.s32.totalorder %s19, 0
    %p105 = por %p103, %p104
    %s107 = sadd.s32 %s106, 1
    %p110 = scmp.eq.s32.totalorder %s13, 15
    %p111 = scmp.ne.s32.totalorder %s106, %s108
    %p112 = scmp.eq.s32.totalorder %s13, 0
    %p113 = por %p111, %p112
    %p114 = scmp.ne.s32.totalorder %s106, %s108
    %p115 = scmp.eq.s32.totalorder %s18, 15
    %p116 = por %p114, %p115
    %p117 = scmp.ne.s32.totalorder %s108, %s109
    %p118 = scmp.eq.s32.totalorder %s18, 0
    %p119 = por %p117, %p118
    %p120 = scmp.ne.s32.totalorder %s108, %s109
    %p121 = scmp.eq.s32.totalorder %s19, 15
    %p122 = por %p120, %p121
    %p124 = scmp.ne.s32.totalorder %s109, %s123
    %p125 = scmp.eq.s32.totalorder %s19, 0
    %p126 = por %p124, %p125
    %s128 = sadd.s32 %s127, 1
    %p131 = scmp.eq.s32.totalorder %s13, 15
    %p132 = scmp.ne.s32.totalorder %s127, %s129
    %p133 = scmp.eq.s32.totalorder %s13, 0
    %p134 = por %p132, %p133
    %p135 = scmp.ne.s32.totalorder %s127, %s129
    %p136 = scmp.eq.s32.totalorder %s18, 15
    %p137 = por %p135, %p136
    %p138 = scmp.ne.s32.totalorder %s129, %s130
    %p139 = scmp.eq.s32.totalorder %s18, 0
    %p140 = por %p138, %p139
    %p141 = scmp.ne.s32.totalorder %s129, %s130
    %p142 = scmp.eq.s32.totalorder %s19, 15
    %p143 = por %p141, %p142
    %p145 = scmp.ne.s32.totalorder %s130, %s144
    %p146 = scmp.eq.s32.totalorder %s19, 0
    %p147 = por %p145, %p146
    %s148 = ssub.s32 %s20, %s32
    %p149 = scmp.eq.s32.totalorder %s148, 0
    %s151 = sadd.s32 %s150, 1
    %s152 = scalar_select %p149, %s150, %s151
    %p155 = pneg %p149
    %p156 = scmp.eq.s32.totalorder %s13, 15
    %p157 = por %p155, %p156
    %p158 = scmp.ne.s32.totalorder %s150, %s153
    %p159 = scmp.eq.s32.totalorder %s13, 0
    %p160 = por %p158, %p159
    %p161 = scmp.ne.s32.totalorder %s150, %s153
    %p162 = scmp.eq.s32.totalorder %s18, 15
    %p163 = por %p161, %p162
    %p164 = scmp.ne.s32.totalorder %s153, %s154
    %p165 = scmp.eq.s32.totalorder %s18, 0
    %p166 = por %p164, %p165
    %p167 = scmp.ne.s32.totalorder %s153, %s154
    %p168 = scmp.eq.s32.totalorder %s19, 15
    %p169 = por %p167, %p168
    %p171 = scmp.ne.s32.totalorder %s154, %s170
    %p172 = scmp.eq.s32.totalorder %s19, 0
    %p173 = por %p171, %p172
    %s174 = ssub.s32 %s20, %s32
    %p175 = scmp.eq.s32.totalorder %s174, 0
    %s177 = sadd.s32 %s176, 1
    %s178 = scalar_select %p175, %s176, %s177
    %p181 = pneg %p175
    %p182 = scmp.eq.s32.totalorder %s13, 15
    %p183 = por %p181, %p182
    %p184 = scmp.ne.s32.totalorder %s176, %s179
    %p185 = scmp.eq.s32.totalorder %s13, 0
    %p186 = por %p184, %p185
    %p187 = scmp.ne.s32.totalorder %s176, %s179
    %p188 = scmp.eq.s32.totalorder %s18, 15
    %p189 = por %p187, %p188
    %p190 = scmp.ne.s32.totalorder %s179, %s180
    %p191 = scmp.eq.s32.totalorder %s18, 0
    %p192 = por %p190, %p191
    %p193 = scmp.ne.s32.totalorder %s179, %s180
    %p194 = scmp.eq.s32.totalorder %s19, 15
    %p195 = por %p193, %p194
    %p197 = scmp.ne.s32.totalorder %s180, %s196
    %p198 = scmp.eq.s32.totalorder %s19, 0
    %p199 = por %p197, %p198
    %p200 = scmp.le.s32.totalorder 1, %s13
    %p201 = scmp.lt.s32.totalorder %s13, 17
    %p202 = pnand %p200, %p201
    %p203 = pneg %p202
    // Predicated region
    $region9: #{conv_func_cgcnn.6} parent=5 // pred_check
      _
    $region10: #{conv_func_cgcnn.6} parent=5 // pred_check_branch
      %205 = sbr.rel (%p202) target = $region12
    $region11: #{conv_func_cgcnn.6} parent=5 // pred_region
      %s206 = ssub.s32 %s13, 1
      // Predicated region
      $region13: #{conv_func_cgcnn.6} parent=11 // pred_check
        %p207 = pneg %p98
      $region14: #{conv_func_cgcnn.6} parent=11 // pred_check_branch
        %209 = sbr.rel (%p207) target = $region16
      $region15: #{conv_func_cgcnn.6} parent=11 // pred_region
        _
      $region16: #{conv_func_cgcnn.6} parent=11 // pred_fallthru
        _
      // Predicated region
      $region17: #{conv_func_cgcnn.6} parent=11 // pred_check
        %p210 = pneg %p119
      $region18: #{conv_func_cgcnn.6} parent=11 // pred_check_branch
        %212 = sbr.rel (%p210) target = $region20
      $region19: #{conv_func_cgcnn.6} parent=11 // pred_region
        _
      $region20: #{conv_func_cgcnn.6} parent=11 // pred_fallthru
        _
      // Predicated region
      $region21: #{conv_func_cgcnn.6} parent=11 // pred_check
        %p213 = pneg %p140
      $region22: #{conv_func_cgcnn.6} parent=11 // pred_check_branch
        %215 = sbr.rel (%p213) target = $region24
      $region23: #{conv_func_cgcnn.6} parent=11 // pred_region
        _
      $region24: #{conv_func_cgcnn.6} parent=11 // pred_fallthru
        _
    $region12: #{conv_func_cgcnn.6} parent=5 // pred_fallthru
      _
    %p216 = scmp.lt.s32.totalorder %s13, 16
    // Predicated region
    $region25: #{conv_func_cgcnn.6} parent=5 // pred_check
      %p217 = pneg %p216
    $region26: #{conv_func_cgcnn.6} parent=5 // pred_check_branch
      %219 = sbr.rel (%p217) target = $region28
    $region27: #{conv_func_cgcnn.6} parent=5 // pred_region
      // Predicated region
      $region29: #{conv_func_cgcnn.6} parent=27 // pred_check
        %p220 = pneg %p45
      $region30: #{conv_func_cgcnn.6} parent=27 // pred_check_branch
        %222 = sbr.rel (%p220) target = $region32
      $region31: #{conv_func_cgcnn.6} parent=27 // pred_region
        %s223 = smul.u32 8, %s21
        %p224 = scmp.lt.s32.totalorder %s223, 63
        %s225 = scalar_select %p224, %s223, 63
        %s226 = smul.addr %s225, 2
        %s227 = smul.addr %s226, 4
        %s228 = scalar_lea.vmem %s0, %s227
        %s229 = smul.u32 8, %s21
      $region32: #{conv_func_cgcnn.6} parent=27 // pred_fallthru
        _
      // Predicated region
      $region33: #{conv_func_cgcnn.6} parent=27 // pred_check
        %p230 = pneg %p71
      $region34: #{conv_func_cgcnn.6} parent=27 // pred_check_branch
        %232 = sbr.rel (%p230) target = $region36
      $region35: #{conv_func_cgcnn.6} parent=27 // pred_region
        %s233 = smul.u32 8, %s21
        %p234 = scmp.lt.s32.totalorder %s233, 63
        %s235 = scalar_select %p234, %s233, 63
        %s236 = smul.addr %s235, 8
        %s237 = scalar_lea.vmem %s1, %s236
        %s238 = smul.u32 8, %s21
      $region36: #{conv_func_cgcnn.6} parent=27 // pred_fallthru
        _
    $region28: #{conv_func_cgcnn.6} parent=5 // pred_fallthru
      _
    %p239 = scmp.le.s32.totalorder 1, %s13
    %p240 = scmp.lt.s32.totalorder %s13, 17
    %p241 = pnand %p239, %p240
    %p242 = pneg %p241
    // Predicated region
    $region37: #{conv_func_cgcnn.6} parent=5 // pred_check
      _
    $region38: #{conv_func_cgcnn.6} parent=5 // pred_check_branch
      %244 = sbr.rel (%p241) target = $region40
    $region39: #{conv_func_cgcnn.6} parent=5 // pred_region
      %s245 = ssub.s32 %s13, 1
      %s246 = smul.u32 8, %s23
      %p247 = scmp.lt.s32.totalorder %s246, 63
      %s248 = scalar_select %p247, %s246, 63
      %s249 = smul.addr %s248, 2
      %s250 = smul.addr %s249, 4
      %s251 = scalar_lea.vmem %s0, %s250
      %p252 = pneg %p51
      %p253 = pneg %p48
      %s254 = smul.u32 8, %s23
      %p255 = scmp.lt.s32.totalorder %s254, 63
      %s256 = scalar_select %p255, %s254, 63
      %s257 = smul.addr %s256, 8
      %s258 = scalar_lea.vmem %s1, %s257
      %p259 = pneg %p77
      %p260 = pneg %p74
      %p261 = pneg %p98
      %p262 = pneg %p95
      %p263 = pneg %p119
      %p264 = pneg %p116
      %p265 = pneg %p140
      %p266 = pneg %p137
      %p267 = pneg %p166
      %p268 = pneg %p163
      %s269 = smul.u32 16, %s22
      %p270 = scmp.lt.s32.totalorder %s269, 31
      %s271 = scalar_select %p270, %s269, 31
      %s272 = smul.addr %s271, 8
      %s273 = scalar_lea.vmem %s5, %s272
      %p274 = pneg %p192
      %p275 = pneg %p189
      %p276 = scmp.lt.s32.totalorder %s22, 1
      %s277 = scalar_select %p276, %s22, 1
      %s278 = smul.addr %s277, 2
      %s279 = scalar_lea.vmem %s6, %s278
      %s280 = smul.u32 8, %s23
      %p281 = scmp.lt.s32.totalorder %s280, 63
      %s282 = scalar_select %p281, %s280, 63
      %s283 = smul.addr %s282, 2
      %s284 = smul.addr %s283, 4
      %s285 = scalar_lea.vmem %s0, %s284
      %s286 = smul.u32 8, %s23
      %s287 = smul.u32 8, %s23
      %p288 = scmp.lt.s32.totalorder %s287, 63
      %s289 = scalar_select %p288, %s287, 63
      %s290 = smul.addr %s289, 8
      %s291 = scalar_lea.vmem %s1, %s290
      %s292 = smul.u32 8, %s23
      %s293 = smul.u32 16, %s22
      %p294 = scmp.lt.s32.totalorder %s293, 31
      %s295 = scalar_select %p294, %s293, 31
      %s296 = smul.addr %s295, 8
      %s297 = scalar_lea.vmem %s5, %s296
      %s298 = smul.u32 16, %s22
      %p299 = scmp.lt.s32.totalorder %s22, 1
      %s300 = scalar_select %p299, %s22, 1
      %s301 = smul.addr %s300, 2
      %s302 = scalar_lea.vmem %s6, %s301
      %p304 = scmp.eq.s32.totalorder %s23, 0
      // Predicated region
      $region41: #{conv_func_cgcnn.6} parent=39 // pred_check
        %p305 = pneg %p304
      $region42: #{conv_func_cgcnn.6} parent=39 // pred_check_branch
        %307 = sbr.rel (%p305) target = $region44
      $region43: #{conv_func_cgcnn.6} parent=39 // pred_region
        %308 = vst [vmem:[%s297] sm:$0xff] 0.0
        %309 = vst [vmem:[%s297 + $0x8] sm:$0xff] 0.0
        %310 = vst [vmem:[%s297 + $0x10] sm:$0xff] 0.0
        %311 = vst [vmem:[%s297 + $0x18] sm:$0xff] 0.0
        %312 = vst [vmem:[%s297 + $0x20] sm:$0xff] 0.0
        %313 = vst [vmem:[%s297 + $0x28] sm:$0xff] 0.0
        %314 = vst [vmem:[%s297 + $0x30] sm:$0xff] 0.0
        %315 = vst [vmem:[%s297 + $0x38] sm:$0xff] 0.0
        %316 = vst [vmem:[%s297 + $0x40] sm:$0xff] 0.0
        %317 = vst [vmem:[%s297 + $0x48] sm:$0xff] 0.0
        %318 = vst [vmem:[%s297 + $0x50] sm:$0xff] 0.0
        %319 = vst [vmem:[%s297 + $0x58] sm:$0xff] 0.0
        %320 = vst [vmem:[%s297 + $0x60] sm:$0xff] 0.0
        %321 = vst [vmem:[%s297 + $0x68] sm:$0xff] 0.0
        %322 = vst [vmem:[%s297 + $0x70] sm:$0xff] 0.0
        %323 = vst [vmem:[%s297 + $0x78] sm:$0xff] 0.0
      $region44: #{conv_func_cgcnn.6} parent=39 // pred_fallthru
        _
      %v324 = vld [vmem:[%s2] sm:$0xf]
      %s325 = scalar_lea.vmem %s2, 4
      %v326 = vld [vmem:[%s325] sm:$0xf]
      %v327 = vadd.f32 %v324, %v326
      %v328 = vld [vmem:[%s285] sm:$0xff]
      %v329 = vld [vmem:[%s285 + $0x8] sm:$0xff]
      %v330 = vld [vmem:[%s285 + $0x10] sm:$0xff]
      %v331 = vld [vmem:[%s285 + $0x18] sm:$0xff]
      %v332 = vld [vmem:[%s285 + $0x20] sm:$0xff]
      %v333 = vld [vmem:[%s285 + $0x28] sm:$0xff]
      %v334 = vld [vmem:[%s285 + $0x30] sm:$0xff]
      %v335 = vld [vmem:[%s285 + $0x38] sm:$0xff]
      %v336 = vunpack.c.l.bf16 %v328
      %v337 = vunpack.c.h.bf16 %v328
      %v338 = vunpack.c.l.bf16 %v329
      %v339 = vunpack.c.h.bf16 %v329
      %v340 = vunpack.c.l.bf16 %v330
      %v341 = vunpack.c.h.bf16 %v330
      %v342 = vunpack.c.l.bf16 %v331
      %v343 = vunpack.c.h.bf16 %v331
      %v344 = vunpack.c.l.bf16 %v332
      %v345 = vunpack.c.h.bf16 %v332
      %v346 = vunpack.c.l.bf16 %v333
      %v347 = vunpack.c.h.bf16 %v333
      %v348 = vunpack.c.l.bf16 %v334
      %v349 = vunpack.c.h.bf16 %v334
      %v350 = vunpack.c.l.bf16 %v335
      %v351 = vunpack.c.h.bf16 %v335
      %v352 = vld [vmem:[%s3] sm:$0x3]
      %v353 = vld [vmem:[%s4] sm:$0x3]
      %v354 = vmul.f32 %v327, 0.0020833334
      %v355 = vmul.f32 %v354, %v354
      %v357 = vrot.slane %v355, 7
      %v359 = vsub.f32 %v354, %v357
      %v360 = vmax.f32 %v359, 0.0
      %v362 = vlaneseq
      %v363 = vshrl.u32 %v362, 7
      %v364 = vsub.s32 0, %v363
      %v365 = vrot.slane %v354, %v364
      %v366 = vlaneseq
      %v367 = vshrl.u32 %v366, 7
      %v368 = vsub.s32 2, %v367
      %v369 = vrot.slane %v354, %v368
      %v372 = vlaneseq
      %v373 = vshrl.u32 %v372, 7
      %v374 = vsub.s32 0, %v373
      %v375 = vrot.slane %v365, %v374
      %v376 = vlaneseq
      %v377 = vshrl.u32 %v376, 7
      %v378 = vsub.s32 0, %v377
      %v379 = vrot.slane %v369, %v378
      %v380 = vsub.f32 %v336, %v375
      %v381 = vsub.f32 %v337, %v379
      %v382 = vsub.f32 %v338, %v375
      %v383 = vsub.f32 %v339, %v379
      %v384 = vsub.f32 %v340, %v375
      %v385 = vsub.f32 %v341, %v379
      %v386 = vsub.f32 %v342, %v375
      %v387 = vsub.f32 %v343, %v379
      %v388 = vsub.f32 %v344, %v375
      %v389 = vsub.f32 %v345, %v379
      %v390 = vsub.f32 %v346, %v375
      %v391 = vsub.f32 %v347, %v379
      %v392 = vsub.f32 %v348, %v375
      %v393 = vsub.f32 %v349, %v379
      %v394 = vsub.f32 %v350, %v375
      %v395 = vsub.f32 %v351, %v379
      %v396 = vadd.f32 %v360, 1e-05
      %v397 = vrsqrt.pop %v396
      %v399 = vlaneseq
      %v400 = vshrl.u32 %v399, 7
      %v401 = vsub.s32 1, %v400
      %v402 = vrot.slane %v397, %v401
      %v403 = vlaneseq
      %v404 = vshrl.u32 %v403, 7
      %v405 = vsub.s32 3, %v404
      %v406 = vrot.slane %v397, %v405
      %v409 = vlaneseq
      %v410 = vshrl.u32 %v409, 7
      %v411 = vsub.s32 1, %v410
      %v412 = vrot.slane %v402, %v411
      %v413 = vlaneseq
      %v414 = vshrl.u32 %v413, 7
      %v415 = vsub.s32 1, %v414
      %v416 = vrot.slane %v406, %v415
      %v417 = vmul.f32 %v380, %v412
      %v418 = vmul.f32 %v381, %v416
      %v419 = vmul.f32 %v382, %v412
      %v420 = vmul.f32 %v383, %v416
      %v421 = vmul.f32 %v384, %v412
      %v422 = vmul.f32 %v385, %v416
      %v423 = vmul.f32 %v386, %v412
      %v424 = vmul.f32 %v387, %v416
      %v425 = vmul.f32 %v388, %v412
      %v426 = vmul.f32 %v389, %v416
      %v427 = vmul.f32 %v390, %v412
      %v428 = vmul.f32 %v391, %v416
      %v429 = vmul.f32 %v392, %v412
      %v430 = vmul.f32 %v393, %v416
      %v431 = vmul.f32 %v394, %v412
      %v432 = vmul.f32 %v395, %v416
      %v434 = vlaneseq
      %v435 = vshrl.u32 %v434, 7
      %v436 = vsub.s32 0, %v435
      %v437 = vrot.slane %v352, %v436
      %v438 = vlaneseq
      %v439 = vshrl.u32 %v438, 7
      %v440 = vsub.s32 1, %v439
      %v441 = vrot.slane %v352, %v440
      %v444 = vmul.f32 %v417, %v437
      %v445 = vmul.f32 %v418, %v441
      %v446 = vmul.f32 %v419, %v437
      %v447 = vmul.f32 %v420, %v441
      %v448 = vmul.f32 %v421, %v437
      %v449 = vmul.f32 %v422, %v441
      %v450 = vmul.f32 %v423, %v437
      %v451 = vmul.f32 %v424, %v441
      %v452 = vmul.f32 %v425, %v437
      %v453 = vmul.f32 %v426, %v441
      %v454 = vmul.f32 %v427, %v437
      %v455 = vmul.f32 %v428, %v441
      %v456 = vmul.f32 %v429, %v437
      %v457 = vmul.f32 %v430, %v441
      %v458 = vmul.f32 %v431, %v437
      %v459 = vmul.f32 %v432, %v441
      %v461 = vlaneseq
      %v462 = vshrl.u32 %v461, 7
      %v463 = vsub.s32 0, %v462
      %v464 = vrot.slane %v353, %v463
      %v465 = vlaneseq
      %v466 = vshrl.u32 %v465, 7
      %v467 = vsub.s32 1, %v466
      %v468 = vrot.slane %v353, %v467
      %v471 = vadd.f32 %v444, %v464
      %v472 = vadd.f32 %v445, %v468
      %v473 = vadd.f32 %v446, %v464
      %v474 = vadd.f32 %v447, %v468
      %v475 = vadd.f32 %v448, %v464
      %v476 = vadd.f32 %v449, %v468
      %v477 = vadd.f32 %v450, %v464
      %v478 = vadd.f32 %v451, %v468
      %v479 = vadd.f32 %v452, %v464
      %v480 = vadd.f32 %v453, %v468
      %v481 = vadd.f32 %v454, %v464
      %v482 = vadd.f32 %v455, %v468
      %v483 = vadd.f32 %v456, %v464
      %v484 = vadd.f32 %v457, %v468
      %v485 = vadd.f32 %v458, %v464
      %v486 = vadd.f32 %v459, %v468
      %v487 = vsub.f32 0.0, %v471
      %v488 = vsub.f32 0.0, %v473
      %v489 = vsub.f32 0.0, %v475
      %v490 = vsub.f32 0.0, %v477
      %v491 = vsub.f32 0.0, %v479
      %v492 = vsub.f32 0.0, %v481
      %v493 = vsub.f32 0.0, %v483
      %v494 = vsub.f32 0.0, %v485
      %v495 = vmul.f32 %v487, 1.442695
      %v496 = vpow.pop %v495
      %v497 = vmul.f32 %v488, 1.442695
      %v498 = vpow.pop %v497
      %v499 = vmul.f32 %v489, 1.442695
      %v500 = vpow.pop %v499
      %v501 = vmul.f32 %v490, 1.442695
      %v502 = vpow.pop %v501
      %v503 = vmul.f32 %v491, 1.442695
      %v504 = vpow.pop %v503
      %v505 = vmul.f32 %v492, 1.442695
      %v506 = vpow.pop %v505
      %v507 = vmul.f32 %v493, 1.442695
      %v508 = vpow.pop %v507
      %v509 = vmul.f32 %v494, 1.442695
      %v510 = vpow.pop %v509
      %v511 = vadd.f32 %v496, 1.0
      %v512 = vadd.f32 %v498, 1.0
      %v513 = vadd.f32 %v500, 1.0
      %v514 = vadd.f32 %v502, 1.0
      %v515 = vadd.f32 %v504, 1.0
      %v516 = vadd.f32 %v506, 1.0
      %v517 = vadd.f32 %v508, 1.0
      %v518 = vadd.f32 %v510, 1.0
      %v519 = vrcp.pop %v511
      %v520 = vmul.f32 1.0, %v519
      %v521 = vrcp.pop %v512
      %v522 = vmul.f32 1.0, %v521
      %v523 = vrcp.pop %v513
      %v524 = vmul.f32 1.0, %v523
      %v525 = vrcp.pop %v514
      %v526 = vmul.f32 1.0, %v525
      %v527 = vrcp.pop %v515
      %v528 = vmul.f32 1.0, %v527
      %v529 = vrcp.pop %v516
      %v530 = vmul.f32 1.0, %v529
      %v531 = vrcp.pop %v517
      %v532 = vmul.f32 1.0, %v531
      %v533 = vrcp.pop %v518
      %v534 = vmul.f32 1.0, %v533
      %v535 = vmul.f32 %v471, %v520
      %v536 = vmul.f32 %v473, %v522
      %v537 = vmul.f32 %v475, %v524
      %v538 = vmul.f32 %v477, %v526
      %v539 = vmul.f32 %v479, %v528
      %v540 = vmul.f32 %v481, %v530
      %v541 = vmul.f32 %v483, %v532
      %v542 = vmul.f32 %v485, %v534
      %vm543 = vcmp.gt.f32.partialorder %v472, 20.0
      %vm544 = vcmp.gt.f32.partialorder %v474, 20.0
      %vm545 = vcmp.gt.f32.partialorder %v476, 20.0
      %vm546 = vcmp.gt.f32.partialorder %v478, 20.0
      %vm547 = vcmp.gt.f32.partialorder %v480, 20.0
      %vm548 = vcmp.gt.f32.partialorder %v482, 20.0
      %vm549 = vcmp.gt.f32.partialorder %v484, 20.0
      %vm550 = vcmp.gt.f32.partialorder %v486, 20.0
      %v551 = vmin.f32 %v472, 20.0
      %v552 = vmin.f32 %v474, 20.0
      %v553 = vmin.f32 %v476, 20.0
      %v554 = vmin.f32 %v478, 20.0
      %v555 = vmin.f32 %v480, 20.0
      %v556 = vmin.f32 %v482, 20.0
      %v557 = vmin.f32 %v484, 20.0
      %v558 = vmin.f32 %v486, 20.0
      %v559 = vmul.f32 %v551, 1.442695
      %v560 = vpow.pop %v559
      %v561 = vmul.f32 %v552, 1.442695
      %v562 = vpow.pop %v561
      %v563 = vmul.f32 %v553, 1.442695
      %v564 = vpow.pop %v563
      %v565 = vmul.f32 %v554, 1.442695
      %v566 = vpow.pop %v565
      %v567 = vmul.f32 %v555, 1.442695
      %v568 = vpow.pop %v567
      %v569 = vmul.f32 %v556, 1.442695
      %v570 = vpow.pop %v569
      %v571 = vmul.f32 %v557, 1.442695
      %v572 = vpow.pop %v571
      %v573 = vmul.f32 %v558, 1.442695
      %v574 = vpow.pop %v573
      %v575 = vadd.f32 %v560, 1.0
      %v576 = vadd.f32 %v562, 1.0
      %v577 = vadd.f32 %v564, 1.0
      %v578 = vadd.f32 %v566, 1.0
      %v579 = vadd.f32 %v568, 1.0
      %v580 = vadd.f32 %v570, 1.0
      %v581 = vadd.f32 %v572, 1.0
      %v582 = vadd.f32 %v574, 1.0
      %v583 = vlog2.pop %v575
      %v584 = vmul.f32 %v583, 0.6931472
      %v585 = vlog2.pop %v576
      %v586 = vmul.f32 %v585, 0.6931472
      %v587 = vlog2.pop %v577
      %v588 = vmul.f32 %v587, 0.6931472
      %v589 = vlog2.pop %v578
      %v590 = vmul.f32 %v589, 0.6931472
      %v591 = vlog2.pop %v579
      %v592 = vmul.f32 %v591, 0.6931472
      %v593 = vlog2.pop %v580
      %v594 = vmul.f32 %v593, 0.6931472
      %v595 = vlog2.pop %v581
      %v596 = vmul.f32 %v595, 0.6931472
      %v597 = vlog2.pop %v582
      %v598 = vmul.f32 %v597, 0.6931472
      %v599 = vsel %vm543, %v472, %v584
      %v600 = vsel %vm544, %v474, %v586
      %v601 = vsel %vm545, %v476, %v588
      %v602 = vsel %vm546, %v478, %v590
      %v603 = vsel %vm547, %v480, %v592
      %v604 = vsel %vm548, %v482, %v594
      %v605 = vsel %vm549, %v484, %v596
      %v606 = vsel %vm550, %v486, %v598
      %v607 = vmul.f32 %v535, %v599
      %v608 = vmul.f32 %v536, %v600
      %v609 = vmul.f32 %v537, %v601
      %v610 = vmul.f32 %v538, %v602
      %v611 = vmul.f32 %v539, %v603
      %v612 = vmul.f32 %v540, %v604
      %v613 = vmul.f32 %v541, %v605
      %v614 = vmul.f32 %v542, %v606
      %v615 = vpack.c.bf16 %v608, %v607
      %v616 = vpack.c.bf16 %v610, %v609
      %v617 = vpack.c.bf16 %v612, %v611
      %v618 = vpack.c.bf16 %v614, %v613
      %v619 = vlaneseq
      %v620 = vand.u32 %v619, 127
      %s621 = smul.u32 %s22, 128
      %v622 = vstv %s621
      %v623 = vadd.s32 %v620, %v622
      %v624 = vld [vmem:[%s291] sm:$0xff]
      %v625 = vld [vmem:[%s291 + $0x8] sm:$0xff]
      %v626 = vld [vmem:[%s291 + $0x10] sm:$0xff]
      %v627 = vld [vmem:[%s291 + $0x18] sm:$0xff]
      %v628 = vld [vmem:[%s291 + $0x20] sm:$0xff]
      %v629 = vld [vmem:[%s291 + $0x28] sm:$0xff]
      %v630 = vld [vmem:[%s291 + $0x30] sm:$0xff]
      %v631 = vld [vmem:[%s291 + $0x38] sm:$0xff]
      %632 = vset.pattern.permute.xlu0 0
      %633 = vperm.xlu0 %632, %v624
      %v634 = vpop.permute.xlu0 %633
      %635 = vset.pattern.permute.xlu0 0
      %636 = vperm.xlu0 %635, %v625
      %v637 = vpop.permute.xlu0 %636
      %638 = vset.pattern.permute.xlu0 0
      %639 = vperm.xlu0 %638, %v626
      %v640 = vpop.permute.xlu0 %639
      %641 = vset.pattern.permute.xlu0 0
      %642 = vperm.xlu0 %641, %v627
      %v643 = vpop.permute.xlu0 %642
      %644 = vset.pattern.permute.xlu0 0
      %645 = vperm.xlu0 %644, %v628
      %v646 = vpop.permute.xlu0 %645
      %647 = vset.pattern.permute.xlu0 0
      %648 = vperm.xlu0 %647, %v629
      %v649 = vpop.permute.xlu0 %648
      %650 = vset.pattern.permute.xlu0 0
      %651 = vperm.xlu0 %650, %v630
      %v652 = vpop.permute.xlu0 %651
      %653 = vset.pattern.permute.xlu0 0
      %654 = vperm.xlu0 %653, %v631
      %v655 = vpop.permute.xlu0 %654
      %vm656 = vcmp.eq.s32.totalorder %v623, %v634
      %vm657 = vcmp.eq.s32.totalorder %v623, %v637
      %vm658 = vcmp.eq.s32.totalorder %v623, %v640
      %vm659 = vcmp.eq.s32.totalorder %v623, %v643
      %vm660 = vcmp.eq.s32.totalorder %v623, %v646
      %vm661 = vcmp.eq.s32.totalorder %v623, %v649
      %vm662 = vcmp.eq.s32.totalorder %v623, %v652
      %vm663 = vcmp.eq.s32.totalorder %v623, %v655
      %v664 = vsel %vm656, 1, 0
      %v665 = vsel %vm657, 1, 0
      %v666 = vsel %vm658, 1, 0
      %v667 = vsel %vm659, 1, 0
      %v668 = vsel %vm660, 1, 0
      %v669 = vsel %vm661, 1, 0
      %v670 = vsel %vm662, 1, 0
      %v671 = vsel %vm663, 1, 0
      %v672 = vcvt.s32.f32 %v664
      %v673 = vcvt.s32.f32 %v665
      %v674 = vcvt.s32.f32 %v666
      %v675 = vcvt.s32.f32 %v667
      %v676 = vcvt.s32.f32 %v668
      %v677 = vcvt.s32.f32 %v669
      %v678 = vcvt.s32.f32 %v670
      %v679 = vcvt.s32.f32 %v671
      %v680 = vpack.c.bf16 %v673, %v672
      %v681 = vpack.c.bf16 %v675, %v674
      %v682 = vpack.c.bf16 %v677, %v676
      %v683 = vpack.c.bf16 %v679, %v678
      %v684 = vld [vmem:[%s297] sm:$0xff]
      %v685 = vld [vmem:[%s297 + $0x8] sm:$0xff]
      %v686 = vld [vmem:[%s297 + $0x10] sm:$0xff]
      %v687 = vld [vmem:[%s297 + $0x18] sm:$0xff]
      %v688 = vld [vmem:[%s297 + $0x20] sm:$0xff]
      %v689 = vld [vmem:[%s297 + $0x28] sm:$0xff]
      %v690 = vld [vmem:[%s297 + $0x30] sm:$0xff]
      %v691 = vld [vmem:[%s297 + $0x38] sm:$0xff]
      %v692 = vld [vmem:[%s297 + $0x40] sm:$0xff]
      %v693 = vld [vmem:[%s297 + $0x48] sm:$0xff]
      %v694 = vld [vmem:[%s297 + $0x50] sm:$0xff]
      %v695 = vld [vmem:[%s297 + $0x58] sm:$0xff]
      %v696 = vld [vmem:[%s297 + $0x60] sm:$0xff]
      %v697 = vld [vmem:[%s297 + $0x68] sm:$0xff]
      %v698 = vld [vmem:[%s297 + $0x70] sm:$0xff]
      %v699 = vld [vmem:[%s297 + $0x78] sm:$0xff]
      %700 = vxpose.xlu0.c.b16.start [1/8] %v680, 128
      %701 = vxpose.xlu0.c.b16.cont [2/8] %v681, 128
      %702 = vxpose.xlu0.c.b16.cont [3/8] %v682, 128
      %703 = vxpose.xlu0.c.b16.cont [4/8] %v683, 128
      %704 = vxpose.xlu0.c.b16.cont [5/8] 0, 128
      %705 = vxpose.xlu0.c.b16.cont [6/8] 0, 128
      %706 = vxpose.xlu0.c.b16.cont [7/8] 0, 128
      %707 = vxpose.xlu0.c.b16.end [8/8] 0, 128
      %v708 = vpop.trf.xlu0
      %v709 = vpop.trf.xlu0
      %v710 = vpop.trf.xlu0
      %v711 = vpop.trf.xlu0
      %v712 = vpop.trf.xlu0
      %v713 = vpop.trf.xlu0
      %v714 = vpop.trf.xlu0
      %v715 = vpop.trf.xlu0
      %vm716 = vcmask 523264
      %v718 = vsel %vm716, %v708, 0
      %v721 = vsel %vm716, %v709, 0
      %v724 = vsel %vm716, %v710, 0
      %v727 = vsel %vm716, %v711, 0
      %v730 = vsel %vm716, %v712, 0
      %v733 = vsel %vm716, %v713, 0
      %v736 = vsel %vm716, %v714, 0
      %v739 = vsel %vm716, %v715, 0
      %741 = vmatprep.subr.bf16.mxu0 0
      %742 = vmatpush1.bf16.msra.mxu0 0
      %743 = vmatprep.subr.bf16.mxu0 0
      %744 = vmatpush1.bf16.msra.mxu0 0
      %745 = vmatprep.subr.bf16.mxu0 0
      %746 = vmatpush1.bf16.msra.mxu0 0
      %747 = vmatprep.subr.bf16.mxu0 0
      %748 = vmatpush1.bf16.msra.mxu0 0
      %749 = vmatprep.subr.bf16.mxu0 0
      %750 = vmatpush1.bf16.msra.mxu0 %v618
      %751 = vmatprep.subr.bf16.mxu0 0
      %752 = vmatpush1.bf16.msra.mxu0 %v617
      %753 = vmatprep.subr.bf16.mxu0 0
      %754 = vmatpush1.bf16.msra.mxu0 %v616
      %755 = vmatprep.subr.bf16.mxu0 0
      %756 = vmatpush1.bf16.msra.mxu0 %v615
      %757 = vmatprep.subr.bf16.mxu0 0
      %758 = vmatpush2.bf16.msra.mxu0 0
      %759 = vmatprep.subr.bf16.mxu0 0
      %760 = vmatpush2.bf16.msra.mxu0 0
      %761 = vmatprep.subr.bf16.mxu0 0
      %762 = vmatpush2.bf16.msra.mxu0 0
      %763 = vmatprep.subr.bf16.mxu0 0
      %764 = vmatpush2.bf16.msra.mxu0 0
      %765 = vmatprep.subr.bf16.mxu0 0
      %766 = vmatpush2.bf16.msra.mxu0 0
      %767 = vmatprep.subr.bf16.mxu0 0
      %768 = vmatpush2.bf16.msra.mxu0 0
      %769 = vmatprep.subr.bf16.mxu0 0
      %770 = vmatpush2.bf16.msra.mxu0 0
      %771 = vmatprep.subr.bf16.mxu0 0
      %772 = vmatpush2.bf16.msra.mxu0 0
      %773 = vmatprep.mubr.bf16.mxu0 0
      %774 = vmatmul.mubr.bf16.gmra.mxu0 %v718
      %v775 = vpop.f32.mrf.mxu0
      %v776 = vadd.f32 0.0, %v775
      %v777 = vpop.f32.mrf.mxu0
      %v778 = vpop.f32.mrf.mxu0
      %v779 = vadd.f32 0.0, %v778
      %v780 = vpop.f32.mrf.mxu0
      %781 = vmatprep.mubr.bf16.mxu0 0
      %782 = vmatmul.mubr.bf16.gmra.mxu0 %v721
      %v783 = vpop.f32.mrf.mxu0
      %v784 = vadd.f32 0.0, %v783
      %v785 = vpop.f32.mrf.mxu0
      %v786 = vpop.f32.mrf.mxu0
      %v787 = vadd.f32 0.0, %v786
      %v788 = vpop.f32.mrf.mxu0
      %789 = vmatprep.mubr.bf16.mxu0 0
      %790 = vmatmul.mubr.bf16.gmra.mxu0 %v724
      %v791 = vpop.f32.mrf.mxu0
      %v792 = vadd.f32 0.0, %v791
      %v793 = vpop.f32.mrf.mxu0
      %v794 = vpop.f32.mrf.mxu0
      %v795 = vadd.f32 0.0, %v794
      %v796 = vpop.f32.mrf.mxu0
      %797 = vmatprep.mubr.bf16.mxu0 0
      %798 = vmatmul.mubr.bf16.gmra.mxu0 %v727
      %v799 = vpop.f32.mrf.mxu0
      %v800 = vadd.f32 0.0, %v799
      %v801 = vpop.f32.mrf.mxu0
      %v802 = vpop.f32.mrf.mxu0
      %v803 = vadd.f32 0.0, %v802
      %v804 = vpop.f32.mrf.mxu0
      %805 = vmatprep.mubr.bf16.mxu0 0
      %806 = vmatmul.mubr.bf16.gmra.mxu0 %v730
      %v807 = vpop.f32.mrf.mxu0
      %v808 = vadd.f32 0.0, %v807
      %v809 = vpop.f32.mrf.mxu0
      %v810 = vpop.f32.mrf.mxu0
      %v811 = vadd.f32 0.0, %v810
      %v812 = vpop.f32.mrf.mxu0
      %813 = vmatprep.mubr.bf16.mxu0 0
      %814 = vmatmul.mubr.bf16.gmra.mxu0 %v733
      %v815 = vpop.f32.mrf.mxu0
      %v816 = vadd.f32 0.0, %v815
      %v817 = vpop.f32.mrf.mxu0
      %v818 = vpop.f32.mrf.mxu0
      %v819 = vadd.f32 0.0, %v818
      %v820 = vpop.f32.mrf.mxu0
      %821 = vmatprep.mubr.bf16.mxu0 0
      %822 = vmatmul.mubr.bf16.gmra.mxu0 %v736
      %v823 = vpop.f32.mrf.mxu0
      %v824 = vadd.f32 0.0, %v823
      %v825 = vpop.f32.mrf.mxu0
      %v826 = vpop.f32.mrf.mxu0
      %v827 = vadd.f32 0.0, %v826
      %v828 = vpop.f32.mrf.mxu0
      %829 = vmatprep.mubr.bf16.mxu0 0
      %830 = vmatmul.mubr.bf16.gmra.mxu0 %v739
      %v831 = vpop.f32.mrf.mxu0
      %v832 = vadd.f32 0.0, %v831
      %v833 = vpop.f32.mrf.mxu0
      %v834 = vpop.f32.mrf.mxu0
      %v835 = vadd.f32 0.0, %v834
      %v836 = vpop.f32.mrf.mxu0
      %837 = vdwg.mxu0
      %v838 = vadd.f32 %v684, %v776
      %v839 = vadd.f32 %v685, %v779
      %v840 = vadd.f32 %v686, %v784
      %v841 = vadd.f32 %v687, %v787
      %v842 = vadd.f32 %v688, %v792
      %v843 = vadd.f32 %v689, %v795
      %v844 = vadd.f32 %v690, %v800
      %v845 = vadd.f32 %v691, %v803
      %v846 = vadd.f32 %v692, %v808
      %v847 = vadd.f32 %v693, %v811
      %v848 = vadd.f32 %v694, %v816
      %v849 = vadd.f32 %v695, %v819
      %v850 = vadd.f32 %v696, %v824
      %v851 = vadd.f32 %v697, %v827
      %v852 = vadd.f32 %v698, %v832
      %v853 = vadd.f32 %v699, %v835
      %854 = vst [vmem:[%s297] sm:$0xff] %v838
      %855 = vst [vmem:[%s297 + $0x8] sm:$0xff] %v839
      %856 = vst [vmem:[%s297 + $0x10] sm:$0xff] %v840
      %857 = vst [vmem:[%s297 + $0x18] sm:$0xff] %v841
      %858 = vst [vmem:[%s297 + $0x20] sm:$0xff] %v842
      %859 = vst [vmem:[%s297 + $0x28] sm:$0xff] %v843
      %860 = vst [vmem:[%s297 + $0x30] sm:$0xff] %v844
      %861 = vst [vmem:[%s297 + $0x38] sm:$0xff] %v845
      %862 = vst [vmem:[%s297 + $0x40] sm:$0xff] %v846
      %863 = vst [vmem:[%s297 + $0x48] sm:$0xff] %v847
      %864 = vst [vmem:[%s297 + $0x50] sm:$0xff] %v848
      %865 = vst [vmem:[%s297 + $0x58] sm:$0xff] %v849
      %866 = vst [vmem:[%s297 + $0x60] sm:$0xff] %v850
      %867 = vst [vmem:[%s297 + $0x68] sm:$0xff] %v851
      %868 = vst [vmem:[%s297 + $0x70] sm:$0xff] %v852
      %869 = vst [vmem:[%s297 + $0x78] sm:$0xff] %v853
      %p870 = scmp.eq.s32.totalorder %s23, 7
      // Predicated region
      $region45: #{conv_func_cgcnn.6} parent=39 // pred_check
        %p871 = pneg %p870
      $region46: #{conv_func_cgcnn.6} parent=39 // pred_check_branch
        %873 = sbr.rel (%p871) target = $region48
      $region47: #{conv_func_cgcnn.6} parent=39 // pred_region
        %v874 = vld [vmem:[%s297] sm:$0xff]
        %v875 = vld [vmem:[%s297 + $0x8] sm:$0xff]
        %v876 = vld [vmem:[%s297 + $0x10] sm:$0xff]
        %v877 = vld [vmem:[%s297 + $0x18] sm:$0xff]
        %v878 = vld [vmem:[%s297 + $0x20] sm:$0xff]
        %v879 = vld [vmem:[%s297 + $0x28] sm:$0xff]
        %v880 = vld [vmem:[%s297 + $0x30] sm:$0xff]
        %v881 = vld [vmem:[%s297 + $0x38] sm:$0xff]
        %v882 = vld [vmem:[%s297 + $0x40] sm:$0xff]
        %v883 = vld [vmem:[%s297 + $0x48] sm:$0xff]
        %v884 = vld [vmem:[%s297 + $0x50] sm:$0xff]
        %v885 = vld [vmem:[%s297 + $0x58] sm:$0xff]
        %v886 = vld [vmem:[%s297 + $0x60] sm:$0xff]
        %v887 = vld [vmem:[%s297 + $0x68] sm:$0xff]
        %v888 = vld [vmem:[%s297 + $0x70] sm:$0xff]
        %v889 = vld [vmem:[%s297 + $0x78] sm:$0xff]
        %v890 = vadd.f32 %v874, %v875
        %v891 = vadd.f32 %v890, %v876
        %v892 = vadd.f32 %v891, %v877
        %v893 = vadd.f32 %v892, %v878
        %v894 = vadd.f32 %v893, %v879
        %v895 = vadd.f32 %v894, %v880
        %v896 = vadd.f32 %v895, %v881
        %v897 = vadd.f32 %v896, %v882
        %v898 = vadd.f32 %v897, %v883
        %v899 = vadd.f32 %v898, %v884
        %v900 = vadd.f32 %v899, %v885
        %v901 = vadd.f32 %v900, %v886
        %v902 = vadd.f32 %v901, %v887
        %v903 = vadd.f32 %v902, %v888
        %v904 = vadd.f32 %v903, %v889
        %v905 = vrot.slane %v904, 4
        %v906 = vadd.f32 %v904, %v905
        %v907 = vrot.slane %v906, 2
        %v908 = vadd.f32 %v906, %v907
        %v909 = vrot.slane %v908, 1
        %v910 = vadd.f32 %v908, %v909
        %v911 = vmul.f32 %v874, %v874
        %v912 = vmul.f32 %v875, %v875
        %v913 = vmul.f32 %v876, %v876
        %v914 = vmul.f32 %v877, %v877
        %v915 = vmul.f32 %v878, %v878
        %v916 = vmul.f32 %v879, %v879
        %v917 = vmul.f32 %v880, %v880
        %v918 = vmul.f32 %v881, %v881
        %v919 = vmul.f32 %v882, %v882
        %v920 = vmul.f32 %v883, %v883
        %v921 = vmul.f32 %v884, %v884
        %v922 = vmul.f32 %v885, %v885
        %v923 = vmul.f32 %v886, %v886
        %v924 = vmul.f32 %v887, %v887
        %v925 = vmul.f32 %v888, %v888
        %v926 = vmul.f32 %v889, %v889
        %v927 = vadd.f32 %v911, %v912
        %v928 = vadd.f32 %v927, %v913
        %v929 = vadd.f32 %v928, %v914
        %v930 = vadd.f32 %v929, %v915
        %v931 = vadd.f32 %v930, %v916
        %v932 = vadd.f32 %v931, %v917
        %v933 = vadd.f32 %v932, %v918
        %v934 = vadd.f32 %v933, %v919
        %v935 = vadd.f32 %v934, %v920
        %v936 = vadd.f32 %v935, %v921
        %v937 = vadd.f32 %v936, %v922
        %v938 = vadd.f32 %v937, %v923
        %v939 = vadd.f32 %v938, %v924
        %v940 = vadd.f32 %v939, %v925
        %v941 = vadd.f32 %v940, %v926
        %v942 = vrot.slane %v941, 4
        %v943 = vadd.f32 %v941, %v942
        %v944 = vrot.slane %v943, 2
        %v945 = vadd.f32 %v943, %v944
        %v946 = vrot.slane %v945, 1
        %v947 = vadd.f32 %v945, %v946
        %vm948 = vcmask 1040384
        %v949 = vsel %vm948, %v910, %v947
        %950 = vst [vmem:[%s302] sm:$0x3] %v949
      $region48: #{conv_func_cgcnn.6} parent=39 // pred_fallthru
        _
      %s951 = smul.u32 16, %s22
      %p952 = scmp.lt.s32.totalorder %s951, 31
      %s953 = scalar_select %p952, %s951, 31
      %s954 = smul.addr %s953, 8
      %s955 = scalar_lea.vmem %s5, %s954
      %p956 = scmp.lt.s32.totalorder %s22, 1
      %s957 = scalar_select %p956, %s22, 1
      %s958 = smul.addr %s957, 2
      %s959 = scalar_lea.vmem %s6, %s958
      // Predicated region
      $region49: #{conv_func_cgcnn.6} parent=39 // pred_check
        %p960 = pneg %p163
      $region50: #{conv_func_cgcnn.6} parent=39 // pred_check_branch
        %962 = sbr.rel (%p960) target = $region52
      $region51: #{conv_func_cgcnn.6} parent=39 // pred_region
        %s963 = smul.u32 16, %s22
      $region52: #{conv_func_cgcnn.6} parent=39 // pred_fallthru
        _
      // Predicated region
      $region53: #{conv_func_cgcnn.6} parent=39 // pred_check
        %p964 = pneg %p189
      $region54: #{conv_func_cgcnn.6} parent=39 // pred_check_branch
        %966 = sbr.rel (%p964) target = $region56
      $region55: #{conv_func_cgcnn.6} parent=39 // pred_region
        _
      $region56: #{conv_func_cgcnn.6} parent=39 // pred_fallthru
        _
    $region40: #{conv_func_cgcnn.6} parent=5 // pred_fallthru
      _
    %p967 = scmp.le.s32.totalorder 2, %s13
    // Predicated region
    $region57: #{conv_func_cgcnn.6} parent=5 // pred_check
      %p968 = pneg %p967
    $region58: #{conv_func_cgcnn.6} parent=5 // pred_check_branch
      %970 = sbr.rel (%p968) target = $region60
    $region59: #{conv_func_cgcnn.6} parent=5 // pred_region
      %s971 = ssub.s32 %s13, 2
      // Predicated region
      $region61: #{conv_func_cgcnn.6} parent=59 // pred_check
        %p972 = pneg %p169
      $region62: #{conv_func_cgcnn.6} parent=59 // pred_check_branch
        %974 = sbr.rel (%p972) target = $region64
      $region63: #{conv_func_cgcnn.6} parent=59 // pred_region
        %s975 = smul.u32 16, %s24
        %p976 = scmp.lt.s32.totalorder %s975, 31
        %s977 = scalar_select %p976, %s975, 31
        %s978 = smul.addr %s977, 8
        %s979 = scalar_lea.vmem %s5, %s978
      $region64: #{conv_func_cgcnn.6} parent=59 // pred_fallthru
        _
      // Predicated region
      $region65: #{conv_func_cgcnn.6} parent=59 // pred_check
        %p980 = pneg %p195
      $region66: #{conv_func_cgcnn.6} parent=59 // pred_check_branch
        %982 = sbr.rel (%p980) target = $region68
      $region67: #{conv_func_cgcnn.6} parent=59 // pred_region
        %p983 = scmp.lt.s32.totalorder %s24, 1
        %s984 = scalar_select %p983, %s24, 1
        %s985 = smul.addr %s984, 2
        %s986 = scalar_lea.vmem %s6, %s985
      $region68: #{conv_func_cgcnn.6} parent=59 // pred_fallthru
        _
    $region60: #{conv_func_cgcnn.6} parent=5 // pred_fallthru
      _
  $region6: #{conv_func_cgcnn.6} parent=0 // loop_footer
    %s17 = sadd.s32 1, %s13
  $region7: #{conv_func_cgcnn.6} parent=0 // loop_footer_branch
    %12 = sbr.rel target = $region3
  $region8: #{conv_func_cgcnn.6} parent=0 // loop_exit
    _

// kernel: conv_func_cgcnn.7
$region0: #{conv_func_cgcnn.7}
  #allocation0 [shape = 'u32[]', space=smem, size = 0x4, offset = 0x4, fixed_abs, tag = 'smem constant byte address 0x4 - core index']
  #allocation1 [shape = 'u32[144,128]{1,0:T(1,128)}', space=vmem, size = 0x12000, scoped, tag = 'internal scratch']
  %s0 = inlined_call_operand.vmem [shape: f32[256,128], index: 0, kind: input, shape index: {}]
  %s1 = inlined_call_operand.vmem [shape: f32[2,2,128], index: 1, kind: input, shape index: {}]
  %s2 = inlined_call_operand.vmem [shape: f32[1,128], index: 2, kind: input, shape index: {}]
  %s3 = inlined_call_operand.vmem [shape: f32[1,128], index: 3, kind: input, shape index: {}]
  %s4 = inlined_call_operand.vmem [shape: f32[256,128], index: 4, kind: input, shape index: {}]
  %s5 = inlined_call_operand.vmem [shape: f32[256,128], index: 5, kind: output, shape index: {}]
  %s6 = sld [smem:[#allocation0]]
  $region53: #{conv_func_cgcnn.7} parent=0
    _
  %s8 = ssub.s32 1, %s6
  %s9 = scalar_select 0, %s8, %s6
  loop: start=0, step=1, limit=4
  $region2: #{conv_func_cgcnn.7} parent=0 // loop_pre_header
    _
  $region3: #{conv_func_cgcnn.7} parent=0 // loop_header
    %s11 = sphi 0, %s15
    %p12 = scmp.ge.s32.totalorder %s11, 4
    %s21 = sphi 0, %s23
    %s24 = sphi 0, %s21
    %s25 = sphi 0, %s24
    %s41 = sphi 0, %s25
    %s45 = sphi 0, %s45
    %s47 = sphi 0, %s45
    %s48 = sphi 0, %s47
    %s62 = sphi 0, %s48
    %s66 = sphi 0, %s66
    %s68 = sphi 0, %s66
    %s69 = sphi 0, %s68
    %s83 = sphi 0, %s69
    %s87 = sphi 0, %s87
    %s89 = sphi 0, %s87
    %s90 = sphi 0, %s89
    %s104 = sphi 0, %s90
    %s110 = sphi 0, %s112
    %s113 = sphi 0, %s110
    %s114 = sphi 0, %s113
    %s130 = sphi 0, %s114
    %s136 = sphi 0, %s138
    %s139 = sphi 0, %s136
    %s140 = sphi 0, %s139
    %s156 = sphi 0, %s140
  $region4: #{conv_func_cgcnn.7} parent=0 // loop_header_branch
    %14 = sbr.rel (%p12) target = $region8
  $region5: #{conv_func_cgcnn.7} parent=0 // loop_body
    %s16 = ssub.s32 %s11, 1
    %s17 = ssub.s32 %s11, 2
    %s18 = sadd.s32 %s11, 1
    %s19 = ssub.s32 %s11, %s18
    %p20 = scmp.eq.s32.totalorder %s19, 0
    %s22 = sadd.s32 %s21, 1
    %s23 = scalar_select %p20, %s21, %s22
    %p26 = pneg %p20
    %p27 = scmp.eq.s32.totalorder %s11, 1
    %p28 = por %p26, %p27
    %p29 = scmp.ne.s32.totalorder %s21, %s24
    %p30 = scmp.eq.s32.totalorder %s11, 0
    %p31 = por %p29, %p30
    %p32 = scmp.ne.s32.totalorder %s21, %s24
    %p33 = scmp.eq.s32.totalorder %s16, 1
    %p34 = por %p32, %p33
    %p35 = scmp.ne.s32.totalorder %s24, %s25
    %p36 = scmp.eq.s32.totalorder %s16, 0
    %p37 = por %p35, %p36
    %p38 = scmp.ne.s32.totalorder %s24, %s25
    %p39 = scmp.eq.s32.totalorder %s17, 1
    %p40 = por %p38, %p39
    %p42 = scmp.ne.s32.totalorder %s25, %s41
    %p43 = scmp.eq.s32.totalorder %s17, 0
    %p44 = por %p42, %p43
    %s46 = sadd.s32 %s45, 1
    %p49 = scmp.eq.s32.totalorder %s11, 1
    %p50 = scmp.ne.s32.totalorder %s45, %s47
    %p51 = scmp.eq.s32.totalorder %s11, 0
    %p52 = por %p50, %p51
    %p53 = scmp.ne.s32.totalorder %s45, %s47
    %p54 = scmp.eq.s32.totalorder %s16, 1
    %p55 = por %p53, %p54
    %p56 = scmp.ne.s32.totalorder %s47, %s48
    %p57 = scmp.eq.s32.totalorder %s16, 0
    %p58 = por %p56, %p57
    %p59 = scmp.ne.s32.totalorder %s47, %s48
    %p60 = scmp.eq.s32.totalorder %s17, 1
    %p61 = por %p59, %p60
    %p63 = scmp.ne.s32.totalorder %s48, %s62
    %p64 = scmp.eq.s32.totalorder %s17, 0
    %p65 = por %p63, %p64
    %s67 = sadd.s32 %s66, 1
    %p70 = scmp.eq.s32.totalorder %s11, 1
    %p71 = scmp.ne.s32.totalorder %s66, %s68
    %p72 = scmp.eq.s32.totalorder %s11, 0
    %p73 = por %p71, %p72
    %p74 = scmp.ne.s32.totalorder %s66, %s68
    %p75 = scmp.eq.s32.totalorder %s16, 1
    %p76 = por %p74, %p75
    %p77 = scmp.ne.s32.totalorder %s68, %s69
    %p78 = scmp.eq.s32.totalorder %s16, 0
    %p79 = por %p77, %p78
    %p80 = scmp.ne.s32.totalorder %s68, %s69
    %p81 = scmp.eq.s32.totalorder %s17, 1
    %p82 = por %p80, %p81
    %p84 = scmp.ne.s32.totalorder %s69, %s83
    %p85 = scmp.eq.s32.totalorder %s17, 0
    %p86 = por %p84, %p85
    %s88 = sadd.s32 %s87, 1
    %p91 = scmp.eq.s32.totalorder %s11, 1
    %p92 = scmp.ne.s32.totalorder %s87, %s89
    %p93 = scmp.eq.s32.totalorder %s11, 0
    %p94 = por %p92, %p93
    %p95 = scmp.ne.s32.totalorder %s87, %s89
    %p96 = scmp.eq.s32.totalorder %s16, 1
    %p97 = por %p95, %p96
    %p98 = scmp.ne.s32.totalorder %s89, %s90
    %p99 = scmp.eq.s32.totalorder %s16, 0
    %p100 = por %p98, %p99
    %p101 = scmp.ne.s32.totalorder %s89, %s90
    %p102 = scmp.eq.s32.totalorder %s17, 1
    %p103 = por %p101, %p102
    %p105 = scmp.ne.s32.totalorder %s90, %s104
    %p106 = scmp.eq.s32.totalorder %s17, 0
    %p107 = por %p105, %p106
    %s108 = ssub.s32 %s11, %s18
    %p109 = scmp.eq.s32.totalorder %s108, 0
    %s111 = sadd.s32 %s110, 1
    %s112 = scalar_select %p109, %s110, %s111
    %p115 = pneg %p109
    %p116 = scmp.eq.s32.totalorder %s11, 1
    %p117 = por %p115, %p116
    %p118 = scmp.ne.s32.totalorder %s110, %s113
    %p119 = scmp.eq.s32.totalorder %s11, 0
    %p120 = por %p118, %p119
    %p121 = scmp.ne.s32.totalorder %s110, %s113
    %p122 = scmp.eq.s32.totalorder %s16, 1
    %p123 = por %p121, %p122
    %p124 = scmp.ne.s32.totalorder %s113, %s114
    %p125 = scmp.eq.s32.totalorder %s16, 0
    %p126 = por %p124, %p125
    %p127 = scmp.ne.s32.totalorder %s113, %s114
    %p128 = scmp.eq.s32.totalorder %s17, 1
    %p129 = por %p127, %p128
    %p131 = scmp.ne.s32.totalorder %s114, %s130
    %p132 = scmp.eq.s32.totalorder %s17, 0
    %p133 = por %p131, %p132
    %s134 = ssub.s32 %s11, %s18
    %p135 = scmp.eq.s32.totalorder %s134, 0
    %s137 = sadd.s32 %s136, 1
    %s138 = scalar_select %p135, %s136, %s137
    %p141 = pneg %p135
    %p142 = scmp.eq.s32.totalorder %s11, 1
    %p143 = por %p141, %p142
    %p144 = scmp.ne.s32.totalorder %s136, %s139
    %p145 = scmp.eq.s32.totalorder %s11, 0
    %p146 = por %p144, %p145
    %p147 = scmp.ne.s32.totalorder %s136, %s139
    %p148 = scmp.eq.s32.totalorder %s16, 1
    %p149 = por %p147, %p148
    %p150 = scmp.ne.s32.totalorder %s139, %s140
    %p151 = scmp.eq.s32.totalorder %s16, 0
    %p152 = por %p150, %p151
    %p153 = scmp.ne.s32.totalorder %s139, %s140
    %p154 = scmp.eq.s32.totalorder %s17, 1
    %p155 = por %p153, %p154
    %p157 = scmp.ne.s32.totalorder %s140, %s156
    %p158 = scmp.eq.s32.totalorder %s17, 0
    %p159 = por %p157, %p158
    %p160 = scmp.le.s32.totalorder 1, %s11
    %p161 = scmp.lt.s32.totalorder %s11, 3
    %p162 = pnand %p160, %p161
    %p163 = pneg %p162
    // Predicated region
    $region9: #{conv_func_cgcnn.7} parent=5 // pred_check
      _
    $region10: #{conv_func_cgcnn.7} parent=5 // pred_check_branch
      %165 = sbr.rel (%p162) target = $region12
    $region11: #{conv_func_cgcnn.7} parent=5 // pred_region
      %s166 = ssub.s32 %s11, 1
      // Predicated region
      $region13: #{conv_func_cgcnn.7} parent=11 // pred_check
        %p167 = pneg %p58
      $region14: #{conv_func_cgcnn.7} parent=11 // pred_check_branch
        %169 = sbr.rel (%p167) target = $region16
      $region15: #{conv_func_cgcnn.7} parent=11 // pred_region
        _
      $region16: #{conv_func_cgcnn.7} parent=11 // pred_fallthru
        _
      // Predicated region
      $region17: #{conv_func_cgcnn.7} parent=11 // pred_check
        %p170 = pneg %p79
      $region18: #{conv_func_cgcnn.7} parent=11 // pred_check_branch
        %172 = sbr.rel (%p170) target = $region20
      $region19: #{conv_func_cgcnn.7} parent=11 // pred_region
        _
      $region20: #{conv_func_cgcnn.7} parent=11 // pred_fallthru
        _
      // Predicated region
      $region21: #{conv_func_cgcnn.7} parent=11 // pred_check
        %p173 = pneg %p100
      $region22: #{conv_func_cgcnn.7} parent=11 // pred_check_branch
        %175 = sbr.rel (%p173) target = $region24
      $region23: #{conv_func_cgcnn.7} parent=11 // pred_region
        _
      $region24: #{conv_func_cgcnn.7} parent=11 // pred_fallthru
        _
    $region12: #{conv_func_cgcnn.7} parent=5 // pred_fallthru
      _
    %p176 = scmp.lt.s32.totalorder %s11, 2
    // Predicated region
    $region25: #{conv_func_cgcnn.7} parent=5 // pred_check
      %p177 = pneg %p176
    $region26: #{conv_func_cgcnn.7} parent=5 // pred_check_branch
      %179 = sbr.rel (%p177) target = $region28
    $region27: #{conv_func_cgcnn.7} parent=5 // pred_region
      // Predicated region
      $region29: #{conv_func_cgcnn.7} parent=27 // pred_check
        %p180 = pneg %p31
      $region30: #{conv_func_cgcnn.7} parent=27 // pred_check_branch
        %182 = sbr.rel (%p180) target = $region32
      $region31: #{conv_func_cgcnn.7} parent=27 // pred_region
        %s183 = smul.u32 16, %s11
        %p184 = scmp.lt.s32.totalorder %s183, 31
        %s185 = scalar_select %p184, %s183, 31
        %s186 = smul.addr %s185, 8
        %s187 = scalar_lea.vmem %s0, %s186
        %s188 = smul.u32 16, %s11
      $region32: #{conv_func_cgcnn.7} parent=27 // pred_fallthru
        _
      // Predicated region
      $region33: #{conv_func_cgcnn.7} parent=27 // pred_check
        %p189 = pneg %p120
      $region34: #{conv_func_cgcnn.7} parent=27 // pred_check_branch
        %191 = sbr.rel (%p189) target = $region36
      $region35: #{conv_func_cgcnn.7} parent=27 // pred_region
        %s192 = smul.u32 16, %s11
        %p193 = scmp.lt.s32.totalorder %s192, 31
        %s194 = scalar_select %p193, %s192, 31
        %s195 = smul.addr %s194, 8
        %s196 = scalar_lea.vmem %s4, %s195
        %s197 = smul.u32 16, %s11
      $region36: #{conv_func_cgcnn.7} parent=27 // pred_fallthru
        _
    $region28: #{conv_func_cgcnn.7} parent=5 // pred_fallthru
      _
    %p198 = scmp.le.s32.totalorder 1, %s11
    %p199 = scmp.lt.s32.totalorder %s11, 3
    %p200 = pnand %p198, %p199
    %p201 = pneg %p200
    // Predicated region
    $region37: #{conv_func_cgcnn.7} parent=5 // pred_check
      _
    $region38: #{conv_func_cgcnn.7} parent=5 // pred_check_branch
      %203 = sbr.rel (%p200) target = $region40
    $region39: #{conv_func_cgcnn.7} parent=5 // pred_region
      %s204 = ssub.s32 %s11, 1
      %s205 = smul.u32 16, %s16
      %p206 = scmp.lt.s32.totalorder %s205, 31
      %s207 = scalar_select %p206, %s205, 31
      %s208 = smul.addr %s207, 8
      %s209 = scalar_lea.vmem %s0, %s208
      %p210 = pneg %p37
      %p211 = pneg %p34
      %p212 = pneg %p58
      %p213 = pneg %p55
      %p214 = pneg %p79
      %p215 = pneg %p76
      %p216 = pneg %p100
      %p217 = pneg %p97
      %s218 = smul.u32 16, %s16
      %p219 = scmp.lt.s32.totalorder %s218, 31
      %s220 = scalar_select %p219, %s218, 31
      %s221 = smul.addr %s220, 8
      %s222 = scalar_lea.vmem %s4, %s221
      %p223 = pneg %p126
      %p224 = pneg %p123
      %p225 = pneg %p152
      %p226 = pneg %p149
      %s227 = smul.u32 16, %s16
      %p228 = scmp.lt.s32.totalorder %s227, 31
      %s229 = scalar_select %p228, %s227, 31
      %s230 = smul.addr %s229, 8
      %s231 = scalar_lea.vmem %s5, %s230
      %s232 = smul.u32 16, %s16
      %p233 = scmp.lt.s32.totalorder %s232, 31
      %s234 = scalar_select %p233, %s232, 31
      %s235 = smul.addr %s234, 8
      %s236 = scalar_lea.vmem %s0, %s235
      %s237 = smul.u32 16, %s16
      %s238 = smul.u32 16, %s16
      %p239 = scmp.lt.s32.totalorder %s238, 31
      %s240 = scalar_select %p239, %s238, 31
      %s241 = smul.addr %s240, 8
      %s242 = scalar_lea.vmem %s4, %s241
      %s243 = smul.u32 16, %s16
      %s244 = smul.u32 16, %s16
      %p245 = scmp.lt.s32.totalorder %s244, 31
      %s246 = scalar_select %p245, %s244, 31
      %s247 = smul.addr %s246, 8
      %s248 = scalar_lea.vmem %s5, %s247
      %s249 = smul.u32 16, %s16
      %v250 = vld [vmem:[%s1] sm:$0x3]
      %s251 = scalar_lea.vmem %s1, 2
      %v252 = vld [vmem:[%s251] sm:$0x3]
      %v253 = vadd.f32 %v250, %v252
      %v254 = vld [vmem:[%s236] sm:$0xff]
      %v255 = vld [vmem:[%s236 + $0x8] sm:$0xff]
      %v256 = vld [vmem:[%s236 + $0x10] sm:$0xff]
      %v257 = vld [vmem:[%s236 + $0x18] sm:$0xff]
      %v258 = vld [vmem:[%s236 + $0x20] sm:$0xff]
      %v259 = vld [vmem:[%s236 + $0x28] sm:$0xff]
      %v260 = vld [vmem:[%s236 + $0x30] sm:$0xff]
      %v261 = vld [vmem:[%s236 + $0x38] sm:$0xff]
      %v262 = vld [vmem:[%s236 + $0x40] sm:$0xff]
      %v263 = vld [vmem:[%s236 + $0x48] sm:$0xff]
      %v264 = vld [vmem:[%s236 + $0x50] sm:$0xff]
      %v265 = vld [vmem:[%s236 + $0x58] sm:$0xff]
      %v266 = vld [vmem:[%s236 + $0x60] sm:$0xff]
      %v267 = vld [vmem:[%s236 + $0x68] sm:$0xff]
      %v268 = vld [vmem:[%s236 + $0x70] sm:$0xff]
      %v269 = vld [vmem:[%s236 + $0x78] sm:$0xff]
      %v270 = vld [vmem:[%s2] sm:$0x1]
      %v271 = vld [vmem:[%s3] sm:$0x1]
      %v272 = vmul.f32 %v253, 0.00625
      %v273 = vmul.f32 %v272, %v272
      %v275 = vrot.slane %v273, 7
      %v277 = vsub.f32 %v272, %v275
      %v278 = vmax.f32 %v277, 0.0
      %v279 = vlaneseq
      %v280 = vshrl.u32 %v279, 7
      %v281 = vsub.s32 0, %v280
      %v282 = vrot.slane %v272, %v281
      %v283 = vsub.f32 %v254, %v282
      %v284 = vsub.f32 %v255, %v282
      %v285 = vsub.f32 %v256, %v282
      %v286 = vsub.f32 %v257, %v282
      %v287 = vsub.f32 %v258, %v282
      %v288 = vsub.f32 %v259, %v282
      %v289 = vsub.f32 %v260, %v282
      %v290 = vsub.f32 %v261, %v282
      %v291 = vsub.f32 %v262, %v282
      %v292 = vsub.f32 %v263, %v282
      %v293 = vsub.f32 %v264, %v282
      %v294 = vsub.f32 %v265, %v282
      %v295 = vsub.f32 %v266, %v282
      %v296 = vsub.f32 %v267, %v282
      %v297 = vsub.f32 %v268, %v282
      %v298 = vsub.f32 %v269, %v282
      %v299 = vadd.f32 %v278, 1e-05
      %v300 = vrsqrt.pop %v299
      %v301 = vlaneseq
      %v302 = vshrl.u32 %v301, 7
      %v303 = vsub.s32 1, %v302
      %v304 = vrot.slane %v300, %v303
      %v305 = vmul.f32 %v283, %v304
      %v306 = vmul.f32 %v284, %v304
      %v307 = vmul.f32 %v285, %v304
      %v308 = vmul.f32 %v286, %v304
      %v309 = vmul.f32 %v287, %v304
      %v310 = vmul.f32 %v288, %v304
      %v311 = vmul.f32 %v289, %v304
      %v312 = vmul.f32 %v290, %v304
      %v313 = vmul.f32 %v291, %v304
      %v314 = vmul.f32 %v292, %v304
      %v315 = vmul.f32 %v293, %v304
      %v316 = vmul.f32 %v294, %v304
      %v317 = vmul.f32 %v295, %v304
      %v318 = vmul.f32 %v296, %v304
      %v319 = vmul.f32 %v297, %v304
      %v320 = vmul.f32 %v298, %v304
      %v322 = vlaneseq
      %v323 = vshrl.u32 %v322, 7
      %v324 = vsub.s32 0, %v323
      %v325 = vrot.slane %v270, %v324
      %v327 = vmul.f32 %v305, %v325
      %v328 = vmul.f32 %v306, %v325
      %v329 = vmul.f32 %v307, %v325
      %v330 = vmul.f32 %v308, %v325
      %v331 = vmul.f32 %v309, %v325
      %v332 = vmul.f32 %v310, %v325
      %v333 = vmul.f32 %v311, %v325
      %v334 = vmul.f32 %v312, %v325
      %v335 = vmul.f32 %v313, %v325
      %v336 = vmul.f32 %v314, %v325
      %v337 = vmul.f32 %v315, %v325
      %v338 = vmul.f32 %v316, %v325
      %v339 = vmul.f32 %v317, %v325
      %v340 = vmul.f32 %v318, %v325
      %v341 = vmul.f32 %v319, %v325
      %v342 = vmul.f32 %v320, %v325
      %v344 = vlaneseq
      %v345 = vshrl.u32 %v344, 7
      %v346 = vsub.s32 0, %v345
      %v347 = vrot.slane %v271, %v346
      %v349 = vadd.f32 %v327, %v347
      %v350 = vadd.f32 %v328, %v347
      %v351 = vadd.f32 %v329, %v347
      %v352 = vadd.f32 %v330, %v347
      %v353 = vadd.f32 %v331, %v347
      %v354 = vadd.f32 %v332, %v347
      %v355 = vadd.f32 %v333, %v347
      %v356 = vadd.f32 %v334, %v347
      %v357 = vadd.f32 %v335, %v347
      %v358 = vadd.f32 %v336, %v347
      %v359 = vadd.f32 %v337, %v347
      %v360 = vadd.f32 %v338, %v347
      %v361 = vadd.f32 %v339, %v347
      %v362 = vadd.f32 %v340, %v347
      %v363 = vadd.f32 %v341, %v347
      %v364 = vadd.f32 %v342, %v347
      %v365 = vld [vmem:[%s242] sm:$0xff]
      %v366 = vld [vmem:[%s242 + $0x8] sm:$0xff]
      %v367 = vld [vmem:[%s242 + $0x10] sm:$0xff]
      %v368 = vld [vmem:[%s242 + $0x18] sm:$0xff]
      %v369 = vld [vmem:[%s242 + $0x20] sm:$0xff]
      %v370 = vld [vmem:[%s242 + $0x28] sm:$0xff]
      %v371 = vld [vmem:[%s242 + $0x30] sm:$0xff]
      %v372 = vld [vmem:[%s242 + $0x38] sm:$0xff]
      %v373 = vld [vmem:[%s242 + $0x40] sm:$0xff]
      %v374 = vld [vmem:[%s242 + $0x48] sm:$0xff]
      %v375 = vld [vmem:[%s242 + $0x50] sm:$0xff]
      %v376 = vld [vmem:[%s242 + $0x58] sm:$0xff]
      %v377 = vld [vmem:[%s242 + $0x60] sm:$0xff]
      %v378 = vld [vmem:[%s242 + $0x68] sm:$0xff]
      %v379 = vld [vmem:[%s242 + $0x70] sm:$0xff]
      %v380 = vld [vmem:[%s242 + $0x78] sm:$0xff]
      %v381 = vadd.f32 %v349, %v365
      %v382 = vadd.f32 %v350, %v366
      %v383 = vadd.f32 %v351, %v367
      %v384 = vadd.f32 %v352, %v368
      %v385 = vadd.f32 %v353, %v369
      %v386 = vadd.f32 %v354, %v370
      %v387 = vadd.f32 %v355, %v371
      %v388 = vadd.f32 %v356, %v372
      %v389 = vadd.f32 %v357, %v373
      %v390 = vadd.f32 %v358, %v374
      %v391 = vadd.f32 %v359, %v375
      %v392 = vadd.f32 %v360, %v376
      %v393 = vadd.f32 %v361, %v377
      %v394 = vadd.f32 %v362, %v378
      %v395 = vadd.f32 %v363, %v379
      %v396 = vadd.f32 %v364, %v380
      %vm397 = vcmp.gt.f32.partialorder %v381, 20.0
      %vm398 = vcmp.gt.f32.partialorder %v382, 20.0
      %vm399 = vcmp.gt.f32.partialorder %v383, 20.0
      %vm400 = vcmp.gt.f32.partialorder %v384, 20.0
      %vm401 = vcmp.gt.f32.partialorder %v385, 20.0
      %vm402 = vcmp.gt.f32.partialorder %v386, 20.0
      %vm403 = vcmp.gt.f32.partialorder %v387, 20.0
      %vm404 = vcmp.gt.f32.partialorder %v388, 20.0
      %vm405 = vcmp.gt.f32.partialorder %v389, 20.0
      %vm406 = vcmp.gt.f32.partialorder %v390, 20.0
      %vm407 = vcmp.gt.f32.partialorder %v391, 20.0
      %vm408 = vcmp.gt.f32.partialorder %v392, 20.0
      %vm409 = vcmp.gt.f32.partialorder %v393, 20.0
      %vm410 = vcmp.gt.f32.partialorder %v394, 20.0
      %vm411 = vcmp.gt.f32.partialorder %v395, 20.0
      %vm412 = vcmp.gt.f32.partialorder %v396, 20.0
      %v413 = vmin.f32 %v381, 20.0
      %v414 = vmin.f32 %v382, 20.0
      %v415 = vmin.f32 %v383, 20.0
      %v416 = vmin.f32 %v384, 20.0
      %v417 = vmin.f32 %v385, 20.0
      %v418 = vmin.f32 %v386, 20.0
      %v419 = vmin.f32 %v387, 20.0
      %v420 = vmin.f32 %v388, 20.0
      %v421 = vmin.f32 %v389, 20.0
      %v422 = vmin.f32 %v390, 20.0
      %v423 = vmin.f32 %v391, 20.0
      %v424 = vmin.f32 %v392, 20.0
      %v425 = vmin.f32 %v393, 20.0
      %v426 = vmin.f32 %v394, 20.0
      %v427 = vmin.f32 %v395, 20.0
      %v428 = vmin.f32 %v396, 20.0
      %v429 = vmul.f32 %v413, 1.442695
      %v430 = vpow.pop %v429
      %v431 = vmul.f32 %v414, 1.442695
      %v432 = vpow.pop %v431
      %v433 = vmul.f32 %v415, 1.442695
      %v434 = vpow.pop %v433
      %v435 = vmul.f32 %v416, 1.442695
      %v436 = vpow.pop %v435
      %v437 = vmul.f32 %v417, 1.442695
      %v438 = vpow.pop %v437
      %v439 = vmul.f32 %v418, 1.442695
      %v440 = vpow.pop %v439
      %v441 = vmul.f32 %v419, 1.442695
      %v442 = vpow.pop %v441
      %v443 = vmul.f32 %v420, 1.442695
      %v444 = vpow.pop %v443
      %v445 = vmul.f32 %v421, 1.442695
      %v446 = vpow.pop %v445
      %v447 = vmul.f32 %v422, 1.442695
      %v448 = vpow.pop %v447
      %v449 = vmul.f32 %v423, 1.442695
      %v450 = vpow.pop %v449
      %v451 = vmul.f32 %v424, 1.442695
      %v452 = vpow.pop %v451
      %v453 = vmul.f32 %v425, 1.442695
      %v454 = vpow.pop %v453
      %v455 = vmul.f32 %v426, 1.442695
      %v456 = vpow.pop %v455
      %v457 = vmul.f32 %v427, 1.442695
      %v458 = vpow.pop %v457
      %v459 = vmul.f32 %v428, 1.442695
      %v460 = vpow.pop %v459
      %v461 = vadd.f32 %v430, 1.0
      %v462 = vadd.f32 %v432, 1.0
      %v463 = vadd.f32 %v434, 1.0
      %v464 = vadd.f32 %v436, 1.0
      %v465 = vadd.f32 %v438, 1.0
      %v466 = vadd.f32 %v440, 1.0
      %v467 = vadd.f32 %v442, 1.0
      %v468 = vadd.f32 %v444, 1.0
      %v469 = vadd.f32 %v446, 1.0
      %v470 = vadd.f32 %v448, 1.0
      %v471 = vadd.f32 %v450, 1.0
      %v472 = vadd.f32 %v452, 1.0
      %v473 = vadd.f32 %v454, 1.0
      %v474 = vadd.f32 %v456, 1.0
      %v475 = vadd.f32 %v458, 1.0
      %v476 = vadd.f32 %v460, 1.0
      %v477 = vlog2.pop %v461
      %v478 = vmul.f32 %v477, 0.6931472
      %v479 = vlog2.pop %v462
      %v480 = vmul.f32 %v479, 0.6931472
      %v481 = vlog2.pop %v463
      %v482 = vmul.f32 %v481, 0.6931472
      %v483 = vlog2.pop %v464
      %v484 = vmul.f32 %v483, 0.6931472
      %v485 = vlog2.pop %v465
      %v486 = vmul.f32 %v485, 0.6931472
      %v487 = vlog2.pop %v466
      %v488 = vmul.f32 %v487, 0.6931472
      %v489 = vlog2.pop %v467
      %v490 = vmul.f32 %v489, 0.6931472
      %v491 = vlog2.pop %v468
      %v492 = vmul.f32 %v491, 0.6931472
      %v493 = vlog2.pop %v469
      %v494 = vmul.f32 %v493, 0.6931472
      %v495 = vlog2.pop %v470
      %v496 = vmul.f32 %v495, 0.6931472
      %v497 = vlog2.pop %v471
      %v498 = vmul.f32 %v497, 0.6931472
      %v499 = vlog2.pop %v472
      %v500 = vmul.f32 %v499, 0.6931472
      %v501 = vlog2.pop %v473
      %v502 = vmul.f32 %v501, 0.6931472
      %v503 = vlog2.pop %v474
      %v504 = vmul.f32 %v503, 0.6931472
      %v505 = vlog2.pop %v475
      %v506 = vmul.f32 %v505, 0.6931472
      %v507 = vlog2.pop %v476
      %v508 = vmul.f32 %v507, 0.6931472
      %v509 = vsel %vm397, %v381, %v478
      %v510 = vsel %vm398, %v382, %v480
      %v511 = vsel %vm399, %v383, %v482
      %v512 = vsel %vm400, %v384, %v484
      %v513 = vsel %vm401, %v385, %v486
      %v514 = vsel %vm402, %v386, %v488
      %v515 = vsel %vm403, %v387, %v490
      %v516 = vsel %vm404, %v388, %v492
      %v517 = vsel %vm405, %v389, %v494
      %v518 = vsel %vm406, %v390, %v496
      %v519 = vsel %vm407, %v391, %v498
      %v520 = vsel %vm408, %v392, %v500
      %v521 = vsel %vm409, %v393, %v502
      %v522 = vsel %vm410, %v394, %v504
      %v523 = vsel %vm411, %v395, %v506
      %v524 = vsel %vm412, %v396, %v508
      %525 = vst [vmem:[%s248] sm:$0xff] %v509
      %526 = vst [vmem:[%s248 + $0x8] sm:$0xff] %v510
      %527 = vst [vmem:[%s248 + $0x10] sm:$0xff] %v511
      %528 = vst [vmem:[%s248 + $0x18] sm:$0xff] %v512
      %529 = vst [vmem:[%s248 + $0x20] sm:$0xff] %v513
      %530 = vst [vmem:[%s248 + $0x28] sm:$0xff] %v514
      %531 = vst [vmem:[%s248 + $0x30] sm:$0xff] %v515
      %532 = vst [vmem:[%s248 + $0x38] sm:$0xff] %v516
      %533 = vst [vmem:[%s248 + $0x40] sm:$0xff] %v517
      %534 = vst [vmem:[%s248 + $0x48] sm:$0xff] %v518
      %535 = vst [vmem:[%s248 + $0x50] sm:$0xff] %v519
      %536 = vst [vmem:[%s248 + $0x58] sm:$0xff] %v520
      %537 = vst [vmem:[%s248 + $0x60] sm:$0xff] %v521
      %538 = vst [vmem:[%s248 + $0x68] sm:$0xff] %v522
      %539 = vst [vmem:[%s248 + $0x70] sm:$0xff] %v523
      %540 = vst [vmem:[%s248 + $0x78] sm:$0xff] %v524
      %s541 = smul.u32 16, %s16
      %p542 = scmp.lt.s32.totalorder %s541, 31
      %s543 = scalar_select %p542, %s541, 31
      %s544 = smul.addr %s543, 8
      %s545 = scalar_lea.vmem %s5, %s544
      // Predicated region
      $region41: #{conv_func_cgcnn.7} parent=39 // pred_check
        %p546 = pneg %p149
      $region42: #{conv_func_cgcnn.7} parent=39 // pred_check_branch
        %548 = sbr.rel (%p546) target = $region44
      $region43: #{conv_func_cgcnn.7} parent=39 // pred_region
        %s549 = smul.u32 16, %s16
      $region44: #{conv_func_cgcnn.7} parent=39 // pred_fallthru
        _
    $region40: #{conv_func_cgcnn.7} parent=5 // pred_fallthru
      _
    %p550 = scmp.le.s32.totalorder 2, %s11
    // Predicated region
    $region45: #{conv_func_cgcnn.7} parent=5 // pred_check
      %p551 = pneg %p550
    $region46: #{conv_func_cgcnn.7} parent=5 // pred_check_branch
      %553 = sbr.rel (%p551) target = $region48
    $region47: #{conv_func_cgcnn.7} parent=5 // pred_region
      %s554 = ssub.s32 %s11, 2
      // Predicated region
      $region49: #{conv_func_cgcnn.7} parent=47 // pred_check
        %p555 = pneg %p155
      $region50: #{conv_func_cgcnn.7} parent=47 // pred_check_branch
        %557 = sbr.rel (%p555) target = $region52
      $region51: #{conv_func_cgcnn.7} parent=47 // pred_region
        %s558 = smul.u32 16, %s17
        %p559 = scmp.lt.s32.totalorder %s558, 31
        %s560 = scalar_select %p559, %s558, 31
        %s561 = smul.addr %s560, 8
        %s562 = scalar_lea.vmem %s5, %s561
      $region52: #{conv_func_cgcnn.7} parent=47 // pred_fallthru
        _
    $region48: #{conv_func_cgcnn.7} parent=5 // pred_fallthru
      _
  $region6: #{conv_func_cgcnn.7} parent=0 // loop_footer
    %s15 = sadd.s32 1, %s11
  $region7: #{conv_func_cgcnn.7} parent=0 // loop_footer_branch
    %10 = sbr.rel target = $region3
  $region8: #{conv_func_cgcnn.7} parent=0 // loop_exit
    _

</llo_original>
